<compile_context>
chip_gen: v7x
topology: tpu7x:2x2x1
jax: 0.10.0
libtpu: 0.0.40
codegen_flags: <defaults>
</compile_context>

<pallas_src>
import functools

import jax
import jax.numpy as jnp
from jax.experimental import pallas as pl
from jax.experimental.pallas import tpu as pltpu


def convlstm_kernel(x_ref, w_ref, b_ref, c_ref, h_out_ref, c_out_ref, *,
                    Ch, K, Wp, Ncols):
    """One image of the fused ConvLSTM cell.

    Column space ("jo-space"): output pixel (ho, wo) lives at column
    jo = ho*Wp + wo of the padded-flattened image; tap (kh, kw) of that pixel
    is column jo + kh*Wp + kw of the activation.

    x_ref : (Cin, L)        padded combined activation, flattened spatial
    w_ref : (K*K, 4*Ch, Cin) per-tap conv weight views
    b_ref : (4*Ch, 1)       conv bias (f32)
    c_ref : (Ch, Ncols)     previous cell state in jo-space (f32)
    h_out_ref, c_out_ref : (Ch, Ncols)
    """
    # Conv as K*K tap matmuls accumulated in f32 — the activation is read from
    # HBM exactly once; the shifted lane slices are cheap in-VMEM relayouts.
    acc = None
    for kh in range(K):
        for kw in range(K):
            s = kh * Wp + kw                          # static lane offset
            tap = x_ref[:, s:s + Ncols]               # (Cin, Ncols)
            part = jnp.dot(w_ref[kh * K + kw], tap,
                           preferred_element_type=jnp.float32)
            acc = part if acc is None else acc + part
    acc = acc + b_ref[...]                            # (4*Ch, Ncols) f32

    # Gate nonlinearities: two dense EUP passes over sublane-aligned slices
    # (Ch % 8 == 0), no iota / select / extra full-block temporary.
    ifo = 0.5 * jnp.tanh(0.5 * acc[:3 * Ch, :]) + 0.5   # sigmoid(i, f, o)
    g_g = jnp.tanh(acc[3 * Ch:, :])                      # tanh(g)

    i_g = ifo[0 * Ch:1 * Ch, :]
    f_g = ifo[1 * Ch:2 * Ch, :]
    o_g = ifo[2 * Ch:3 * Ch, :]

    c_prev = c_ref[...]
    new_c = f_g * c_prev + i_g * g_g
    new_h = o_g * jnp.tanh(new_c)

    c_out_ref[...] = new_c
    h_out_ref[...] = new_h


@functools.partial(jax.jit, static_argnames=("kernel_size", "mxu_dtype"))
def conv_lstm_cell(x_nchw, h_nchw, c_nchw, w_oihw, bias, kernel_size,
                   mxu_dtype=jnp.bfloat16):
    """Forward pass matching the PyTorch ConvLSTMCell (NCHW in / NCHW out).

    mxu_dtype: dtype of the matmul operands (activation & weights).  bf16 is
    the default on all generations (v5e's MXU is bf16-native; only gate math
    would care, and that stays f32).  Pass jnp.float32 for a bit-tighter path.
    """
    B, cin_x, H, W = x_nchw.shape
    Ch = h_nchw.shape[1]
    K = kernel_size
    p = (K - 1) // 2
    Cin = cin_x + Ch
    C4 = 4 * Ch
    Hp, Wp = H + 2 * p, W + 2 * p
    f32 = jnp.float32

    assert Ch % 8 == 0, "hidden_channels must be a multiple of 8 (aligned gate slices)"

    # jo-space sizing: valid output columns are jo = ho*Wp + wo < H*Wp; the
    # largest tap shift is smax; pad so every in-kernel slice is in bounds.
    smax = (K - 1) * Wp + (K - 1)
    Ncols = ((H * Wp + 127) // 128) * 128                 # lane-dense out block
    L = ((max(Hp * Wp, smax + Ncols) + 127) // 128) * 128

    # ---- XLA-side glue (one fused producer pass each; ~1x activation bytes,
    # no transposes — `combined` is already channels-major like NCHW).
    combined = jnp.concatenate([x_nchw, h_nchw], axis=1).astype(mxu_dtype)
    act = jnp.pad(combined, ((0, 0), (0, 0), (p, p), (p, p)))   # (B,Cin,Hp,Wp)
    act = act.reshape(B, Cin, Hp * Wp)
    act = jnp.pad(act, ((0, 0), (0, 0), (0, L - Hp * Wp)))      # (B,Cin,L)

    # Per-tap weight views: w_taps[kh*K + kw] == w_oihw[:, :, kh, kw].
    w_taps = jnp.transpose(w_oihw, (2, 3, 0, 1)).reshape(K * K, C4, Cin)
    w_taps = w_taps.astype(mxu_dtype)                            # tiny
    b = bias.astype(f32).reshape(C4, 1)

    # Cell state mapped into jo-space (pad W -> Wp on the right, then lanes).
    c = jnp.pad(c_nchw.astype(f32), ((0, 0), (0, 0), (0, 0), (0, Wp - W)))
    c = c.reshape(B, Ch, H * Wp)
    c = jnp.pad(c, ((0, 0), (0, 0), (0, Ncols - H * Wp)))        # (B,Ch,Ncols)

    kern = functools.partial(convlstm_kernel, Ch=Ch, K=K, Wp=Wp, Ncols=Ncols)
    state_spec = pl.BlockSpec((None, Ch, Ncols), lambda bb: (bb, 0, 0))

    # Grid over images only: per-step VMEM is tiny now (no im2col block), so
    # even production H=W=64 fits comfortably in every generation's scoped
    # VMEM.  With B >= 2 the "parallel" axis feeds both v7x TensorCores; for
    # B == 1 at large spatial sizes, split rows with a halo'd pl.Element
    # window (or use CORE_PARALLEL) to keep both cores busy.
    h_new, c_new = pl.pallas_call(
        kern,
        out_shape=(jax.ShapeDtypeStruct((B, Ch, Ncols), f32),
                   jax.ShapeDtypeStruct((B, Ch, Ncols), f32)),
        grid_spec=pltpu.PrefetchScalarGridSpec(
            num_scalar_prefetch=0,
            grid=(B,),
            in_specs=[
                pl.BlockSpec((None, Cin, L), lambda bb: (bb, 0, 0)),
                pl.BlockSpec((K * K, C4, Cin), lambda bb: (0, 0, 0)),
                pl.BlockSpec((C4, 1), lambda bb: (0, 0)),
                state_spec,
            ],
            out_specs=[state_spec, state_spec],
        ),
        input_output_aliases={3: 1},       # c input buffer reused for new_c
        compiler_params=pltpu.CompilerParams(
            dimension_semantics=("parallel",)),
    )(act, w_taps, b, c)

    # jo-space -> NCHW (small outputs; one cheap slice pass).
    def unpack(y):
        return y[:, :, :H * Wp].reshape(B, Ch, H, Wp)[:, :, :, :W]

    return unpack(h_new), unpack(c_new)


def _reference(x, h, c, w, b, K):
    """Pure-JAX reference of the PyTorch forward (NCHW)."""
    p = (K - 1) // 2
    combined = jnp.concatenate([x, h], axis=1)
    a = jax.lax.conv_general_dilated(
        combined, w, window_strides=(1, 1), padding=((p, p), (p, p)),
        dimension_numbers=("NCHW", "OIHW", "NCHW"))
    a = a + b.reshape(1, -1, 1, 1)
    ai, af, ao, ag = jnp.split(a, 4, axis=1)
    i = jax.nn.sigmoid(ai)
    f = jax.nn.sigmoid(af)
    o = jax.nn.sigmoid(ao)
    g = jnp.tanh(ag)
    new_c = f * c + i * g
    new_h = o * jnp.tanh(new_c)
    return new_h, new_c


if __name__ == "__main__":
    # Shapes implied by the module: NCHW input, hidden state same spatial size.
    B, Cin, Ch, H, W, K = 2, 4, 32, 16, 16, 3

    key = jax.random.PRNGKey(0)
    kx, khk, kck, kwk, kbk = jax.random.split(key, 5)

    x = jax.random.normal(kx, (B, Cin, H, W), jnp.float32)
    h0 = jax.random.normal(khk, (B, Ch, H, W), jnp.float32)
    c0 = jax.random.normal(kck, (B, Ch, H, W), jnp.float32)

    # Synthetic Conv2d(Cin+Ch, 4*Ch, K, padding=K//2, bias=True) parameters.
    fan_in = (Cin + Ch) * K * K
    w_oihw = jax.random.normal(kwk, (4 * Ch, Cin + Ch, K, K),
                               jnp.float32) / jnp.sqrt(fan_in)
    bias = 0.01 * jax.random.normal(kbk, (4 * Ch,), jnp.float32)

    h_exp, c_exp = _reference(x, h0, c0, w_oihw, bias, K)

    # f32 MXU operands: tight numerical check of the in-kernel tap pipeline.
    h32, c32 = conv_lstm_cell(x, h0, c0, w_oihw, bias, kernel_size=K,
                              mxu_dtype=jnp.float32)
    jax.block_until_ready((h32, c32))
    assert h32.shape == (B, Ch, H, W) and c32.shape == (B, Ch, H, W)
    assert jnp.allclose(h32, h_exp, atol=1e-4, rtol=1e-4)
    assert jnp.allclose(c32, c_exp, atol=1e-4, rtol=1e-4)

    # bf16 MXU operands (the default): only matmul inputs are rounded; f32
    # accumulation + f32 gate/cell math, so tolerance is loosened accordingly.
    h_bf, c_bf = conv_lstm_cell(x, h0, c0, w_oihw, bias, kernel_size=K)
    jax.block_until_ready((h_bf, c_bf))
    assert jnp.allclose(h_bf, h_exp, atol=5e-2, rtol=5e-2)
    assert jnp.allclose(c_bf, c_exp, atol=5e-2, rtol=5e-2)

    print("KERNEL_OK")
</pallas_src>

<mosaic_0001>
module attributes {stable_mosaic.version = 11 : i64} {
  func.func @convlstm_kernel(%arg0: i32, %arg1: memref<1x36x512xf32, #tpu.memory_space<vmem>>, %arg2: memref<9x128x36xf32, #tpu.memory_space<vmem>>, %arg3: memref<128x1xf32, #tpu.memory_space<vmem>>, %arg4: memref<1x32x384xf32, #tpu.memory_space<vmem>>, %arg5: memref<1x32x384xf32, #tpu.memory_space<vmem>>, %arg6: memref<1x32x384xf32, #tpu.memory_space<vmem>>) attributes {dimension_semantics = [#tpu.dimension_semantics<parallel>], iteration_bounds = array<i64: 2>, scalar_prefetch = 0 : i64, scratch_operands = 0 : i64, tpu.core_type = #tpu.core_type<tc>, window_params = [{transform_indices = @transform_0, window_bounds = array<i64: 1, 36, 512>}, {pipeline_mode = #tpu.pipeline_mode<synchronous>, transform_indices = @transform_1, window_bounds = array<i64: 9, 128, 36>}, {pipeline_mode = #tpu.pipeline_mode<synchronous>, transform_indices = @transform_2, window_bounds = array<i64: 128, 1>}, {transform_indices = @transform_3, window_bounds = array<i64: 1, 32, 384>}, {transform_indices = @transform_4, window_bounds = array<i64: 1, 32, 384>}, {transform_indices = @transform_5, window_bounds = array<i64: 1, 32, 384>}]} {
    %c0 = arith.constant 0 : index
    %c0_0 = arith.constant 0 : index
    %c0_1 = arith.constant 0 : index
    %0 = vector.load %arg1[%c0, %c0_0, %c0_1] : memref<1x36x512xf32, #tpu.memory_space<vmem>>, vector<1x36x384xf32>
    %1 = vector.shape_cast %0 : vector<1x36x384xf32> to vector<36x384xf32>
    %c0_2 = arith.constant 0 : index
    %c0_3 = arith.constant 0 : index
    %c0_4 = arith.constant 0 : index
    %2 = vector.load %arg2[%c0_2, %c0_3, %c0_4] : memref<9x128x36xf32, #tpu.memory_space<vmem>>, vector<1x128x36xf32>
    %3 = vector.shape_cast %2 : vector<1x128x36xf32> to vector<128x36xf32>
    %cst = arith.constant dense<0.000000e+00> : vector<128x384xf32>
    %4 = tpu.matmul %3, %1, %cst {dimension_numbers = #tpu.dot_dimension_numbers<[1], [0], [0], [1], [0, 0, 1, 1], [], []>} : vector<128x36xf32>, vector<36x384xf32>, vector<128x384xf32> -> vector<128x384xf32>
    %c0_5 = arith.constant 0 : index
    %c0_6 = arith.constant 0 : index
    %c1 = arith.constant 1 : index
    %5 = vector.load %arg1[%c0_5, %c0_6, %c1] : memref<1x36x512xf32, #tpu.memory_space<vmem>>, vector<1x36x384xf32>
    %6 = vector.shape_cast %5 : vector<1x36x384xf32> to vector<36x384xf32>
    %c1_7 = arith.constant 1 : index
    %c0_8 = arith.constant 0 : index
    %c0_9 = arith.constant 0 : index
    %7 = vector.load %arg2[%c1_7, %c0_8, %c0_9] : memref<9x128x36xf32, #tpu.memory_space<vmem>>, vector<1x128x36xf32>
    %8 = vector.shape_cast %7 : vector<1x128x36xf32> to vector<128x36xf32>
    %cst_10 = arith.constant dense<0.000000e+00> : vector<128x384xf32>
    %9 = tpu.matmul %8, %6, %cst_10 {dimension_numbers = #tpu.dot_dimension_numbers<[1], [0], [0], [1], [0, 0, 1, 1], [], []>} : vector<128x36xf32>, vector<36x384xf32>, vector<128x384xf32> -> vector<128x384xf32>
    %10 = arith.addf %4, %9 : vector<128x384xf32>
    %c0_11 = arith.constant 0 : index
    %c0_12 = arith.constant 0 : index
    %c2 = arith.constant 2 : index
    %11 = vector.load %arg1[%c0_11, %c0_12, %c2] : memref<1x36x512xf32, #tpu.memory_space<vmem>>, vector<1x36x384xf32>
    %12 = vector.shape_cast %11 : vector<1x36x384xf32> to vector<36x384xf32>
    %c2_13 = arith.constant 2 : index
    %c0_14 = arith.constant 0 : index
    %c0_15 = arith.constant 0 : index
    %13 = vector.load %arg2[%c2_13, %c0_14, %c0_15] : memref<9x128x36xf32, #tpu.memory_space<vmem>>, vector<1x128x36xf32>
    %14 = vector.shape_cast %13 : vector<1x128x36xf32> to vector<128x36xf32>
    %cst_16 = arith.constant dense<0.000000e+00> : vector<128x384xf32>
    %15 = tpu.matmul %14, %12, %cst_16 {dimension_numbers = #tpu.dot_dimension_numbers<[1], [0], [0], [1], [0, 0, 1, 1], [], []>} : vector<128x36xf32>, vector<36x384xf32>, vector<128x384xf32> -> vector<128x384xf32>
    %16 = arith.addf %10, %15 : vector<128x384xf32>
    %c0_17 = arith.constant 0 : index
    %c0_18 = arith.constant 0 : index
    %c18 = arith.constant 18 : index
    %17 = vector.load %arg1[%c0_17, %c0_18, %c18] : memref<1x36x512xf32, #tpu.memory_space<vmem>>, vector<1x36x384xf32>
    %18 = vector.shape_cast %17 : vector<1x36x384xf32> to vector<36x384xf32>
    %c3 = arith.constant 3 : index
    %c0_19 = arith.constant 0 : index
    %c0_20 = arith.constant 0 : index
    %19 = vector.load %arg2[%c3, %c0_19, %c0_20] : memref<9x128x36xf32, #tpu.memory_space<vmem>>, vector<1x128x36xf32>
    %20 = vector.shape_cast %19 : vector<1x128x36xf32> to vector<128x36xf32>
    %cst_21 = arith.constant dense<0.000000e+00> : vector<128x384xf32>
    %21 = tpu.matmul %20, %18, %cst_21 {dimension_numbers = #tpu.dot_dimension_numbers<[1], [0], [0], [1], [0, 0, 1, 1], [], []>} : vector<128x36xf32>, vector<36x384xf32>, vector<128x384xf32> -> vector<128x384xf32>
    %22 = arith.addf %16, %21 : vector<128x384xf32>
    %c0_22 = arith.constant 0 : index
    %c0_23 = arith.constant 0 : index
    %c19 = arith.constant 19 : index
    %23 = vector.load %arg1[%c0_22, %c0_23, %c19] : memref<1x36x512xf32, #tpu.memory_space<vmem>>, vector<1x36x384xf32>
    %24 = vector.shape_cast %23 : vector<1x36x384xf32> to vector<36x384xf32>
    %c4 = arith.constant 4 : index
    %c0_24 = arith.constant 0 : index
    %c0_25 = arith.constant 0 : index
    %25 = vector.load %arg2[%c4, %c0_24, %c0_25] : memref<9x128x36xf32, #tpu.memory_space<vmem>>, vector<1x128x36xf32>
    %26 = vector.shape_cast %25 : vector<1x128x36xf32> to vector<128x36xf32>
    %cst_26 = arith.constant dense<0.000000e+00> : vector<128x384xf32>
    %27 = tpu.matmul %26, %24, %cst_26 {dimension_numbers = #tpu.dot_dimension_numbers<[1], [0], [0], [1], [0, 0, 1, 1], [], []>} : vector<128x36xf32>, vector<36x384xf32>, vector<128x384xf32> -> vector<128x384xf32>
    %28 = arith.addf %22, %27 : vector<128x384xf32>
    %c0_27 = arith.constant 0 : index
    %c0_28 = arith.constant 0 : index
    %c20 = arith.constant 20 : index
    %29 = vector.load %arg1[%c0_27, %c0_28, %c20] : memref<1x36x512xf32, #tpu.memory_space<vmem>>, vector<1x36x384xf32>
    %30 = vector.shape_cast %29 : vector<1x36x384xf32> to vector<36x384xf32>
    %c5 = arith.constant 5 : index
    %c0_29 = arith.constant 0 : index
    %c0_30 = arith.constant 0 : index
    %31 = vector.load %arg2[%c5, %c0_29, %c0_30] : memref<9x128x36xf32, #tpu.memory_space<vmem>>, vector<1x128x36xf32>
    %32 = vector.shape_cast %31 : vector<1x128x36xf32> to vector<128x36xf32>
    %cst_31 = arith.constant dense<0.000000e+00> : vector<128x384xf32>
    %33 = tpu.matmul %32, %30, %cst_31 {dimension_numbers = #tpu.dot_dimension_numbers<[1], [0], [0], [1], [0, 0, 1, 1], [], []>} : vector<128x36xf32>, vector<36x384xf32>, vector<128x384xf32> -> vector<128x384xf32>
    %34 = arith.addf %28, %33 : vector<128x384xf32>
    %c0_32 = arith.constant 0 : index
    %c0_33 = arith.constant 0 : index
    %c36 = arith.constant 36 : index
    %35 = vector.load %arg1[%c0_32, %c0_33, %c36] : memref<1x36x512xf32, #tpu.memory_space<vmem>>, vector<1x36x384xf32>
    %36 = vector.shape_cast %35 : vector<1x36x384xf32> to vector<36x384xf32>
    %c6 = arith.constant 6 : index
    %c0_34 = arith.constant 0 : index
    %c0_35 = arith.constant 0 : index
    %37 = vector.load %arg2[%c6, %c0_34, %c0_35] : memref<9x128x36xf32, #tpu.memory_space<vmem>>, vector<1x128x36xf32>
    %38 = vector.shape_cast %37 : vector<1x128x36xf32> to vector<128x36xf32>
    %cst_36 = arith.constant dense<0.000000e+00> : vector<128x384xf32>
    %39 = tpu.matmul %38, %36, %cst_36 {dimension_numbers = #tpu.dot_dimension_numbers<[1], [0], [0], [1], [0, 0, 1, 1], [], []>} : vector<128x36xf32>, vector<36x384xf32>, vector<128x384xf32> -> vector<128x384xf32>
    %40 = arith.addf %34, %39 : vector<128x384xf32>
    %c0_37 = arith.constant 0 : index
    %c0_38 = arith.constant 0 : index
    %c37 = arith.constant 37 : index
    %41 = vector.load %arg1[%c0_37, %c0_38, %c37] : memref<1x36x512xf32, #tpu.memory_space<vmem>>, vector<1x36x384xf32>
    %42 = vector.shape_cast %41 : vector<1x36x384xf32> to vector<36x384xf32>
    %c7 = arith.constant 7 : index
    %c0_39 = arith.constant 0 : index
    %c0_40 = arith.constant 0 : index
    %43 = vector.load %arg2[%c7, %c0_39, %c0_40] : memref<9x128x36xf32, #tpu.memory_space<vmem>>, vector<1x128x36xf32>
    %44 = vector.shape_cast %43 : vector<1x128x36xf32> to vector<128x36xf32>
    %cst_41 = arith.constant dense<0.000000e+00> : vector<128x384xf32>
    %45 = tpu.matmul %44, %42, %cst_41 {dimension_numbers = #tpu.dot_dimension_numbers<[1], [0], [0], [1], [0, 0, 1, 1], [], []>} : vector<128x36xf32>, vector<36x384xf32>, vector<128x384xf32> -> vector<128x384xf32>
    %46 = arith.addf %40, %45 : vector<128x384xf32>
    %c0_42 = arith.constant 0 : index
    %c0_43 = arith.constant 0 : index
    %c38 = arith.constant 38 : index
    %47 = vector.load %arg1[%c0_42, %c0_43, %c38] : memref<1x36x512xf32, #tpu.memory_space<vmem>>, vector<1x36x384xf32>
    %48 = vector.shape_cast %47 : vector<1x36x384xf32> to vector<36x384xf32>
    %c8 = arith.constant 8 : index
    %c0_44 = arith.constant 0 : index
    %c0_45 = arith.constant 0 : index
    %49 = vector.load %arg2[%c8, %c0_44, %c0_45] : memref<9x128x36xf32, #tpu.memory_space<vmem>>, vector<1x128x36xf32>
    %50 = vector.shape_cast %49 : vector<1x128x36xf32> to vector<128x36xf32>
    %cst_46 = arith.constant dense<0.000000e+00> : vector<128x384xf32>
    %51 = tpu.matmul %50, %48, %cst_46 {dimension_numbers = #tpu.dot_dimension_numbers<[1], [0], [0], [1], [0, 0, 1, 1], [], []>} : vector<128x36xf32>, vector<36x384xf32>, vector<128x384xf32> -> vector<128x384xf32>
    %52 = arith.addf %46, %51 : vector<128x384xf32>
    %c0_47 = arith.constant 0 : index
    %c0_48 = arith.constant 0 : index
    %53 = vector.load %arg3[%c0_47, %c0_48] : memref<128x1xf32, #tpu.memory_space<vmem>>, vector<128x1xf32>
    %54 = vector.broadcast %53 : vector<128x1xf32> to vector<128x384xf32>
    %55 = arith.addf %52, %54 : vector<128x384xf32>
    %56 = vector.extract_strided_slice %55 {offsets = [0, 0], sizes = [96, 384], strides = [1, 1]} : vector<128x384xf32> to vector<96x384xf32>
    %cst_49 = arith.constant 5.000000e-01 : f32
    %57 = vector.broadcast %cst_49 : f32 to vector<96x384xf32>
    %58 = arith.mulf %57, %56 : vector<96x384xf32>
    %59 = math.tanh %58 : vector<96x384xf32>
    %cst_50 = arith.constant 5.000000e-01 : f32
    %60 = vector.broadcast %cst_50 : f32 to vector<96x384xf32>
    %61 = arith.mulf %60, %59 : vector<96x384xf32>
    %cst_51 = arith.constant 5.000000e-01 : f32
    %62 = vector.broadcast %cst_51 : f32 to vector<96x384xf32>
    %63 = arith.addf %61, %62 : vector<96x384xf32>
    %64 = vector.extract_strided_slice %55 {offsets = [96, 0], sizes = [32, 384], strides = [1, 1]} : vector<128x384xf32> to vector<32x384xf32>
    %65 = math.tanh %64 : vector<32x384xf32>
    %66 = vector.extract_strided_slice %63 {offsets = [0, 0], sizes = [32, 384], strides = [1, 1]} : vector<96x384xf32> to vector<32x384xf32>
    %67 = vector.extract_strided_slice %63 {offsets = [32, 0], sizes = [32, 384], strides = [1, 1]} : vector<96x384xf32> to vector<32x384xf32>
    %68 = vector.extract_strided_slice %63 {offsets = [64, 0], sizes = [32, 384], strides = [1, 1]} : vector<96x384xf32> to vector<32x384xf32>
    %c0_52 = arith.constant 0 : index
    %c0_53 = arith.constant 0 : index
    %c0_54 = arith.constant 0 : index
    %69 = vector.load %arg4[%c0_52, %c0_53, %c0_54] : memref<1x32x384xf32, #tpu.memory_space<vmem>>, vector<1x32x384xf32>
    %70 = vector.shape_cast %69 : vector<1x32x384xf32> to vector<32x384xf32>
    %71 = arith.mulf %67, %70 : vector<32x384xf32>
    %72 = arith.mulf %66, %65 : vector<32x384xf32>
    %73 = arith.addf %71, %72 : vector<32x384xf32>
    %74 = math.tanh %73 : vector<32x384xf32>
    %75 = arith.mulf %68, %74 : vector<32x384xf32>
    %c0_55 = arith.constant 0 : index
    %c0_56 = arith.constant 0 : index
    %c0_57 = arith.constant 0 : index
    %76 = vector.load %arg6[%c0_55, %c0_56, %c0_57] : memref<1x32x384xf32, #tpu.memory_space<vmem>>, vector<1x32x384xf32>
    %77 = vector.shape_cast %76 : vector<1x32x384xf32> to vector<32x384xf32>
    %78 = vector.shape_cast %73 : vector<32x384xf32> to vector<1x32x384xf32>
    tpu.vector_store %arg6[%c0_55, %c0_56, %c0_57], %78 {strides = array<i32>} : memref<1x32x384xf32, #tpu.memory_space<vmem>>, vector<1x32x384xf32>,
    %c0_58 = arith.constant 0 : index
    %c0_59 = arith.constant 0 : index
    %c0_60 = arith.constant 0 : index
    %79 = vector.load %arg5[%c0_58, %c0_59, %c0_60] : memref<1x32x384xf32, #tpu.memory_space<vmem>>, vector<1x32x384xf32>
    %80 = vector.shape_cast %79 : vector<1x32x384xf32> to vector<32x384xf32>
    %81 = vector.shape_cast %75 : vector<32x384xf32> to vector<1x32x384xf32>
    tpu.vector_store %arg5[%c0_58, %c0_59, %c0_60], %81 {strides = array<i32>} : memref<1x32x384xf32, #tpu.memory_space<vmem>>, vector<1x32x384xf32>,
    return
  }
  func.func @transform_0(%arg0: i32) -> (i32, i32, i32) {
    %c0_i32 = arith.constant 0 : i32
    %c0_i32_0 = arith.constant 0 : i32
    %c0_i32_1 = arith.constant 0 : i32
    return %arg0, %c0_i32, %c0_i32_0 : i32, i32, i32
  }
  func.func @transform_1(%arg0: i32) -> (i32, i32, i32) {
    %c0_i32 = arith.constant 0 : i32
    %c0_i32_0 = arith.constant 0 : i32
    %c0_i32_1 = arith.constant 0 : i32
    %c0_i32_2 = arith.constant 0 : i32
    return %c0_i32, %c0_i32_0, %c0_i32_1 : i32, i32, i32
  }
  func.func @transform_2(%arg0: i32) -> (i32, i32) {
    %c0_i32 = arith.constant 0 : i32
    %c0_i32_0 = arith.constant 0 : i32
    %c0_i32_1 = arith.constant 0 : i32
    return %c0_i32, %c0_i32_0 : i32, i32
  }
  func.func @transform_3(%arg0: i32) -> (i32, i32, i32) {
    %c0_i32 = arith.constant 0 : i32
    %c0_i32_0 = arith.constant 0 : i32
    %c0_i32_1 = arith.constant 0 : i32
    return %arg0, %c0_i32, %c0_i32_0 : i32, i32, i32
  }
  func.func @transform_4(%arg0: i32) -> (i32, i32, i32) {
    %c0_i32 = arith.constant 0 : i32
    %c0_i32_0 = arith.constant 0 : i32
    %c0_i32_1 = arith.constant 0 : i32
    return %arg0, %c0_i32, %c0_i32_0 : i32, i32, i32
  }
  func.func @transform_5(%arg0: i32) -> (i32, i32, i32) {
    %c0_i32 = arith.constant 0 : i32
    %c0_i32_0 = arith.constant 0 : i32
    %c0_i32_1 = arith.constant 0 : i32
    return %arg0, %c0_i32, %c0_i32_0 : i32, i32, i32
  }
}

</mosaic_0001>

<llo_original>
// kernel: conv_lstm_cell.1
$region0: #{conv_lstm_cell.1}
  #allocation0 [shape = 'u32[]', space=smem, size = 0x4, offset = 0x4, fixed_abs, tag = 'smem constant byte address 0x4 - core index']
  #allocation1 [shape = 'u32[144,128]{1,0:T(1,128)}', space=vmem, size = 0x12000, scoped, tag = 'internal scratch']
  %s0 = inlined_call_operand.vmem [shape: f32[2,36,512], index: 0, kind: input, shape index: {}]
  %s1 = inlined_call_operand.vmem [shape: f32[9,128,36], index: 1, kind: input, shape index: {}]
  %s2 = inlined_call_operand.vmem [shape: f32[128,1], index: 2, kind: input, shape index: {}]
  %s3 = inlined_call_operand.vmem [shape: f32[2,32,384], index: 3, kind: input, shape index: {}, may-alias: {3,5}]
  %s4 = inlined_call_operand.vmem [shape: f32[2,32,384], index: 4, kind: output, shape index: {0}]
  %s5 = inlined_call_operand.vmem [shape: f32[2,32,384], index: 5, kind: output, shape index: {1}, may-alias: {3,5}]
  %6 = xla_tuple %s4, %s5
  %s7 = sld [smem:[#allocation0]]
  $region57: #{conv_lstm_cell.1} parent=0
    _
  %s9 = ssub.s32 1, %s7
  %s10 = scalar_select 0, %s9, %s7
  loop: start=0, step=1, limit=4
  $region2: #{conv_lstm_cell.1} parent=0 // loop_pre_header
    _
  $region3: #{conv_lstm_cell.1} parent=0 // loop_header
    %s12 = sphi 0, %s16
    %p13 = scmp.ge.s32.totalorder %s12, 4
    %s22 = sphi 0, %s24
    %s25 = sphi 0, %s22
    %s26 = sphi 0, %s25
    %s42 = sphi 0, %s26
    %s46 = sphi 0, %s46
    %s48 = sphi 0, %s46
    %s49 = sphi 0, %s48
    %s63 = sphi 0, %s49
    %s67 = sphi 0, %s67
    %s69 = sphi 0, %s67
    %s70 = sphi 0, %s69
    %s84 = sphi 0, %s70
    %s90 = sphi 0, %s92
    %s93 = sphi 0, %s90
    %s94 = sphi 0, %s93
    %s110 = sphi 0, %s94
    %s116 = sphi 0, %s118
    %s119 = sphi 0, %s116
    %s120 = sphi 0, %s119
    %s136 = sphi 0, %s120
    %s142 = sphi 0, %s144
    %s145 = sphi 0, %s142
    %s146 = sphi 0, %s145
    %s162 = sphi 0, %s146
  $region4: #{conv_lstm_cell.1} parent=0 // loop_header_branch
    %15 = sbr.rel (%p13) target = $region8
  $region5: #{conv_lstm_cell.1} parent=0 // loop_body
    %s17 = ssub.s32 %s12, 1
    %s18 = ssub.s32 %s12, 2
    %s19 = sadd.s32 %s12, 1
    %s20 = ssub.s32 %s12, %s19
    %p21 = scmp.eq.s32.totalorder %s20, 0
    %s23 = sadd.s32 %s22, 1
    %s24 = scalar_select %p21, %s22, %s23
    %p27 = pneg %p21
    %p28 = scmp.eq.s32.totalorder %s12, 1
    %p29 = por %p27, %p28
    %p30 = scmp.ne.s32.totalorder %s22, %s25
    %p31 = scmp.eq.s32.totalorder %s12, 0
    %p32 = por %p30, %p31
    %p33 = scmp.ne.s32.totalorder %s22, %s25
    %p34 = scmp.eq.s32.totalorder %s17, 1
    %p35 = por %p33, %p34
    %p36 = scmp.ne.s32.totalorder %s25, %s26
    %p37 = scmp.eq.s32.totalorder %s17, 0
    %p38 = por %p36, %p37
    %p39 = scmp.ne.s32.totalorder %s25, %s26
    %p40 = scmp.eq.s32.totalorder %s18, 1
    %p41 = por %p39, %p40
    %p43 = scmp.ne.s32.totalorder %s26, %s42
    %p44 = scmp.eq.s32.totalorder %s18, 0
    %p45 = por %p43, %p44
    %s47 = sadd.s32 %s46, 1
    %p50 = scmp.eq.s32.totalorder %s12, 1
    %p51 = scmp.ne.s32.totalorder %s46, %s48
    %p52 = scmp.eq.s32.totalorder %s12, 0
    %p53 = por %p51, %p52
    %p54 = scmp.ne.s32.totalorder %s46, %s48
    %p55 = scmp.eq.s32.totalorder %s17, 1
    %p56 = por %p54, %p55
    %p57 = scmp.ne.s32.totalorder %s48, %s49
    %p58 = scmp.eq.s32.totalorder %s17, 0
    %p59 = por %p57, %p58
    %p60 = scmp.ne.s32.totalorder %s48, %s49
    %p61 = scmp.eq.s32.totalorder %s18, 1
    %p62 = por %p60, %p61
    %p64 = scmp.ne.s32.totalorder %s49, %s63
    %p65 = scmp.eq.s32.totalorder %s18, 0
    %p66 = por %p64, %p65
    %s68 = sadd.s32 %s67, 1
    %p71 = scmp.eq.s32.totalorder %s12, 1
    %p72 = scmp.ne.s32.totalorder %s67, %s69
    %p73 = scmp.eq.s32.totalorder %s12, 0
    %p74 = por %p72, %p73
    %p75 = scmp.ne.s32.totalorder %s67, %s69
    %p76 = scmp.eq.s32.totalorder %s17, 1
    %p77 = por %p75, %p76
    %p78 = scmp.ne.s32.totalorder %s69, %s70
    %p79 = scmp.eq.s32.totalorder %s17, 0
    %p80 = por %p78, %p79
    %p81 = scmp.ne.s32.totalorder %s69, %s70
    %p82 = scmp.eq.s32.totalorder %s18, 1
    %p83 = por %p81, %p82
    %p85 = scmp.ne.s32.totalorder %s70, %s84
    %p86 = scmp.eq.s32.totalorder %s18, 0
    %p87 = por %p85, %p86
    %s88 = ssub.s32 %s12, %s19
    %p89 = scmp.eq.s32.totalorder %s88, 0
    %s91 = sadd.s32 %s90, 1
    %s92 = scalar_select %p89, %s90, %s91
    %p95 = pneg %p89
    %p96 = scmp.eq.s32.totalorder %s12, 1
    %p97 = por %p95, %p96
    %p98 = scmp.ne.s32.totalorder %s90, %s93
    %p99 = scmp.eq.s32.totalorder %s12, 0
    %p100 = por %p98, %p99
    %p101 = scmp.ne.s32.totalorder %s90, %s93
    %p102 = scmp.eq.s32.totalorder %s17, 1
    %p103 = por %p101, %p102
    %p104 = scmp.ne.s32.totalorder %s93, %s94
    %p105 = scmp.eq.s32.totalorder %s17, 0
    %p106 = por %p104, %p105
    %p107 = scmp.ne.s32.totalorder %s93, %s94
    %p108 = scmp.eq.s32.totalorder %s18, 1
    %p109 = por %p107, %p108
    %p111 = scmp.ne.s32.totalorder %s94, %s110
    %p112 = scmp.eq.s32.totalorder %s18, 0
    %p113 = por %p111, %p112
    %s114 = ssub.s32 %s12, %s19
    %p115 = scmp.eq.s32.totalorder %s114, 0
    %s117 = sadd.s32 %s116, 1
    %s118 = scalar_select %p115, %s116, %s117
    %p121 = pneg %p115
    %p122 = scmp.eq.s32.totalorder %s12, 1
    %p123 = por %p121, %p122
    %p124 = scmp.ne.s32.totalorder %s116, %s119
    %p125 = scmp.eq.s32.totalorder %s12, 0
    %p126 = por %p124, %p125
    %p127 = scmp.ne.s32.totalorder %s116, %s119
    %p128 = scmp.eq.s32.totalorder %s17, 1
    %p129 = por %p127, %p128
    %p130 = scmp.ne.s32.totalorder %s119, %s120
    %p131 = scmp.eq.s32.totalorder %s17, 0
    %p132 = por %p130, %p131
    %p133 = scmp.ne.s32.totalorder %s119, %s120
    %p134 = scmp.eq.s32.totalorder %s18, 1
    %p135 = por %p133, %p134
    %p137 = scmp.ne.s32.totalorder %s120, %s136
    %p138 = scmp.eq.s32.totalorder %s18, 0
    %p139 = por %p137, %p138
    %s140 = ssub.s32 %s12, %s19
    %p141 = scmp.eq.s32.totalorder %s140, 0
    %s143 = sadd.s32 %s142, 1
    %s144 = scalar_select %p141, %s142, %s143
    %p147 = pneg %p141
    %p148 = scmp.eq.s32.totalorder %s12, 1
    %p149 = por %p147, %p148
    %p150 = scmp.ne.s32.totalorder %s142, %s145
    %p151 = scmp.eq.s32.totalorder %s12, 0
    %p152 = por %p150, %p151
    %p153 = scmp.ne.s32.totalorder %s142, %s145
    %p154 = scmp.eq.s32.totalorder %s17, 1
    %p155 = por %p153, %p154
    %p156 = scmp.ne.s32.totalorder %s145, %s146
    %p157 = scmp.eq.s32.totalorder %s17, 0
    %p158 = por %p156, %p157
    %p159 = scmp.ne.s32.totalorder %s145, %s146
    %p160 = scmp.eq.s32.totalorder %s18, 1
    %p161 = por %p159, %p160
    %p163 = scmp.ne.s32.totalorder %s146, %s162
    %p164 = scmp.eq.s32.totalorder %s18, 0
    %p165 = por %p163, %p164
    %p166 = scmp.le.s32.totalorder 1, %s12
    %p167 = scmp.lt.s32.totalorder %s12, 3
    %p168 = pnand %p166, %p167
    %p169 = pneg %p168
    // Predicated region
    $region9: #{conv_lstm_cell.1} parent=5 // pred_check
      _
    $region10: #{conv_lstm_cell.1} parent=5 // pred_check_branch
      %171 = sbr.rel (%p168) target = $region12
    $region11: #{conv_lstm_cell.1} parent=5 // pred_region
      %s172 = ssub.s32 %s12, 1
      // Predicated region
      $region13: #{conv_lstm_cell.1} parent=11 // pred_check
        %p173 = pneg %p59
      $region14: #{conv_lstm_cell.1} parent=11 // pred_check_branch
        %175 = sbr.rel (%p173) target = $region16
      $region15: #{conv_lstm_cell.1} parent=11 // pred_region
        _
      $region16: #{conv_lstm_cell.1} parent=11 // pred_fallthru
        _
      // Predicated region
      $region17: #{conv_lstm_cell.1} parent=11 // pred_check
        %p176 = pneg %p80
      $region18: #{conv_lstm_cell.1} parent=11 // pred_check_branch
        %178 = sbr.rel (%p176) target = $region20
      $region19: #{conv_lstm_cell.1} parent=11 // pred_region
        _
      $region20: #{conv_lstm_cell.1} parent=11 // pred_fallthru
        _
    $region12: #{conv_lstm_cell.1} parent=5 // pred_fallthru
      _
    %p179 = scmp.lt.s32.totalorder %s12, 2
    // Predicated region
    $region21: #{conv_lstm_cell.1} parent=5 // pred_check
      %p180 = pneg %p179
    $region22: #{conv_lstm_cell.1} parent=5 // pred_check_branch
      %182 = sbr.rel (%p180) target = $region24
    $region23: #{conv_lstm_cell.1} parent=5 // pred_region
      // Predicated region
      $region25: #{conv_lstm_cell.1} parent=23 // pred_check
        %p183 = pneg %p32
      $region26: #{conv_lstm_cell.1} parent=23 // pred_check_branch
        %185 = sbr.rel (%p183) target = $region28
      $region27: #{conv_lstm_cell.1} parent=23 // pred_region
        %p186 = scmp.lt.s32.totalorder %s12, 1
        %s187 = scalar_select %p186, %s12, 1
        %s188 = smul.addr %s187, 20
        %s189 = smul.addr %s188, 8
        %s190 = scalar_lea.vmem %s0, %s189
      $region28: #{conv_lstm_cell.1} parent=23 // pred_fallthru
        _
      // Predicated region
      $region29: #{conv_lstm_cell.1} parent=23 // pred_check
        %p191 = pneg %p100
      $region30: #{conv_lstm_cell.1} parent=23 // pred_check_branch
        %193 = sbr.rel (%p191) target = $region32
      $region31: #{conv_lstm_cell.1} parent=23 // pred_region
        %p194 = scmp.lt.s32.totalorder %s12, 1
        %s195 = scalar_select %p194, %s12, 1
        %s196 = smul.addr %s195, 12
        %s197 = smul.addr %s196, 8
        %s198 = scalar_lea.vmem %s3, %s197
      $region32: #{conv_lstm_cell.1} parent=23 // pred_fallthru
        _
    $region24: #{conv_lstm_cell.1} parent=5 // pred_fallthru
      _
    %p199 = scmp.le.s32.totalorder 1, %s12
    %p200 = scmp.lt.s32.totalorder %s12, 3
    %p201 = pnand %p199, %p200
    %p202 = pneg %p201
    // Predicated region
    $region33: #{conv_lstm_cell.1} parent=5 // pred_check
      _
    $region34: #{conv_lstm_cell.1} parent=5 // pred_check_branch
      %204 = sbr.rel (%p201) target = $region36
    $region35: #{conv_lstm_cell.1} parent=5 // pred_region
      %s205 = ssub.s32 %s12, 1
      %p206 = scmp.lt.s32.totalorder %s17, 1
      %s207 = scalar_select %p206, %s17, 1
      %s208 = smul.addr %s207, 20
      %s209 = smul.addr %s208, 8
      %s210 = scalar_lea.vmem %s0, %s209
      %p211 = pneg %p38
      %p212 = pneg %p35
      %p213 = pneg %p59
      %p214 = pneg %p56
      %p215 = pneg %p80
      %p216 = pneg %p77
      %p217 = scmp.lt.s32.totalorder %s17, 1
      %s218 = scalar_select %p217, %s17, 1
      %s219 = smul.addr %s218, 12
      %s220 = smul.addr %s219, 8
      %s221 = scalar_lea.vmem %s3, %s220
      %p222 = pneg %p106
      %p223 = pneg %p103
      %p224 = pneg %p132
      %p225 = pneg %p129
      %p226 = scmp.lt.s32.totalorder %s17, 1
      %s227 = scalar_select %p226, %s17, 1
      %s228 = smul.addr %s227, 12
      %s229 = smul.addr %s228, 8
      %s230 = scalar_lea.vmem %s4, %s229
      %p231 = pneg %p158
      %p232 = pneg %p155
      %p233 = scmp.lt.s32.totalorder %s17, 1
      %s234 = scalar_select %p233, %s17, 1
      %s235 = smul.addr %s234, 12
      %s236 = smul.addr %s235, 8
      %s237 = scalar_lea.vmem %s5, %s236
      %p238 = scmp.lt.s32.totalorder %s17, 1
      %s239 = scalar_select %p238, %s17, 1
      %s240 = smul.addr %s239, 20
      %s241 = smul.addr %s240, 8
      %s242 = scalar_lea.vmem %s0, %s241
      %p243 = scmp.lt.s32.totalorder %s17, 1
      %s244 = scalar_select %p243, %s17, 1
      %s245 = smul.addr %s244, 12
      %s246 = smul.addr %s245, 8
      %s247 = scalar_lea.vmem %s3, %s246
      %p248 = scmp.lt.s32.totalorder %s17, 1
      %s249 = scalar_select %p248, %s17, 1
      %s250 = smul.addr %s249, 12
      %s251 = smul.addr %s250, 8
      %s252 = scalar_lea.vmem %s4, %s251
      %p253 = scmp.lt.s32.totalorder %s17, 1
      %s254 = scalar_select %p253, %s17, 1
      %s255 = smul.addr %s254, 12
      %s256 = smul.addr %s255, 8
      %s257 = scalar_lea.vmem %s5, %s256
      %v258 = vld [vmem:[%s242] sm:$0xff]
      %v259 = vld [vmem:[%s242 + $0x8] sm:$0xff]
      %v260 = vld [vmem:[%s242 + $0x10] sm:$0xff]
      %v261 = vld [vmem:[%s242 + $0x20] sm:$0xff]
      %v262 = vld [vmem:[%s242 + $0x28] sm:$0xff]
      %v263 = vld [vmem:[%s242 + $0x30] sm:$0xff]
      %v264 = vld [vmem:[%s242 + $0x40] sm:$0xff]
      %v265 = vld [vmem:[%s242 + $0x48] sm:$0xff]
      %v266 = vld [vmem:[%s242 + $0x50] sm:$0xff]
      %v267 = vld [vmem:[%s242 + $0x60] sm:$0xff]
      %v268 = vld [vmem:[%s242 + $0x68] sm:$0xff]
      %v269 = vld [vmem:[%s242 + $0x70] sm:$0xff]
      %v270 = vld [vmem:[%s242 + $0x80] sm:$0xf]
      %v271 = vld [vmem:[%s242 + $0x88] sm:$0xf]
      %v272 = vld [vmem:[%s242 + $0x90] sm:$0xf]
      %v273 = vld [vmem:[%s1] sm:$0xff]
      %v274 = vld [vmem:[%s1 + $0x8] sm:$0xff]
      %v275 = vld [vmem:[%s1 + $0x10] sm:$0xff]
      %v276 = vld [vmem:[%s1 + $0x18] sm:$0xff]
      %v277 = vld [vmem:[%s1 + $0x20] sm:$0xff]
      %v278 = vld [vmem:[%s1 + $0x28] sm:$0xff]
      %v279 = vld [vmem:[%s1 + $0x30] sm:$0xff]
      %v280 = vld [vmem:[%s1 + $0x38] sm:$0xff]
      %v281 = vld [vmem:[%s1 + $0x40] sm:$0xff]
      %v282 = vld [vmem:[%s1 + $0x48] sm:$0xff]
      %v283 = vld [vmem:[%s1 + $0x50] sm:$0xff]
      %v284 = vld [vmem:[%s1 + $0x58] sm:$0xff]
      %v285 = vld [vmem:[%s1 + $0x60] sm:$0xff]
      %v286 = vld [vmem:[%s1 + $0x68] sm:$0xff]
      %v287 = vld [vmem:[%s1 + $0x70] sm:$0xff]
      %v288 = vld [vmem:[%s1 + $0x78] sm:$0xff]
      %v289 = vld [vmem:[%s242 + $0x18] sm:$0xff]
      %v290 = vld [vmem:[%s242 + $0x38] sm:$0xff]
      %v291 = vld [vmem:[%s242 + $0x58] sm:$0xff]
      %v292 = vld [vmem:[%s242 + $0x78] sm:$0xff]
      %v293 = vld [vmem:[%s242 + $0x98] sm:$0xf]
      %s294 = scalar_lea.vmem %s1, 128
      %v295 = vld [vmem:[%s294] sm:$0xff]
      %v296 = vld [vmem:[%s294 + $0x8] sm:$0xff]
      %v297 = vld [vmem:[%s294 + $0x10] sm:$0xff]
      %v298 = vld [vmem:[%s294 + $0x18] sm:$0xff]
      %v299 = vld [vmem:[%s294 + $0x20] sm:$0xff]
      %v300 = vld [vmem:[%s294 + $0x28] sm:$0xff]
      %v301 = vld [vmem:[%s294 + $0x30] sm:$0xff]
      %v302 = vld [vmem:[%s294 + $0x38] sm:$0xff]
      %v303 = vld [vmem:[%s294 + $0x40] sm:$0xff]
      %v304 = vld [vmem:[%s294 + $0x48] sm:$0xff]
      %v305 = vld [vmem:[%s294 + $0x50] sm:$0xff]
      %v306 = vld [vmem:[%s294 + $0x58] sm:$0xff]
      %v307 = vld [vmem:[%s294 + $0x60] sm:$0xff]
      %v308 = vld [vmem:[%s294 + $0x68] sm:$0xff]
      %v309 = vld [vmem:[%s294 + $0x70] sm:$0xff]
      %v310 = vld [vmem:[%s294 + $0x78] sm:$0xff]
      %331 = vrot.lane.b32.xlu0 %v258, 127
      %v332 = vpop.permute.xlu0 %331
      %333 = vrot.lane.b32.xlu0 %v259, 127
      %v334 = vpop.permute.xlu0 %333
      %335 = vrot.lane.b32.xlu0 %v260, 127
      %v336 = vpop.permute.xlu0 %335
      %337 = vrot.lane.b32.xlu0 %v289, 127
      %v338 = vpop.permute.xlu0 %337
      %339 = vrot.lane.b32.xlu0 %v261, 127
      %v340 = vpop.permute.xlu0 %339
      %341 = vrot.lane.b32.xlu0 %v262, 127
      %v342 = vpop.permute.xlu0 %341
      %343 = vrot.lane.b32.xlu0 %v263, 127
      %v344 = vpop.permute.xlu0 %343
      %345 = vrot.lane.b32.xlu0 %v290, 127
      %v346 = vpop.permute.xlu0 %345
      %347 = vrot.lane.b32.xlu0 %v264, 127
      %v348 = vpop.permute.xlu0 %347
      %349 = vrot.lane.b32.xlu0 %v265, 127
      %v350 = vpop.permute.xlu0 %349
      %351 = vrot.lane.b32.xlu0 %v266, 127
      %v352 = vpop.permute.xlu0 %351
      %353 = vrot.lane.b32.xlu0 %v291, 127
      %v354 = vpop.permute.xlu0 %353
      %355 = vrot.lane.b32.xlu0 %v267, 127
      %v356 = vpop.permute.xlu0 %355
      %357 = vrot.lane.b32.xlu0 %v268, 127
      %v358 = vpop.permute.xlu0 %357
      %359 = vrot.lane.b32.xlu0 %v269, 127
      %v360 = vpop.permute.xlu0 %359
      %361 = vrot.lane.b32.xlu0 %v292, 127
      %v362 = vpop.permute.xlu0 %361
      %363 = vrot.lane.b32.xlu0 %v270, 127
      %v364 = vpop.permute.xlu0 %363
      %365 = vrot.lane.b32.xlu0 %v271, 127
      %v366 = vpop.permute.xlu0 %365
      %367 = vrot.lane.b32.xlu0 %v272, 127
      %v368 = vpop.permute.xlu0 %367
      %369 = vrot.lane.b32.xlu0 %v293, 127
      %v370 = vpop.permute.xlu0 %369
      %vm371 = vcmask 1039360
      %v372 = vsel %vm371, %v332, %v334
      %v373 = vsel %vm371, %v334, %v336
      %v374 = vsel %vm371, %v336, %v338
      %v375 = vsel %vm371, %v340, %v342
      %v376 = vsel %vm371, %v342, %v344
      %v377 = vsel %vm371, %v344, %v346
      %v378 = vsel %vm371, %v348, %v350
      %v379 = vsel %vm371, %v350, %v352
      %v380 = vsel %vm371, %v352, %v354
      %v381 = vsel %vm371, %v356, %v358
      %v382 = vsel %vm371, %v358, %v360
      %v383 = vsel %vm371, %v360, %v362
      %v384 = vsel %vm371, %v364, %v366
      %v385 = vsel %vm371, %v366, %v368
      %v386 = vsel %vm371, %v368, %v370
      %vm399 = vcmask 293888
      %v401 = vsel %vm399, %v295, 0
      %v404 = vsel %vm399, %v296, 0
      %v407 = vsel %vm399, %v297, 0
      %v410 = vsel %vm399, %v298, 0
      %v413 = vsel %vm399, %v299, 0
      %v416 = vsel %vm399, %v300, 0
      %v419 = vsel %vm399, %v301, 0
      %v422 = vsel %vm399, %v302, 0
      %v425 = vsel %vm399, %v303, 0
      %v428 = vsel %vm399, %v304, 0
      %v431 = vsel %vm399, %v305, 0
      %v434 = vsel %vm399, %v306, 0
      %v437 = vsel %vm399, %v307, 0
      %v440 = vsel %vm399, %v308, 0
      %v443 = vsel %vm399, %v309, 0
      %v446 = vsel %vm399, %v310, 0
      %vm448 = vcmask 1043456
      %v449 = vsel %vm448, %v384, 0
      %v451 = vsel %vm448, %v385, 0
      %v453 = vsel %vm448, %v386, 0
      %455 = vmatprep.subr.mxu0 %v373
      %456 = vmatpush1.msra.mxu0 %v372
      %457 = vmatprep.subr.mxu0 %v376
      %458 = vmatpush1.msra.mxu0 %v375
      %459 = vmatprep.subr.mxu0 %v379
      %460 = vmatpush1.msra.mxu0 %v378
      %461 = vmatprep.subr.mxu0 %v382
      %462 = vmatpush1.msra.mxu0 %v381
      %463 = vmatprep.subr.mxu0 %v451
      %464 = vmatpush1.msra.mxu0 %v449
      %465 = vmatprep.subr.mxu0 0.0
      %466 = vmatpush1.msra.mxu0 0.0
      %467 = vmatprep.subr.mxu0 0.0
      %468 = vmatpush1.msra.mxu0 0.0
      %469 = vmatprep.subr.mxu0 0.0
      %470 = vmatpush1.msra.mxu0 0.0
      %471 = vmatprep.subr.mxu0 0.0
      %472 = vmatpush1.msra.mxu0 0.0
      %473 = vmatprep.subr.mxu0 0.0
      %474 = vmatpush1.msra.mxu0 0.0
      %475 = vmatprep.subr.mxu0 0.0
      %476 = vmatpush1.msra.mxu0 0.0
      %477 = vmatprep.subr.mxu0 0.0
      %478 = vmatpush1.msra.mxu0 0.0
      %479 = vmatprep.subr.mxu0 0.0
      %480 = vmatpush1.msra.mxu0 0.0
      %481 = vmatprep.subr.mxu0 0.0
      %482 = vmatpush1.msra.mxu0 0.0
      %483 = vmatprep.subr.mxu0 0.0
      %484 = vmatpush1.msra.mxu0 0.0
      %485 = vmatprep.subr.mxu0 0.0
      %486 = vmatpush1.msra.mxu0 0.0
      %487 = vmatprep.subr.mxu0 0.0
      %488 = vmatpush1.msra.mxu0 0.0
      %489 = vmatprep.subr.mxu0 0.0
      %490 = vmatpush1.msra.mxu0 0.0
      %491 = vmatprep.subr.mxu0 0.0
      %492 = vmatpush1.msra.mxu0 0.0
      %493 = vmatprep.subr.mxu0 0.0
      %494 = vmatpush1.msra.mxu0 0.0
      %495 = vmatprep.subr.mxu0 0.0
      %496 = vmatpush1.msra.mxu0 0.0
      %497 = vmatprep.subr.mxu0 0.0
      %498 = vmatpush1.msra.mxu0 0.0
      %499 = vmatprep.subr.mxu0 0.0
      %500 = vmatpush1.msra.mxu0 0.0
      %501 = vmatprep.subr.mxu0 0.0
      %502 = vmatpush1.msra.mxu0 0.0
      %503 = vmatprep.subr.mxu0 0.0
      %504 = vmatpush1.msra.mxu0 0.0
      %505 = vmatprep.subr.mxu0 0.0
      %506 = vmatpush1.msra.mxu0 0.0
      %507 = vmatprep.subr.mxu0 0.0
      %508 = vmatpush1.msra.mxu0 0.0
      %509 = vmatprep.subr.mxu0 0.0
      %510 = vmatpush1.msra.mxu0 0.0
      %511 = vmatprep.subr.mxu0 0.0
      %512 = vmatpush1.msra.mxu0 0.0
      %513 = vmatprep.subr.mxu0 0.0
      %514 = vmatpush1.msra.mxu0 0.0
      %515 = vmatprep.subr.mxu0 0.0
      %516 = vmatpush1.msra.mxu0 0.0
      %517 = vmatprep.subr.mxu0 0.0
      %518 = vmatpush1.msra.mxu0 0.0
      %519 = vmatprep.mubr.f32.mxu0 0.0
      %520 = vmatmul.mubr.f32.gmra.mrb[0].mxu0 %v401
      %v521 = vpop.f32.mrb[0].mxu0
      %v522 = vadd.f32 0.0, %v521
      %v523 = vpop.f32.mrb[0].mxu0
      %v524 = vadd.f32 0.0, %v523
      %525 = vmatprep.mubr.f32.mxu0 0.0
      %526 = vmatmul.mubr.f32.gmra.mrb[0].mxu0 %v404
      %v527 = vpop.f32.mrb[0].mxu0
      %v528 = vadd.f32 0.0, %v527
      %v529 = vpop.f32.mrb[0].mxu0
      %v530 = vadd.f32 0.0, %v529
      %531 = vmatprep.mubr.f32.mxu0 0.0
      %532 = vmatmul.mubr.f32.gmra.mrb[0].mxu0 %v407
      %v533 = vpop.f32.mrb[0].mxu0
      %v534 = vadd.f32 0.0, %v533
      %v535 = vpop.f32.mrb[0].mxu0
      %v536 = vadd.f32 0.0, %v535
      %537 = vmatprep.mubr.f32.mxu0 0.0
      %538 = vmatmul.mubr.f32.gmra.mrb[0].mxu0 %v410
      %v539 = vpop.f32.mrb[0].mxu0
      %v540 = vadd.f32 0.0, %v539
      %v541 = vpop.f32.mrb[0].mxu0
      %v542 = vadd.f32 0.0, %v541
      %543 = vmatprep.mubr.f32.mxu0 0.0
      %544 = vmatmul.mubr.f32.gmra.mrb[0].mxu0 %v413
      %v545 = vpop.f32.mrb[0].mxu0
      %v546 = vadd.f32 0.0, %v545
      %v547 = vpop.f32.mrb[0].mxu0
      %v548 = vadd.f32 0.0, %v547
      %549 = vmatprep.mubr.f32.mxu0 0.0
      %550 = vmatmul.mubr.f32.gmra.mrb[0].mxu0 %v416
      %v551 = vpop.f32.mrb[0].mxu0
      %v552 = vadd.f32 0.0, %v551
      %v553 = vpop.f32.mrb[0].mxu0
      %v554 = vadd.f32 0.0, %v553
      %555 = vmatprep.mubr.f32.mxu0 0.0
      %556 = vmatmul.mubr.f32.gmra.mrb[0].mxu0 %v419
      %v557 = vpop.f32.mrb[0].mxu0
      %v558 = vadd.f32 0.0, %v557
      %v559 = vpop.f32.mrb[0].mxu0
      %v560 = vadd.f32 0.0, %v559
      %561 = vmatprep.mubr.f32.mxu0 0.0
      %562 = vmatmul.mubr.f32.gmra.mrb[0].mxu0 %v422
      %v563 = vpop.f32.mrb[0].mxu0
      %v564 = vadd.f32 0.0, %v563
      %v565 = vpop.f32.mrb[0].mxu0
      %v566 = vadd.f32 0.0, %v565
      %567 = vmatprep.mubr.f32.mxu0 0.0
      %568 = vmatmul.mubr.f32.gmra.mrb[0].mxu0 %v425
      %v569 = vpop.f32.mrb[0].mxu0
      %v570 = vadd.f32 0.0, %v569
      %v571 = vpop.f32.mrb[0].mxu0
      %v572 = vadd.f32 0.0, %v571
      %573 = vmatprep.mubr.f32.mxu0 0.0
      %574 = vmatmul.mubr.f32.gmra.mrb[0].mxu0 %v428
      %v575 = vpop.f32.mrb[0].mxu0
      %v576 = vadd.f32 0.0, %v575
      %v577 = vpop.f32.mrb[0].mxu0
      %v578 = vadd.f32 0.0, %v577
      %579 = vmatprep.mubr.f32.mxu0 0.0
      %580 = vmatmul.mubr.f32.gmra.mrb[0].mxu0 %v431
      %v581 = vpop.f32.mrb[0].mxu0
      %v582 = vadd.f32 0.0, %v581
      %v583 = vpop.f32.mrb[0].mxu0
      %v584 = vadd.f32 0.0, %v583
      %585 = vmatprep.mubr.f32.mxu0 0.0
      %586 = vmatmul.mubr.f32.gmra.mrb[0].mxu0 %v434
      %v587 = vpop.f32.mrb[0].mxu0
      %v588 = vadd.f32 0.0, %v587
      %v589 = vpop.f32.mrb[0].mxu0
      %v590 = vadd.f32 0.0, %v589
      %591 = vmatprep.mubr.f32.mxu0 0.0
      %592 = vmatmul.mubr.f32.gmra.mrb[0].mxu0 %v437
      %v593 = vpop.f32.mrb[0].mxu0
      %v594 = vadd.f32 0.0, %v593
      %v595 = vpop.f32.mrb[0].mxu0
      %v596 = vadd.f32 0.0, %v595
      %597 = vmatprep.mubr.f32.mxu0 0.0
      %598 = vmatmul.mubr.f32.gmra.mrb[0].mxu0 %v440
      %v599 = vpop.f32.mrb[0].mxu0
      %v600 = vadd.f32 0.0, %v599
      %v601 = vpop.f32.mrb[0].mxu0
      %v602 = vadd.f32 0.0, %v601
      %603 = vmatprep.mubr.f32.mxu0 0.0
      %604 = vmatmul.mubr.f32.gmra.mrb[0].mxu0 %v443
      %v605 = vpop.f32.mrb[0].mxu0
      %v606 = vadd.f32 0.0, %v605
      %v607 = vpop.f32.mrb[0].mxu0
      %v608 = vadd.f32 0.0, %v607
      %609 = vmatprep.mubr.f32.mxu0 0.0
      %610 = vmatmul.mubr.f32.gmra.mrb[0].mxu0 %v446
      %v611 = vpop.f32.mrb[0].mxu0
      %v612 = vadd.f32 0.0, %v611
      %v613 = vpop.f32.mrb[0].mxu0
      %v614 = vadd.f32 0.0, %v613
      %615 = vdwg.mxu0
      %616 = vmatprep.subr.mxu0 0.0
      %617 = vmatpush1.msra.mxu0 %v374
      %618 = vmatprep.subr.mxu0 0.0
      %619 = vmatpush1.msra.mxu0 %v377
      %620 = vmatprep.subr.mxu0 0.0
      %621 = vmatpush1.msra.mxu0 %v380
      %622 = vmatprep.subr.mxu0 0.0
      %623 = vmatpush1.msra.mxu0 %v383
      %624 = vmatprep.subr.mxu0 0.0
      %625 = vmatpush1.msra.mxu0 %v453
      %626 = vmatprep.subr.mxu0 0.0
      %627 = vmatpush1.msra.mxu0 0.0
      %628 = vmatprep.subr.mxu0 0.0
      %629 = vmatpush1.msra.mxu0 0.0
      %630 = vmatprep.subr.mxu0 0.0
      %631 = vmatpush1.msra.mxu0 0.0
      %632 = vmatprep.subr.mxu0 0.0
      %633 = vmatpush1.msra.mxu0 0.0
      %634 = vmatprep.subr.mxu0 0.0
      %635 = vmatpush1.msra.mxu0 0.0
      %636 = vmatprep.subr.mxu0 0.0
      %637 = vmatpush1.msra.mxu0 0.0
      %638 = vmatprep.subr.mxu0 0.0
      %639 = vmatpush1.msra.mxu0 0.0
      %640 = vmatprep.subr.mxu0 0.0
      %641 = vmatpush1.msra.mxu0 0.0
      %642 = vmatprep.subr.mxu0 0.0
      %643 = vmatpush1.msra.mxu0 0.0
      %644 = vmatprep.subr.mxu0 0.0
      %645 = vmatpush1.msra.mxu0 0.0
      %646 = vmatprep.subr.mxu0 0.0
      %647 = vmatpush1.msra.mxu0 0.0
      %648 = vmatprep.subr.mxu0 0.0
      %649 = vmatpush1.msra.mxu0 0.0
      %650 = vmatprep.subr.mxu0 0.0
      %651 = vmatpush1.msra.mxu0 0.0
      %652 = vmatprep.subr.mxu0 0.0
      %653 = vmatpush1.msra.mxu0 0.0
      %654 = vmatprep.subr.mxu0 0.0
      %655 = vmatpush1.msra.mxu0 0.0
      %656 = vmatprep.subr.mxu0 0.0
      %657 = vmatpush1.msra.mxu0 0.0
      %658 = vmatprep.subr.mxu0 0.0
      %659 = vmatpush1.msra.mxu0 0.0
      %660 = vmatprep.subr.mxu0 0.0
      %661 = vmatpush1.msra.mxu0 0.0
      %662 = vmatprep.subr.mxu0 0.0
      %663 = vmatpush1.msra.mxu0 0.0
      %664 = vmatprep.subr.mxu0 0.0
      %665 = vmatpush1.msra.mxu0 0.0
      %666 = vmatprep.subr.mxu0 0.0
      %667 = vmatpush1.msra.mxu0 0.0
      %668 = vmatprep.subr.mxu0 0.0
      %669 = vmatpush1.msra.mxu0 0.0
      %670 = vmatprep.subr.mxu0 0.0
      %671 = vmatpush1.msra.mxu0 0.0
      %672 = vmatprep.subr.mxu0 0.0
      %673 = vmatpush1.msra.mxu0 0.0
      %674 = vmatprep.subr.mxu0 0.0
      %675 = vmatpush1.msra.mxu0 0.0
      %676 = vmatprep.subr.mxu0 0.0
      %677 = vmatpush1.msra.mxu0 0.0
      %678 = vmatprep.subr.mxu0 0.0
      %679 = vmatpush1.msra.mxu0 0.0
      %680 = vmatprep.mubr.f32.mxu0 0.0
      %681 = vmatmul.mubr.f32.gmra.mrb[0].mxu0 %v401
      %v682 = vpop.f32.mrb[0].mxu0
      %v683 = vadd.f32 0.0, %v682
      %v684 = vpop.f32.mrb[0].mxu0
      %685 = vmatprep.mubr.f32.mxu0 0.0
      %686 = vmatmul.mubr.f32.gmra.mrb[0].mxu0 %v404
      %v687 = vpop.f32.mrb[0].mxu0
      %v688 = vadd.f32 0.0, %v687
      %v689 = vpop.f32.mrb[0].mxu0
      %690 = vmatprep.mubr.f32.mxu0 0.0
      %691 = vmatmul.mubr.f32.gmra.mrb[0].mxu0 %v407
      %v692 = vpop.f32.mrb[0].mxu0
      %v693 = vadd.f32 0.0, %v692
      %v694 = vpop.f32.mrb[0].mxu0
      %695 = vmatprep.mubr.f32.mxu0 0.0
      %696 = vmatmul.mubr.f32.gmra.mrb[0].mxu0 %v410
      %v697 = vpop.f32.mrb[0].mxu0
      %v698 = vadd.f32 0.0, %v697
      %v699 = vpop.f32.mrb[0].mxu0
      %700 = vmatprep.mubr.f32.mxu0 0.0
      %701 = vmatmul.mubr.f32.gmra.mrb[0].mxu0 %v413
      %v702 = vpop.f32.mrb[0].mxu0
      %v703 = vadd.f32 0.0, %v702
      %v704 = vpop.f32.mrb[0].mxu0
      %705 = vmatprep.mubr.f32.mxu0 0.0
      %706 = vmatmul.mubr.f32.gmra.mrb[0].mxu0 %v416
      %v707 = vpop.f32.mrb[0].mxu0
      %v708 = vadd.f32 0.0, %v707
      %v709 = vpop.f32.mrb[0].mxu0
      %710 = vmatprep.mubr.f32.mxu0 0.0
      %711 = vmatmul.mubr.f32.gmra.mrb[0].mxu0 %v419
      %v712 = vpop.f32.mrb[0].mxu0
      %v713 = vadd.f32 0.0, %v712
      %v714 = vpop.f32.mrb[0].mxu0
      %715 = vmatprep.mubr.f32.mxu0 0.0
      %716 = vmatmul.mubr.f32.gmra.mrb[0].mxu0 %v422
      %v717 = vpop.f32.mrb[0].mxu0
      %v718 = vadd.f32 0.0, %v717
      %v719 = vpop.f32.mrb[0].mxu0
      %720 = vmatprep.mubr.f32.mxu0 0.0
      %721 = vmatmul.mubr.f32.gmra.mrb[0].mxu0 %v425
      %v722 = vpop.f32.mrb[0].mxu0
      %v723 = vadd.f32 0.0, %v722
      %v724 = vpop.f32.mrb[0].mxu0
      %725 = vmatprep.mubr.f32.mxu0 0.0
      %726 = vmatmul.mubr.f32.gmra.mrb[0].mxu0 %v428
      %v727 = vpop.f32.mrb[0].mxu0
      %v728 = vadd.f32 0.0, %v727
      %v729 = vpop.f32.mrb[0].mxu0
      %730 = vmatprep.mubr.f32.mxu0 0.0
      %731 = vmatmul.mubr.f32.gmra.mrb[0].mxu0 %v431
      %v732 = vpop.f32.mrb[0].mxu0
      %v733 = vadd.f32 0.0, %v732
      %v734 = vpop.f32.mrb[0].mxu0
      %735 = vmatprep.mubr.f32.mxu0 0.0
      %736 = vmatmul.mubr.f32.gmra.mrb[0].mxu0 %v434
      %v737 = vpop.f32.mrb[0].mxu0
      %v738 = vadd.f32 0.0, %v737
      %v739 = vpop.f32.mrb[0].mxu0
      %740 = vmatprep.mubr.f32.mxu0 0.0
      %741 = vmatmul.mubr.f32.gmra.mrb[0].mxu0 %v437
      %v742 = vpop.f32.mrb[0].mxu0
      %v743 = vadd.f32 0.0, %v742
      %v744 = vpop.f32.mrb[0].mxu0
      %745 = vmatprep.mubr.f32.mxu0 0.0
      %746 = vmatmul.mubr.f32.gmra.mrb[0].mxu0 %v440
      %v747 = vpop.f32.mrb[0].mxu0
      %v748 = vadd.f32 0.0, %v747
      %v749 = vpop.f32.mrb[0].mxu0
      %750 = vmatprep.mubr.f32.mxu0 0.0
      %751 = vmatmul.mubr.f32.gmra.mrb[0].mxu0 %v443
      %v752 = vpop.f32.mrb[0].mxu0
      %v753 = vadd.f32 0.0, %v752
      %v754 = vpop.f32.mrb[0].mxu0
      %755 = vmatprep.mubr.f32.mxu0 0.0
      %756 = vmatmul.mubr.f32.gmra.mrb[0].mxu0 %v446
      %v757 = vpop.f32.mrb[0].mxu0
      %v758 = vadd.f32 0.0, %v757
      %v759 = vpop.f32.mrb[0].mxu0
      %760 = vdwg.mxu0
      %v762 = vsel %vm399, %v273, 0
      %v765 = vsel %vm399, %v274, 0
      %v768 = vsel %vm399, %v275, 0
      %v771 = vsel %vm399, %v276, 0
      %v774 = vsel %vm399, %v277, 0
      %v777 = vsel %vm399, %v278, 0
      %v780 = vsel %vm399, %v279, 0
      %v783 = vsel %vm399, %v280, 0
      %v786 = vsel %vm399, %v281, 0
      %v789 = vsel %vm399, %v282, 0
      %v792 = vsel %vm399, %v283, 0
      %v795 = vsel %vm399, %v284, 0
      %v798 = vsel %vm399, %v285, 0
      %v801 = vsel %vm399, %v286, 0
      %v804 = vsel %vm399, %v287, 0
      %v807 = vsel %vm399, %v288, 0
      %v809 = vsel %vm448, %v270, 0
      %v811 = vsel %vm448, %v271, 0
      %v813 = vsel %vm448, %v272, 0
      %815 = vmatprep.subr.mxu0 %v259
      %816 = vmatpush1.msra.mxu0 %v258
      %817 = vmatprep.subr.mxu0 %v262
      %818 = vmatpush1.msra.mxu0 %v261
      %819 = vmatprep.subr.mxu0 %v265
      %820 = vmatpush1.msra.mxu0 %v264
      %821 = vmatprep.subr.mxu0 %v268
      %822 = vmatpush1.msra.mxu0 %v267
      %823 = vmatprep.subr.mxu0 %v811
      %824 = vmatpush1.msra.mxu0 %v809
      %825 = vmatprep.subr.mxu0 0.0
      %826 = vmatpush1.msra.mxu0 0.0
      %827 = vmatprep.subr.mxu0 0.0
      %828 = vmatpush1.msra.mxu0 0.0
      %829 = vmatprep.subr.mxu0 0.0
      %830 = vmatpush1.msra.mxu0 0.0
      %831 = vmatprep.subr.mxu0 0.0
      %832 = vmatpush1.msra.mxu0 0.0
      %833 = vmatprep.subr.mxu0 0.0
      %834 = vmatpush1.msra.mxu0 0.0
      %835 = vmatprep.subr.mxu0 0.0
      %836 = vmatpush1.msra.mxu0 0.0
      %837 = vmatprep.subr.mxu0 0.0
      %838 = vmatpush1.msra.mxu0 0.0
      %839 = vmatprep.subr.mxu0 0.0
      %840 = vmatpush1.msra.mxu0 0.0
      %841 = vmatprep.subr.mxu0 0.0
      %842 = vmatpush1.msra.mxu0 0.0
      %843 = vmatprep.subr.mxu0 0.0
      %844 = vmatpush1.msra.mxu0 0.0
      %845 = vmatprep.subr.mxu0 0.0
      %846 = vmatpush1.msra.mxu0 0.0
      %847 = vmatprep.subr.mxu0 0.0
      %848 = vmatpush1.msra.mxu0 0.0
      %849 = vmatprep.subr.mxu0 0.0
      %850 = vmatpush1.msra.mxu0 0.0
      %851 = vmatprep.subr.mxu0 0.0
      %852 = vmatpush1.msra.mxu0 0.0
      %853 = vmatprep.subr.mxu0 0.0
      %854 = vmatpush1.msra.mxu0 0.0
      %855 = vmatprep.subr.mxu0 0.0
      %856 = vmatpush1.msra.mxu0 0.0
      %857 = vmatprep.subr.mxu0 0.0
      %858 = vmatpush1.msra.mxu0 0.0
      %859 = vmatprep.subr.mxu0 0.0
      %860 = vmatpush1.msra.mxu0 0.0
      %861 = vmatprep.subr.mxu0 0.0
      %862 = vmatpush1.msra.mxu0 0.0
      %863 = vmatprep.subr.mxu0 0.0
      %864 = vmatpush1.msra.mxu0 0.0
      %865 = vmatprep.subr.mxu0 0.0
      %866 = vmatpush1.msra.mxu0 0.0
      %867 = vmatprep.subr.mxu0 0.0
      %868 = vmatpush1.msra.mxu0 0.0
      %869 = vmatprep.subr.mxu0 0.0
      %870 = vmatpush1.msra.mxu0 0.0
      %871 = vmatprep.subr.mxu0 0.0
      %872 = vmatpush1.msra.mxu0 0.0
      %873 = vmatprep.subr.mxu0 0.0
      %874 = vmatpush1.msra.mxu0 0.0
      %875 = vmatprep.subr.mxu0 0.0
      %876 = vmatpush1.msra.mxu0 0.0
      %877 = vmatprep.subr.mxu0 0.0
      %878 = vmatpush1.msra.mxu0 0.0
      %879 = vmatprep.mubr.f32.mxu0 0.0
      %880 = vmatmul.mubr.f32.gmra.mrb[0].mxu0 %v762
      %v881 = vpop.f32.mrb[0].mxu0
      %v882 = vadd.f32 %v522, %v881
      %v883 = vpop.f32.mrb[0].mxu0
      %v884 = vadd.f32 %v524, %v883
      %885 = vmatprep.mubr.f32.mxu0 0.0
      %886 = vmatmul.mubr.f32.gmra.mrb[0].mxu0 %v765
      %v887 = vpop.f32.mrb[0].mxu0
      %v888 = vadd.f32 %v528, %v887
      %v889 = vpop.f32.mrb[0].mxu0
      %v890 = vadd.f32 %v530, %v889
      %891 = vmatprep.mubr.f32.mxu0 0.0
      %892 = vmatmul.mubr.f32.gmra.mrb[0].mxu0 %v768
      %v893 = vpop.f32.mrb[0].mxu0
      %v894 = vadd.f32 %v534, %v893
      %v895 = vpop.f32.mrb[0].mxu0
      %v896 = vadd.f32 %v536, %v895
      %897 = vmatprep.mubr.f32.mxu0 0.0
      %898 = vmatmul.mubr.f32.gmra.mrb[0].mxu0 %v771
      %v899 = vpop.f32.mrb[0].mxu0
      %v900 = vadd.f32 %v540, %v899
      %v901 = vpop.f32.mrb[0].mxu0
      %v902 = vadd.f32 %v542, %v901
      %903 = vmatprep.mubr.f32.mxu0 0.0
      %904 = vmatmul.mubr.f32.gmra.mrb[0].mxu0 %v774
      %v905 = vpop.f32.mrb[0].mxu0
      %v906 = vadd.f32 %v546, %v905
      %v907 = vpop.f32.mrb[0].mxu0
      %v908 = vadd.f32 %v548, %v907
      %909 = vmatprep.mubr.f32.mxu0 0.0
      %910 = vmatmul.mubr.f32.gmra.mrb[0].mxu0 %v777
      %v911 = vpop.f32.mrb[0].mxu0
      %v912 = vadd.f32 %v552, %v911
      %v913 = vpop.f32.mrb[0].mxu0
      %v914 = vadd.f32 %v554, %v913
      %915 = vmatprep.mubr.f32.mxu0 0.0
      %916 = vmatmul.mubr.f32.gmra.mrb[0].mxu0 %v780
      %v917 = vpop.f32.mrb[0].mxu0
      %v918 = vadd.f32 %v558, %v917
      %v919 = vpop.f32.mrb[0].mxu0
      %v920 = vadd.f32 %v560, %v919
      %921 = vmatprep.mubr.f32.mxu0 0.0
      %922 = vmatmul.mubr.f32.gmra.mrb[0].mxu0 %v783
      %v923 = vpop.f32.mrb[0].mxu0
      %v924 = vadd.f32 %v564, %v923
      %v925 = vpop.f32.mrb[0].mxu0
      %v926 = vadd.f32 %v566, %v925
      %927 = vmatprep.mubr.f32.mxu0 0.0
      %928 = vmatmul.mubr.f32.gmra.mrb[0].mxu0 %v786
      %v929 = vpop.f32.mrb[0].mxu0
      %v930 = vadd.f32 %v570, %v929
      %v931 = vpop.f32.mrb[0].mxu0
      %v932 = vadd.f32 %v572, %v931
      %933 = vmatprep.mubr.f32.mxu0 0.0
      %934 = vmatmul.mubr.f32.gmra.mrb[0].mxu0 %v789
      %v935 = vpop.f32.mrb[0].mxu0
      %v936 = vadd.f32 %v576, %v935
      %v937 = vpop.f32.mrb[0].mxu0
      %v938 = vadd.f32 %v578, %v937
      %939 = vmatprep.mubr.f32.mxu0 0.0
      %940 = vmatmul.mubr.f32.gmra.mrb[0].mxu0 %v792
      %v941 = vpop.f32.mrb[0].mxu0
      %v942 = vadd.f32 %v582, %v941
      %v943 = vpop.f32.mrb[0].mxu0
      %v944 = vadd.f32 %v584, %v943
      %945 = vmatprep.mubr.f32.mxu0 0.0
      %946 = vmatmul.mubr.f32.gmra.mrb[0].mxu0 %v795
      %v947 = vpop.f32.mrb[0].mxu0
      %v948 = vadd.f32 %v588, %v947
      %v949 = vpop.f32.mrb[0].mxu0
      %v950 = vadd.f32 %v590, %v949
      %951 = vmatprep.mubr.f32.mxu0 0.0
      %952 = vmatmul.mubr.f32.gmra.mrb[0].mxu0 %v798
      %v953 = vpop.f32.mrb[0].mxu0
      %v954 = vadd.f32 %v594, %v953
      %v955 = vpop.f32.mrb[0].mxu0
      %v956 = vadd.f32 %v596, %v955
      %957 = vmatprep.mubr.f32.mxu0 0.0
      %958 = vmatmul.mubr.f32.gmra.mrb[0].mxu0 %v801
      %v959 = vpop.f32.mrb[0].mxu0
      %v960 = vadd.f32 %v600, %v959
      %v961 = vpop.f32.mrb[0].mxu0
      %v962 = vadd.f32 %v602, %v961
      %963 = vmatprep.mubr.f32.mxu0 0.0
      %964 = vmatmul.mubr.f32.gmra.mrb[0].mxu0 %v804
      %v965 = vpop.f32.mrb[0].mxu0
      %v966 = vadd.f32 %v606, %v965
      %v967 = vpop.f32.mrb[0].mxu0
      %v968 = vadd.f32 %v608, %v967
      %969 = vmatprep.mubr.f32.mxu0 0.0
      %970 = vmatmul.mubr.f32.gmra.mrb[0].mxu0 %v807
      %v971 = vpop.f32.mrb[0].mxu0
      %v972 = vadd.f32 %v612, %v971
      %v973 = vpop.f32.mrb[0].mxu0
      %v974 = vadd.f32 %v614, %v973
      %975 = vdwg.mxu0
      %976 = vmatprep.subr.mxu0 0.0
      %977 = vmatpush1.msra.mxu0 %v260
      %978 = vmatprep.subr.mxu0 0.0
      %979 = vmatpush1.msra.mxu0 %v263
      %980 = vmatprep.subr.mxu0 0.0
      %981 = vmatpush1.msra.mxu0 %v266
      %982 = vmatprep.subr.mxu0 0.0
      %983 = vmatpush1.msra.mxu0 %v269
      %984 = vmatprep.subr.mxu0 0.0
      %985 = vmatpush1.msra.mxu0 %v813
      %986 = vmatprep.subr.mxu0 0.0
      %987 = vmatpush1.msra.mxu0 0.0
      %988 = vmatprep.subr.mxu0 0.0
      %989 = vmatpush1.msra.mxu0 0.0
      %990 = vmatprep.subr.mxu0 0.0
      %991 = vmatpush1.msra.mxu0 0.0
      %992 = vmatprep.subr.mxu0 0.0
      %993 = vmatpush1.msra.mxu0 0.0
      %994 = vmatprep.subr.mxu0 0.0
      %995 = vmatpush1.msra.mxu0 0.0
      %996 = vmatprep.subr.mxu0 0.0
      %997 = vmatpush1.msra.mxu0 0.0
      %998 = vmatprep.subr.mxu0 0.0
      %999 = vmatpush1.msra.mxu0 0.0
      %1000 = vmatprep.subr.mxu0 0.0
      %1001 = vmatpush1.msra.mxu0 0.0
      %1002 = vmatprep.subr.mxu0 0.0
      %1003 = vmatpush1.msra.mxu0 0.0
      %1004 = vmatprep.subr.mxu0 0.0
      %1005 = vmatpush1.msra.mxu0 0.0
      %1006 = vmatprep.subr.mxu0 0.0
      %1007 = vmatpush1.msra.mxu0 0.0
      %1008 = vmatprep.subr.mxu0 0.0
      %1009 = vmatpush1.msra.mxu0 0.0
      %1010 = vmatprep.subr.mxu0 0.0
      %1011 = vmatpush1.msra.mxu0 0.0
      %1012 = vmatprep.subr.mxu0 0.0
      %1013 = vmatpush1.msra.mxu0 0.0
      %1014 = vmatprep.subr.mxu0 0.0
      %1015 = vmatpush1.msra.mxu0 0.0
      %1016 = vmatprep.subr.mxu0 0.0
      %1017 = vmatpush1.msra.mxu0 0.0
      %1018 = vmatprep.subr.mxu0 0.0
      %1019 = vmatpush1.msra.mxu0 0.0
      %1020 = vmatprep.subr.mxu0 0.0
      %1021 = vmatpush1.msra.mxu0 0.0
      %1022 = vmatprep.subr.mxu0 0.0
      %1023 = vmatpush1.msra.mxu0 0.0
      %1024 = vmatprep.subr.mxu0 0.0
      %1025 = vmatpush1.msra.mxu0 0.0
      %1026 = vmatprep.subr.mxu0 0.0
      %1027 = vmatpush1.msra.mxu0 0.0
      %1028 = vmatprep.subr.mxu0 0.0
      %1029 = vmatpush1.msra.mxu0 0.0
      %1030 = vmatprep.subr.mxu0 0.0
      %1031 = vmatpush1.msra.mxu0 0.0
      %1032 = vmatprep.subr.mxu0 0.0
      %1033 = vmatpush1.msra.mxu0 0.0
      %1034 = vmatprep.subr.mxu0 0.0
      %1035 = vmatpush1.msra.mxu0 0.0
      %1036 = vmatprep.subr.mxu0 0.0
      %1037 = vmatpush1.msra.mxu0 0.0
      %1038 = vmatprep.subr.mxu0 0.0
      %1039 = vmatpush1.msra.mxu0 0.0
      %1040 = vmatprep.mubr.f32.mxu0 0.0
      %1041 = vmatmul.mubr.f32.gmra.mrb[0].mxu0 %v762
      %v1042 = vpop.f32.mrb[0].mxu0
      %v1043 = vadd.f32 %v683, %v1042
      %v1044 = vpop.f32.mrb[0].mxu0
      %1045 = vmatprep.mubr.f32.mxu0 0.0
      %1046 = vmatmul.mubr.f32.gmra.mrb[0].mxu0 %v765
      %v1047 = vpop.f32.mrb[0].mxu0
      %v1048 = vadd.f32 %v688, %v1047
      %v1049 = vpop.f32.mrb[0].mxu0
      %1050 = vmatprep.mubr.f32.mxu0 0.0
      %1051 = vmatmul.mubr.f32.gmra.mrb[0].mxu0 %v768
      %v1052 = vpop.f32.mrb[0].mxu0
      %v1053 = vadd.f32 %v693, %v1052
      %v1054 = vpop.f32.mrb[0].mxu0
      %1055 = vmatprep.mubr.f32.mxu0 0.0
      %1056 = vmatmul.mubr.f32.gmra.mrb[0].mxu0 %v771
      %v1057 = vpop.f32.mrb[0].mxu0
      %v1058 = vadd.f32 %v698, %v1057
      %v1059 = vpop.f32.mrb[0].mxu0
      %1060 = vmatprep.mubr.f32.mxu0 0.0
      %1061 = vmatmul.mubr.f32.gmra.mrb[0].mxu0 %v774
      %v1062 = vpop.f32.mrb[0].mxu0
      %v1063 = vadd.f32 %v703, %v1062
      %v1064 = vpop.f32.mrb[0].mxu0
      %1065 = vmatprep.mubr.f32.mxu0 0.0
      %1066 = vmatmul.mubr.f32.gmra.mrb[0].mxu0 %v777
      %v1067 = vpop.f32.mrb[0].mxu0
      %v1068 = vadd.f32 %v708, %v1067
      %v1069 = vpop.f32.mrb[0].mxu0
      %1070 = vmatprep.mubr.f32.mxu0 0.0
      %1071 = vmatmul.mubr.f32.gmra.mrb[0].mxu0 %v780
      %v1072 = vpop.f32.mrb[0].mxu0
      %v1073 = vadd.f32 %v713, %v1072
      %v1074 = vpop.f32.mrb[0].mxu0
      %1075 = vmatprep.mubr.f32.mxu0 0.0
      %1076 = vmatmul.mubr.f32.gmra.mrb[0].mxu0 %v783
      %v1077 = vpop.f32.mrb[0].mxu0
      %v1078 = vadd.f32 %v718, %v1077
      %v1079 = vpop.f32.mrb[0].mxu0
      %1080 = vmatprep.mubr.f32.mxu0 0.0
      %1081 = vmatmul.mubr.f32.gmra.mrb[0].mxu0 %v786
      %v1082 = vpop.f32.mrb[0].mxu0
      %v1083 = vadd.f32 %v723, %v1082
      %v1084 = vpop.f32.mrb[0].mxu0
      %1085 = vmatprep.mubr.f32.mxu0 0.0
      %1086 = vmatmul.mubr.f32.gmra.mrb[0].mxu0 %v789
      %v1087 = vpop.f32.mrb[0].mxu0
      %v1088 = vadd.f32 %v728, %v1087
      %v1089 = vpop.f32.mrb[0].mxu0
      %1090 = vmatprep.mubr.f32.mxu0 0.0
      %1091 = vmatmul.mubr.f32.gmra.mrb[0].mxu0 %v792
      %v1092 = vpop.f32.mrb[0].mxu0
      %v1093 = vadd.f32 %v733, %v1092
      %v1094 = vpop.f32.mrb[0].mxu0
      %1095 = vmatprep.mubr.f32.mxu0 0.0
      %1096 = vmatmul.mubr.f32.gmra.mrb[0].mxu0 %v795
      %v1097 = vpop.f32.mrb[0].mxu0
      %v1098 = vadd.f32 %v738, %v1097
      %v1099 = vpop.f32.mrb[0].mxu0
      %1100 = vmatprep.mubr.f32.mxu0 0.0
      %1101 = vmatmul.mubr.f32.gmra.mrb[0].mxu0 %v798
      %v1102 = vpop.f32.mrb[0].mxu0
      %v1103 = vadd.f32 %v743, %v1102
      %v1104 = vpop.f32.mrb[0].mxu0
      %1105 = vmatprep.mubr.f32.mxu0 0.0
      %1106 = vmatmul.mubr.f32.gmra.mrb[0].mxu0 %v801
      %v1107 = vpop.f32.mrb[0].mxu0
      %v1108 = vadd.f32 %v748, %v1107
      %v1109 = vpop.f32.mrb[0].mxu0
      %1110 = vmatprep.mubr.f32.mxu0 0.0
      %1111 = vmatmul.mubr.f32.gmra.mrb[0].mxu0 %v804
      %v1112 = vpop.f32.mrb[0].mxu0
      %v1113 = vadd.f32 %v753, %v1112
      %v1114 = vpop.f32.mrb[0].mxu0
      %1115 = vmatprep.mubr.f32.mxu0 0.0
      %1116 = vmatmul.mubr.f32.gmra.mrb[0].mxu0 %v807
      %v1117 = vpop.f32.mrb[0].mxu0
      %v1118 = vadd.f32 %v758, %v1117
      %v1119 = vpop.f32.mrb[0].mxu0
      %1120 = vdwg.mxu0
      %s1121 = scalar_lea.vmem %s1, 256
      %v1122 = vld [vmem:[%s1121] sm:$0xff]
      %v1123 = vld [vmem:[%s1121 + $0x8] sm:$0xff]
      %v1124 = vld [vmem:[%s1121 + $0x10] sm:$0xff]
      %v1125 = vld [vmem:[%s1121 + $0x18] sm:$0xff]
      %v1126 = vld [vmem:[%s1121 + $0x20] sm:$0xff]
      %v1127 = vld [vmem:[%s1121 + $0x28] sm:$0xff]
      %v1128 = vld [vmem:[%s1121 + $0x30] sm:$0xff]
      %v1129 = vld [vmem:[%s1121 + $0x38] sm:$0xff]
      %v1130 = vld [vmem:[%s1121 + $0x40] sm:$0xff]
      %v1131 = vld [vmem:[%s1121 + $0x48] sm:$0xff]
      %v1132 = vld [vmem:[%s1121 + $0x50] sm:$0xff]
      %v1133 = vld [vmem:[%s1121 + $0x58] sm:$0xff]
      %v1134 = vld [vmem:[%s1121 + $0x60] sm:$0xff]
      %v1135 = vld [vmem:[%s1121 + $0x68] sm:$0xff]
      %v1136 = vld [vmem:[%s1121 + $0x70] sm:$0xff]
      %v1137 = vld [vmem:[%s1121 + $0x78] sm:$0xff]
      %1138 = vrot.lane.b32.xlu0 %v258, 126
      %v1139 = vpop.permute.xlu0 %1138
      %1140 = vrot.lane.b32.xlu0 %v259, 126
      %v1141 = vpop.permute.xlu0 %1140
      %1142 = vrot.lane.b32.xlu0 %v260, 126
      %v1143 = vpop.permute.xlu0 %1142
      %1144 = vrot.lane.b32.xlu0 %v289, 126
      %v1145 = vpop.permute.xlu0 %1144
      %1146 = vrot.lane.b32.xlu0 %v261, 126
      %v1147 = vpop.permute.xlu0 %1146
      %1148 = vrot.lane.b32.xlu0 %v262, 126
      %v1149 = vpop.permute.xlu0 %1148
      %1150 = vrot.lane.b32.xlu0 %v263, 126
      %v1151 = vpop.permute.xlu0 %1150
      %1152 = vrot.lane.b32.xlu0 %v290, 126
      %v1153 = vpop.permute.xlu0 %1152
      %1154 = vrot.lane.b32.xlu0 %v264, 126
      %v1155 = vpop.permute.xlu0 %1154
      %1156 = vrot.lane.b32.xlu0 %v265, 126
      %v1157 = vpop.permute.xlu0 %1156
      %1158 = vrot.lane.b32.xlu0 %v266, 126
      %v1159 = vpop.permute.xlu0 %1158
      %1160 = vrot.lane.b32.xlu0 %v291, 126
      %v1161 = vpop.permute.xlu0 %1160
      %1162 = vrot.lane.b32.xlu0 %v267, 126
      %v1163 = vpop.permute.xlu0 %1162
      %1164 = vrot.lane.b32.xlu0 %v268, 126
      %v1165 = vpop.permute.xlu0 %1164
      %1166 = vrot.lane.b32.xlu0 %v269, 126
      %v1167 = vpop.permute.xlu0 %1166
      %1168 = vrot.lane.b32.xlu0 %v292, 126
      %v1169 = vpop.permute.xlu0 %1168
      %1170 = vrot.lane.b32.xlu0 %v270, 126
      %v1171 = vpop.permute.xlu0 %1170
      %1172 = vrot.lane.b32.xlu0 %v271, 126
      %v1173 = vpop.permute.xlu0 %1172
      %1174 = vrot.lane.b32.xlu0 %v272, 126
      %v1175 = vpop.permute.xlu0 %1174
      %1176 = vrot.lane.b32.xlu0 %v293, 126
      %v1177 = vpop.permute.xlu0 %1176
      %vm1178 = vcmask 1031168
      %v1179 = vsel %vm1178, %v1139, %v1141
      %v1180 = vsel %vm1178, %v1141, %v1143
      %v1181 = vsel %vm1178, %v1143, %v1145
      %v1182 = vsel %vm1178, %v1147, %v1149
      %v1183 = vsel %vm1178, %v1149, %v1151
      %v1184 = vsel %vm1178, %v1151, %v1153
      %v1185 = vsel %vm1178, %v1155, %v1157
      %v1186 = vsel %vm1178, %v1157, %v1159
      %v1187 = vsel %vm1178, %v1159, %v1161
      %v1188 = vsel %vm1178, %v1163, %v1165
      %v1189 = vsel %vm1178, %v1165, %v1167
      %v1190 = vsel %vm1178, %v1167, %v1169
      %v1191 = vsel %vm1178, %v1171, %v1173
      %v1192 = vsel %vm1178, %v1173, %v1175
      %v1193 = vsel %vm1178, %v1175, %v1177
      %v1207 = vsel %vm399, %v1122, 0
      %v1210 = vsel %vm399, %v1123, 0
      %v1213 = vsel %vm399, %v1124, 0
      %v1216 = vsel %vm399, %v1125, 0
      %v1219 = vsel %vm399, %v1126, 0
      %v1222 = vsel %vm399, %v1127, 0
      %v1225 = vsel %vm399, %v1128, 0
      %v1228 = vsel %vm399, %v1129, 0
      %v1231 = vsel %vm399, %v1130, 0
      %v1234 = vsel %vm399, %v1131, 0
      %v1237 = vsel %vm399, %v1132, 0
      %v1240 = vsel %vm399, %v1133, 0
      %v1243 = vsel %vm399, %v1134, 0
      %v1246 = vsel %vm399, %v1135, 0
      %v1249 = vsel %vm399, %v1136, 0
      %v1252 = vsel %vm399, %v1137, 0
      %v1254 = vsel %vm448, %v1191, 0
      %v1256 = vsel %vm448, %v1192, 0
      %v1258 = vsel %vm448, %v1193, 0
      %1260 = vmatprep.subr.mxu0 %v1180
      %1261 = vmatpush1.msra.mxu0 %v1179
      %1262 = vmatprep.subr.mxu0 %v1183
      %1263 = vmatpush1.msra.mxu0 %v1182
      %1264 = vmatprep.subr.mxu0 %v1186
      %1265 = vmatpush1.msra.mxu0 %v1185
      %1266 = vmatprep.subr.mxu0 %v1189
      %1267 = vmatpush1.msra.mxu0 %v1188
      %1268 = vmatprep.subr.mxu0 %v1256
      %1269 = vmatpush1.msra.mxu0 %v1254
      %1270 = vmatprep.subr.mxu0 0.0
      %1271 = vmatpush1.msra.mxu0 0.0
      %1272 = vmatprep.subr.mxu0 0.0
      %1273 = vmatpush1.msra.mxu0 0.0
      %1274 = vmatprep.subr.mxu0 0.0
      %1275 = vmatpush1.msra.mxu0 0.0
      %1276 = vmatprep.subr.mxu0 0.0
      %1277 = vmatpush1.msra.mxu0 0.0
      %1278 = vmatprep.subr.mxu0 0.0
      %1279 = vmatpush1.msra.mxu0 0.0
      %1280 = vmatprep.subr.mxu0 0.0
      %1281 = vmatpush1.msra.mxu0 0.0
      %1282 = vmatprep.subr.mxu0 0.0
      %1283 = vmatpush1.msra.mxu0 0.0
      %1284 = vmatprep.subr.mxu0 0.0
      %1285 = vmatpush1.msra.mxu0 0.0
      %1286 = vmatprep.subr.mxu0 0.0
      %1287 = vmatpush1.msra.mxu0 0.0
      %1288 = vmatprep.subr.mxu0 0.0
      %1289 = vmatpush1.msra.mxu0 0.0
      %1290 = vmatprep.subr.mxu0 0.0
      %1291 = vmatpush1.msra.mxu0 0.0
      %1292 = vmatprep.subr.mxu0 0.0
      %1293 = vmatpush1.msra.mxu0 0.0
      %1294 = vmatprep.subr.mxu0 0.0
      %1295 = vmatpush1.msra.mxu0 0.0
      %1296 = vmatprep.subr.mxu0 0.0
      %1297 = vmatpush1.msra.mxu0 0.0
      %1298 = vmatprep.subr.mxu0 0.0
      %1299 = vmatpush1.msra.mxu0 0.0
      %1300 = vmatprep.subr.mxu0 0.0
      %1301 = vmatpush1.msra.mxu0 0.0
      %1302 = vmatprep.subr.mxu0 0.0
      %1303 = vmatpush1.msra.mxu0 0.0
      %1304 = vmatprep.subr.mxu0 0.0
      %1305 = vmatpush1.msra.mxu0 0.0
      %1306 = vmatprep.subr.mxu0 0.0
      %1307 = vmatpush1.msra.mxu0 0.0
      %1308 = vmatprep.subr.mxu0 0.0
      %1309 = vmatpush1.msra.mxu0 0.0
      %1310 = vmatprep.subr.mxu0 0.0
      %1311 = vmatpush1.msra.mxu0 0.0
      %1312 = vmatprep.subr.mxu0 0.0
      %1313 = vmatpush1.msra.mxu0 0.0
      %1314 = vmatprep.subr.mxu0 0.0
      %1315 = vmatpush1.msra.mxu0 0.0
      %1316 = vmatprep.subr.mxu0 0.0
      %1317 = vmatpush1.msra.mxu0 0.0
      %1318 = vmatprep.subr.mxu0 0.0
      %1319 = vmatpush1.msra.mxu0 0.0
      %1320 = vmatprep.subr.mxu0 0.0
      %1321 = vmatpush1.msra.mxu0 0.0
      %1322 = vmatprep.subr.mxu0 0.0
      %1323 = vmatpush1.msra.mxu0 0.0
      %1324 = vmatprep.mubr.f32.mxu0 0.0
      %1325 = vmatmul.mubr.f32.gmra.mrb[0].mxu0 %v1207
      %v1326 = vpop.f32.mrb[0].mxu0
      %v1327 = vadd.f32 0.0, %v1326
      %v1328 = vpop.f32.mrb[0].mxu0
      %v1329 = vadd.f32 0.0, %v1328
      %1330 = vmatprep.mubr.f32.mxu0 0.0
      %1331 = vmatmul.mubr.f32.gmra.mrb[0].mxu0 %v1210
      %v1332 = vpop.f32.mrb[0].mxu0
      %v1333 = vadd.f32 0.0, %v1332
      %v1334 = vpop.f32.mrb[0].mxu0
      %v1335 = vadd.f32 0.0, %v1334
      %1336 = vmatprep.mubr.f32.mxu0 0.0
      %1337 = vmatmul.mubr.f32.gmra.mrb[0].mxu0 %v1213
      %v1338 = vpop.f32.mrb[0].mxu0
      %v1339 = vadd.f32 0.0, %v1338
      %v1340 = vpop.f32.mrb[0].mxu0
      %v1341 = vadd.f32 0.0, %v1340
      %1342 = vmatprep.mubr.f32.mxu0 0.0
      %1343 = vmatmul.mubr.f32.gmra.mrb[0].mxu0 %v1216
      %v1344 = vpop.f32.mrb[0].mxu0
      %v1345 = vadd.f32 0.0, %v1344
      %v1346 = vpop.f32.mrb[0].mxu0
      %v1347 = vadd.f32 0.0, %v1346
      %1348 = vmatprep.mubr.f32.mxu0 0.0
      %1349 = vmatmul.mubr.f32.gmra.mrb[0].mxu0 %v1219
      %v1350 = vpop.f32.mrb[0].mxu0
      %v1351 = vadd.f32 0.0, %v1350
      %v1352 = vpop.f32.mrb[0].mxu0
      %v1353 = vadd.f32 0.0, %v1352
      %1354 = vmatprep.mubr.f32.mxu0 0.0
      %1355 = vmatmul.mubr.f32.gmra.mrb[0].mxu0 %v1222
      %v1356 = vpop.f32.mrb[0].mxu0
      %v1357 = vadd.f32 0.0, %v1356
      %v1358 = vpop.f32.mrb[0].mxu0
      %v1359 = vadd.f32 0.0, %v1358
      %1360 = vmatprep.mubr.f32.mxu0 0.0
      %1361 = vmatmul.mubr.f32.gmra.mrb[0].mxu0 %v1225
      %v1362 = vpop.f32.mrb[0].mxu0
      %v1363 = vadd.f32 0.0, %v1362
      %v1364 = vpop.f32.mrb[0].mxu0
      %v1365 = vadd.f32 0.0, %v1364
      %1366 = vmatprep.mubr.f32.mxu0 0.0
      %1367 = vmatmul.mubr.f32.gmra.mrb[0].mxu0 %v1228
      %v1368 = vpop.f32.mrb[0].mxu0
      %v1369 = vadd.f32 0.0, %v1368
      %v1370 = vpop.f32.mrb[0].mxu0
      %v1371 = vadd.f32 0.0, %v1370
      %1372 = vmatprep.mubr.f32.mxu0 0.0
      %1373 = vmatmul.mubr.f32.gmra.mrb[0].mxu0 %v1231
      %v1374 = vpop.f32.mrb[0].mxu0
      %v1375 = vadd.f32 0.0, %v1374
      %v1376 = vpop.f32.mrb[0].mxu0
      %v1377 = vadd.f32 0.0, %v1376
      %1378 = vmatprep.mubr.f32.mxu0 0.0
      %1379 = vmatmul.mubr.f32.gmra.mrb[0].mxu0 %v1234
      %v1380 = vpop.f32.mrb[0].mxu0
      %v1381 = vadd.f32 0.0, %v1380
      %v1382 = vpop.f32.mrb[0].mxu0
      %v1383 = vadd.f32 0.0, %v1382
      %1384 = vmatprep.mubr.f32.mxu0 0.0
      %1385 = vmatmul.mubr.f32.gmra.mrb[0].mxu0 %v1237
      %v1386 = vpop.f32.mrb[0].mxu0
      %v1387 = vadd.f32 0.0, %v1386
      %v1388 = vpop.f32.mrb[0].mxu0
      %v1389 = vadd.f32 0.0, %v1388
      %1390 = vmatprep.mubr.f32.mxu0 0.0
      %1391 = vmatmul.mubr.f32.gmra.mrb[0].mxu0 %v1240
      %v1392 = vpop.f32.mrb[0].mxu0
      %v1393 = vadd.f32 0.0, %v1392
      %v1394 = vpop.f32.mrb[0].mxu0
      %v1395 = vadd.f32 0.0, %v1394
      %1396 = vmatprep.mubr.f32.mxu0 0.0
      %1397 = vmatmul.mubr.f32.gmra.mrb[0].mxu0 %v1243
      %v1398 = vpop.f32.mrb[0].mxu0
      %v1399 = vadd.f32 0.0, %v1398
      %v1400 = vpop.f32.mrb[0].mxu0
      %v1401 = vadd.f32 0.0, %v1400
      %1402 = vmatprep.mubr.f32.mxu0 0.0
      %1403 = vmatmul.mubr.f32.gmra.mrb[0].mxu0 %v1246
      %v1404 = vpop.f32.mrb[0].mxu0
      %v1405 = vadd.f32 0.0, %v1404
      %v1406 = vpop.f32.mrb[0].mxu0
      %v1407 = vadd.f32 0.0, %v1406
      %1408 = vmatprep.mubr.f32.mxu0 0.0
      %1409 = vmatmul.mubr.f32.gmra.mrb[0].mxu0 %v1249
      %v1410 = vpop.f32.mrb[0].mxu0
      %v1411 = vadd.f32 0.0, %v1410
      %v1412 = vpop.f32.mrb[0].mxu0
      %v1413 = vadd.f32 0.0, %v1412
      %1414 = vmatprep.mubr.f32.mxu0 0.0
      %1415 = vmatmul.mubr.f32.gmra.mrb[0].mxu0 %v1252
      %v1416 = vpop.f32.mrb[0].mxu0
      %v1417 = vadd.f32 0.0, %v1416
      %v1418 = vpop.f32.mrb[0].mxu0
      %v1419 = vadd.f32 0.0, %v1418
      %1420 = vdwg.mxu0
      %1421 = vmatprep.subr.mxu0 0.0
      %1422 = vmatpush1.msra.mxu0 %v1181
      %1423 = vmatprep.subr.mxu0 0.0
      %1424 = vmatpush1.msra.mxu0 %v1184
      %1425 = vmatprep.subr.mxu0 0.0
      %1426 = vmatpush1.msra.mxu0 %v1187
      %1427 = vmatprep.subr.mxu0 0.0
      %1428 = vmatpush1.msra.mxu0 %v1190
      %1429 = vmatprep.subr.mxu0 0.0
      %1430 = vmatpush1.msra.mxu0 %v1258
      %1431 = vmatprep.subr.mxu0 0.0
      %1432 = vmatpush1.msra.mxu0 0.0
      %1433 = vmatprep.subr.mxu0 0.0
      %1434 = vmatpush1.msra.mxu0 0.0
      %1435 = vmatprep.subr.mxu0 0.0
      %1436 = vmatpush1.msra.mxu0 0.0
      %1437 = vmatprep.subr.mxu0 0.0
      %1438 = vmatpush1.msra.mxu0 0.0
      %1439 = vmatprep.subr.mxu0 0.0
      %1440 = vmatpush1.msra.mxu0 0.0
      %1441 = vmatprep.subr.mxu0 0.0
      %1442 = vmatpush1.msra.mxu0 0.0
      %1443 = vmatprep.subr.mxu0 0.0
      %1444 = vmatpush1.msra.mxu0 0.0
      %1445 = vmatprep.subr.mxu0 0.0
      %1446 = vmatpush1.msra.mxu0 0.0
      %1447 = vmatprep.subr.mxu0 0.0
      %1448 = vmatpush1.msra.mxu0 0.0
      %1449 = vmatprep.subr.mxu0 0.0
      %1450 = vmatpush1.msra.mxu0 0.0
      %1451 = vmatprep.subr.mxu0 0.0
      %1452 = vmatpush1.msra.mxu0 0.0
      %1453 = vmatprep.subr.mxu0 0.0
      %1454 = vmatpush1.msra.mxu0 0.0
      %1455 = vmatprep.subr.mxu0 0.0
      %1456 = vmatpush1.msra.mxu0 0.0
      %1457 = vmatprep.subr.mxu0 0.0
      %1458 = vmatpush1.msra.mxu0 0.0
      %1459 = vmatprep.subr.mxu0 0.0
      %1460 = vmatpush1.msra.mxu0 0.0
      %1461 = vmatprep.subr.mxu0 0.0
      %1462 = vmatpush1.msra.mxu0 0.0
      %1463 = vmatprep.subr.mxu0 0.0
      %1464 = vmatpush1.msra.mxu0 0.0
      %1465 = vmatprep.subr.mxu0 0.0
      %1466 = vmatpush1.msra.mxu0 0.0
      %1467 = vmatprep.subr.mxu0 0.0
      %1468 = vmatpush1.msra.mxu0 0.0
      %1469 = vmatprep.subr.mxu0 0.0
      %1470 = vmatpush1.msra.mxu0 0.0
      %1471 = vmatprep.subr.mxu0 0.0
      %1472 = vmatpush1.msra.mxu0 0.0
      %1473 = vmatprep.subr.mxu0 0.0
      %1474 = vmatpush1.msra.mxu0 0.0
      %1475 = vmatprep.subr.mxu0 0.0
      %1476 = vmatpush1.msra.mxu0 0.0
      %1477 = vmatprep.subr.mxu0 0.0
      %1478 = vmatpush1.msra.mxu0 0.0
      %1479 = vmatprep.subr.mxu0 0.0
      %1480 = vmatpush1.msra.mxu0 0.0
      %1481 = vmatprep.subr.mxu0 0.0
      %1482 = vmatpush1.msra.mxu0 0.0
      %1483 = vmatprep.subr.mxu0 0.0
      %1484 = vmatpush1.msra.mxu0 0.0
      %1485 = vmatprep.mubr.f32.mxu0 0.0
      %1486 = vmatmul.mubr.f32.gmra.mrb[0].mxu0 %v1207
      %v1487 = vpop.f32.mrb[0].mxu0
      %v1488 = vadd.f32 0.0, %v1487
      %v1489 = vpop.f32.mrb[0].mxu0
      %1490 = vmatprep.mubr.f32.mxu0 0.0
      %1491 = vmatmul.mubr.f32.gmra.mrb[0].mxu0 %v1210
      %v1492 = vpop.f32.mrb[0].mxu0
      %v1493 = vadd.f32 0.0, %v1492
      %v1494 = vpop.f32.mrb[0].mxu0
      %1495 = vmatprep.mubr.f32.mxu0 0.0
      %1496 = vmatmul.mubr.f32.gmra.mrb[0].mxu0 %v1213
      %v1497 = vpop.f32.mrb[0].mxu0
      %v1498 = vadd.f32 0.0, %v1497
      %v1499 = vpop.f32.mrb[0].mxu0
      %1500 = vmatprep.mubr.f32.mxu0 0.0
      %1501 = vmatmul.mubr.f32.gmra.mrb[0].mxu0 %v1216
      %v1502 = vpop.f32.mrb[0].mxu0
      %v1503 = vadd.f32 0.0, %v1502
      %v1504 = vpop.f32.mrb[0].mxu0
      %1505 = vmatprep.mubr.f32.mxu0 0.0
      %1506 = vmatmul.mubr.f32.gmra.mrb[0].mxu0 %v1219
      %v1507 = vpop.f32.mrb[0].mxu0
      %v1508 = vadd.f32 0.0, %v1507
      %v1509 = vpop.f32.mrb[0].mxu0
      %1510 = vmatprep.mubr.f32.mxu0 0.0
      %1511 = vmatmul.mubr.f32.gmra.mrb[0].mxu0 %v1222
      %v1512 = vpop.f32.mrb[0].mxu0
      %v1513 = vadd.f32 0.0, %v1512
      %v1514 = vpop.f32.mrb[0].mxu0
      %1515 = vmatprep.mubr.f32.mxu0 0.0
      %1516 = vmatmul.mubr.f32.gmra.mrb[0].mxu0 %v1225
      %v1517 = vpop.f32.mrb[0].mxu0
      %v1518 = vadd.f32 0.0, %v1517
      %v1519 = vpop.f32.mrb[0].mxu0
      %1520 = vmatprep.mubr.f32.mxu0 0.0
      %1521 = vmatmul.mubr.f32.gmra.mrb[0].mxu0 %v1228
      %v1522 = vpop.f32.mrb[0].mxu0
      %v1523 = vadd.f32 0.0, %v1522
      %v1524 = vpop.f32.mrb[0].mxu0
      %1525 = vmatprep.mubr.f32.mxu0 0.0
      %1526 = vmatmul.mubr.f32.gmra.mrb[0].mxu0 %v1231
      %v1527 = vpop.f32.mrb[0].mxu0
      %v1528 = vadd.f32 0.0, %v1527
      %v1529 = vpop.f32.mrb[0].mxu0
      %1530 = vmatprep.mubr.f32.mxu0 0.0
      %1531 = vmatmul.mubr.f32.gmra.mrb[0].mxu0 %v1234
      %v1532 = vpop.f32.mrb[0].mxu0
      %v1533 = vadd.f32 0.0, %v1532
      %v1534 = vpop.f32.mrb[0].mxu0
      %1535 = vmatprep.mubr.f32.mxu0 0.0
      %1536 = vmatmul.mubr.f32.gmra.mrb[0].mxu0 %v1237
      %v1537 = vpop.f32.mrb[0].mxu0
      %v1538 = vadd.f32 0.0, %v1537
      %v1539 = vpop.f32.mrb[0].mxu0
      %1540 = vmatprep.mubr.f32.mxu0 0.0
      %1541 = vmatmul.mubr.f32.gmra.mrb[0].mxu0 %v1240
      %v1542 = vpop.f32.mrb[0].mxu0
      %v1543 = vadd.f32 0.0, %v1542
      %v1544 = vpop.f32.mrb[0].mxu0
      %1545 = vmatprep.mubr.f32.mxu0 0.0
      %1546 = vmatmul.mubr.f32.gmra.mrb[0].mxu0 %v1243
      %v1547 = vpop.f32.mrb[0].mxu0
      %v1548 = vadd.f32 0.0, %v1547
      %v1549 = vpop.f32.mrb[0].mxu0
      %1550 = vmatprep.mubr.f32.mxu0 0.0
      %1551 = vmatmul.mubr.f32.gmra.mrb[0].mxu0 %v1246
      %v1552 = vpop.f32.mrb[0].mxu0
      %v1553 = vadd.f32 0.0, %v1552
      %v1554 = vpop.f32.mrb[0].mxu0
      %1555 = vmatprep.mubr.f32.mxu0 0.0
      %1556 = vmatmul.mubr.f32.gmra.mrb[0].mxu0 %v1249
      %v1557 = vpop.f32.mrb[0].mxu0
      %v1558 = vadd.f32 0.0, %v1557
      %v1559 = vpop.f32.mrb[0].mxu0
      %1560 = vmatprep.mubr.f32.mxu0 0.0
      %1561 = vmatmul.mubr.f32.gmra.mrb[0].mxu0 %v1252
      %v1562 = vpop.f32.mrb[0].mxu0
      %v1563 = vadd.f32 0.0, %v1562
      %v1564 = vpop.f32.mrb[0].mxu0
      %1565 = vdwg.mxu0
      %v1566 = vadd.f32 %v882, %v1327
      %v1567 = vadd.f32 %v884, %v1329
      %v1568 = vadd.f32 %v1043, %v1488
      %v1569 = vadd.f32 %v888, %v1333
      %v1570 = vadd.f32 %v890, %v1335
      %v1571 = vadd.f32 %v1048, %v1493
      %v1572 = vadd.f32 %v894, %v1339
      %v1573 = vadd.f32 %v896, %v1341
      %v1574 = vadd.f32 %v1053, %v1498
      %v1575 = vadd.f32 %v900, %v1345
      %v1576 = vadd.f32 %v902, %v1347
      %v1577 = vadd.f32 %v1058, %v1503
      %v1578 = vadd.f32 %v906, %v1351
      %v1579 = vadd.f32 %v908, %v1353
      %v1580 = vadd.f32 %v1063, %v1508
      %v1581 = vadd.f32 %v912, %v1357
      %v1582 = vadd.f32 %v914, %v1359
      %v1583 = vadd.f32 %v1068, %v1513
      %v1584 = vadd.f32 %v918, %v1363
      %v1585 = vadd.f32 %v920, %v1365
      %v1586 = vadd.f32 %v1073, %v1518
      %v1587 = vadd.f32 %v924, %v1369
      %v1588 = vadd.f32 %v926, %v1371
      %v1589 = vadd.f32 %v1078, %v1523
      %v1590 = vadd.f32 %v930, %v1375
      %v1591 = vadd.f32 %v932, %v1377
      %v1592 = vadd.f32 %v1083, %v1528
      %v1593 = vadd.f32 %v936, %v1381
      %v1594 = vadd.f32 %v938, %v1383
      %v1595 = vadd.f32 %v1088, %v1533
      %v1596 = vadd.f32 %v942, %v1387
      %v1597 = vadd.f32 %v944, %v1389
      %v1598 = vadd.f32 %v1093, %v1538
      %v1599 = vadd.f32 %v948, %v1393
      %v1600 = vadd.f32 %v950, %v1395
      %v1601 = vadd.f32 %v1098, %v1543
      %v1602 = vadd.f32 %v954, %v1399
      %v1603 = vadd.f32 %v956, %v1401
      %v1604 = vadd.f32 %v1103, %v1548
      %v1605 = vadd.f32 %v960, %v1405
      %v1606 = vadd.f32 %v962, %v1407
      %v1607 = vadd.f32 %v1108, %v1553
      %v1608 = vadd.f32 %v966, %v1411
      %v1609 = vadd.f32 %v968, %v1413
      %v1610 = vadd.f32 %v1113, %v1558
      %v1611 = vadd.f32 %v972, %v1417
      %v1612 = vadd.f32 %v974, %v1419
      %v1613 = vadd.f32 %v1118, %v1563
      %s1614 = scalar_lea.vmem %s1, 384
      %v1615 = vld [vmem:[%s1614] sm:$0xff]
      %v1616 = vld [vmem:[%s1614 + $0x8] sm:$0xff]
      %v1617 = vld [vmem:[%s1614 + $0x10] sm:$0xff]
      %v1618 = vld [vmem:[%s1614 + $0x18] sm:$0xff]
      %v1619 = vld [vmem:[%s1614 + $0x20] sm:$0xff]
      %v1620 = vld [vmem:[%s1614 + $0x28] sm:$0xff]
      %v1621 = vld [vmem:[%s1614 + $0x30] sm:$0xff]
      %v1622 = vld [vmem:[%s1614 + $0x38] sm:$0xff]
      %v1623 = vld [vmem:[%s1614 + $0x40] sm:$0xff]
      %v1624 = vld [vmem:[%s1614 + $0x48] sm:$0xff]
      %v1625 = vld [vmem:[%s1614 + $0x50] sm:$0xff]
      %v1626 = vld [vmem:[%s1614 + $0x58] sm:$0xff]
      %v1627 = vld [vmem:[%s1614 + $0x60] sm:$0xff]
      %v1628 = vld [vmem:[%s1614 + $0x68] sm:$0xff]
      %v1629 = vld [vmem:[%s1614 + $0x70] sm:$0xff]
      %v1630 = vld [vmem:[%s1614 + $0x78] sm:$0xff]
      %1631 = vrot.lane.b32.xlu0 %v258, 110
      %v1632 = vpop.permute.xlu0 %1631
      %1633 = vrot.lane.b32.xlu0 %v259, 110
      %v1634 = vpop.permute.xlu0 %1633
      %1635 = vrot.lane.b32.xlu0 %v260, 110
      %v1636 = vpop.permute.xlu0 %1635
      %1637 = vrot.lane.b32.xlu0 %v289, 110
      %v1638 = vpop.permute.xlu0 %1637
      %1639 = vrot.lane.b32.xlu0 %v261, 110
      %v1640 = vpop.permute.xlu0 %1639
      %1641 = vrot.lane.b32.xlu0 %v262, 110
      %v1642 = vpop.permute.xlu0 %1641
      %1643 = vrot.lane.b32.xlu0 %v263, 110
      %v1644 = vpop.permute.xlu0 %1643
      %1645 = vrot.lane.b32.xlu0 %v290, 110
      %v1646 = vpop.permute.xlu0 %1645
      %1647 = vrot.lane.b32.xlu0 %v264, 110
      %v1648 = vpop.permute.xlu0 %1647
      %1649 = vrot.lane.b32.xlu0 %v265, 110
      %v1650 = vpop.permute.xlu0 %1649
      %1651 = vrot.lane.b32.xlu0 %v266, 110
      %v1652 = vpop.permute.xlu0 %1651
      %1653 = vrot.lane.b32.xlu0 %v291, 110
      %v1654 = vpop.permute.xlu0 %1653
      %1655 = vrot.lane.b32.xlu0 %v267, 110
      %v1656 = vpop.permute.xlu0 %1655
      %1657 = vrot.lane.b32.xlu0 %v268, 110
      %v1658 = vpop.permute.xlu0 %1657
      %1659 = vrot.lane.b32.xlu0 %v269, 110
      %v1660 = vpop.permute.xlu0 %1659
      %1661 = vrot.lane.b32.xlu0 %v292, 110
      %v1662 = vpop.permute.xlu0 %1661
      %1663 = vrot.lane.b32.xlu0 %v270, 110
      %v1664 = vpop.permute.xlu0 %1663
      %1665 = vrot.lane.b32.xlu0 %v271, 110
      %v1666 = vpop.permute.xlu0 %1665
      %1667 = vrot.lane.b32.xlu0 %v272, 110
      %v1668 = vpop.permute.xlu0 %1667
      %1669 = vrot.lane.b32.xlu0 %v293, 110
      %v1670 = vpop.permute.xlu0 %1669
      %vm1671 = vcmask 900096
      %v1672 = vsel %vm1671, %v1632, %v1634
      %v1673 = vsel %vm1671, %v1634, %v1636
      %v1674 = vsel %vm1671, %v1636, %v1638
      %v1675 = vsel %vm1671, %v1640, %v1642
      %v1676 = vsel %vm1671, %v1642, %v1644
      %v1677 = vsel %vm1671, %v1644, %v1646
      %v1678 = vsel %vm1671, %v1648, %v1650
      %v1679 = vsel %vm1671, %v1650, %v1652
      %v1680 = vsel %vm1671, %v1652, %v1654
      %v1681 = vsel %vm1671, %v1656, %v1658
      %v1682 = vsel %vm1671, %v1658, %v1660
      %v1683 = vsel %vm1671, %v1660, %v1662
      %v1684 = vsel %vm1671, %v1664, %v1666
      %v1685 = vsel %vm1671, %v1666, %v1668
      %v1686 = vsel %vm1671, %v1668, %v1670
      %v1700 = vsel %vm399, %v1615, 0
      %v1703 = vsel %vm399, %v1616, 0
      %v1706 = vsel %vm399, %v1617, 0
      %v1709 = vsel %vm399, %v1618, 0
      %v1712 = vsel %vm399, %v1619, 0
      %v1715 = vsel %vm399, %v1620, 0
      %v1718 = vsel %vm399, %v1621, 0
      %v1721 = vsel %vm399, %v1622, 0
      %v1724 = vsel %vm399, %v1623, 0
      %v1727 = vsel %vm399, %v1624, 0
      %v1730 = vsel %vm399, %v1625, 0
      %v1733 = vsel %vm399, %v1626, 0
      %v1736 = vsel %vm399, %v1627, 0
      %v1739 = vsel %vm399, %v1628, 0
      %v1742 = vsel %vm399, %v1629, 0
      %v1745 = vsel %vm399, %v1630, 0
      %v1747 = vsel %vm448, %v1684, 0
      %v1749 = vsel %vm448, %v1685, 0
      %v1751 = vsel %vm448, %v1686, 0
      %1753 = vmatprep.subr.mxu0 %v1673
      %1754 = vmatpush1.msra.mxu0 %v1672
      %1755 = vmatprep.subr.mxu0 %v1676
      %1756 = vmatpush1.msra.mxu0 %v1675
      %1757 = vmatprep.subr.mxu0 %v1679
      %1758 = vmatpush1.msra.mxu0 %v1678
      %1759 = vmatprep.subr.mxu0 %v1682
      %1760 = vmatpush1.msra.mxu0 %v1681
      %1761 = vmatprep.subr.mxu0 %v1749
      %1762 = vmatpush1.msra.mxu0 %v1747
      %1763 = vmatprep.subr.mxu0 0.0
      %1764 = vmatpush1.msra.mxu0 0.0
      %1765 = vmatprep.subr.mxu0 0.0
      %1766 = vmatpush1.msra.mxu0 0.0
      %1767 = vmatprep.subr.mxu0 0.0
      %1768 = vmatpush1.msra.mxu0 0.0
      %1769 = vmatprep.subr.mxu0 0.0
      %1770 = vmatpush1.msra.mxu0 0.0
      %1771 = vmatprep.subr.mxu0 0.0
      %1772 = vmatpush1.msra.mxu0 0.0
      %1773 = vmatprep.subr.mxu0 0.0
      %1774 = vmatpush1.msra.mxu0 0.0
      %1775 = vmatprep.subr.mxu0 0.0
      %1776 = vmatpush1.msra.mxu0 0.0
      %1777 = vmatprep.subr.mxu0 0.0
      %1778 = vmatpush1.msra.mxu0 0.0
      %1779 = vmatprep.subr.mxu0 0.0
      %1780 = vmatpush1.msra.mxu0 0.0
      %1781 = vmatprep.subr.mxu0 0.0
      %1782 = vmatpush1.msra.mxu0 0.0
      %1783 = vmatprep.subr.mxu0 0.0
      %1784 = vmatpush1.msra.mxu0 0.0
      %1785 = vmatprep.subr.mxu0 0.0
      %1786 = vmatpush1.msra.mxu0 0.0
      %1787 = vmatprep.subr.mxu0 0.0
      %1788 = vmatpush1.msra.mxu0 0.0
      %1789 = vmatprep.subr.mxu0 0.0
      %1790 = vmatpush1.msra.mxu0 0.0
      %1791 = vmatprep.subr.mxu0 0.0
      %1792 = vmatpush1.msra.mxu0 0.0
      %1793 = vmatprep.subr.mxu0 0.0
      %1794 = vmatpush1.msra.mxu0 0.0
      %1795 = vmatprep.subr.mxu0 0.0
      %1796 = vmatpush1.msra.mxu0 0.0
      %1797 = vmatprep.subr.mxu0 0.0
      %1798 = vmatpush1.msra.mxu0 0.0
      %1799 = vmatprep.subr.mxu0 0.0
      %1800 = vmatpush1.msra.mxu0 0.0
      %1801 = vmatprep.subr.mxu0 0.0
      %1802 = vmatpush1.msra.mxu0 0.0
      %1803 = vmatprep.subr.mxu0 0.0
      %1804 = vmatpush1.msra.mxu0 0.0
      %1805 = vmatprep.subr.mxu0 0.0
      %1806 = vmatpush1.msra.mxu0 0.0
      %1807 = vmatprep.subr.mxu0 0.0
      %1808 = vmatpush1.msra.mxu0 0.0
      %1809 = vmatprep.subr.mxu0 0.0
      %1810 = vmatpush1.msra.mxu0 0.0
      %1811 = vmatprep.subr.mxu0 0.0
      %1812 = vmatpush1.msra.mxu0 0.0
      %1813 = vmatprep.subr.mxu0 0.0
      %1814 = vmatpush1.msra.mxu0 0.0
      %1815 = vmatprep.subr.mxu0 0.0
      %1816 = vmatpush1.msra.mxu0 0.0
      %1817 = vmatprep.mubr.f32.mxu0 0.0
      %1818 = vmatmul.mubr.f32.gmra.mrb[0].mxu0 %v1700
      %v1819 = vpop.f32.mrb[0].mxu0
      %v1820 = vadd.f32 0.0, %v1819
      %v1821 = vpop.f32.mrb[0].mxu0
      %v1822 = vadd.f32 0.0, %v1821
      %1823 = vmatprep.mubr.f32.mxu0 0.0
      %1824 = vmatmul.mubr.f32.gmra.mrb[0].mxu0 %v1703
      %v1825 = vpop.f32.mrb[0].mxu0
      %v1826 = vadd.f32 0.0, %v1825
      %v1827 = vpop.f32.mrb[0].mxu0
      %v1828 = vadd.f32 0.0, %v1827
      %1829 = vmatprep.mubr.f32.mxu0 0.0
      %1830 = vmatmul.mubr.f32.gmra.mrb[0].mxu0 %v1706
      %v1831 = vpop.f32.mrb[0].mxu0
      %v1832 = vadd.f32 0.0, %v1831
      %v1833 = vpop.f32.mrb[0].mxu0
      %v1834 = vadd.f32 0.0, %v1833
      %1835 = vmatprep.mubr.f32.mxu0 0.0
      %1836 = vmatmul.mubr.f32.gmra.mrb[0].mxu0 %v1709
      %v1837 = vpop.f32.mrb[0].mxu0
      %v1838 = vadd.f32 0.0, %v1837
      %v1839 = vpop.f32.mrb[0].mxu0
      %v1840 = vadd.f32 0.0, %v1839
      %1841 = vmatprep.mubr.f32.mxu0 0.0
      %1842 = vmatmul.mubr.f32.gmra.mrb[0].mxu0 %v1712
      %v1843 = vpop.f32.mrb[0].mxu0
      %v1844 = vadd.f32 0.0, %v1843
      %v1845 = vpop.f32.mrb[0].mxu0
      %v1846 = vadd.f32 0.0, %v1845
      %1847 = vmatprep.mubr.f32.mxu0 0.0
      %1848 = vmatmul.mubr.f32.gmra.mrb[0].mxu0 %v1715
      %v1849 = vpop.f32.mrb[0].mxu0
      %v1850 = vadd.f32 0.0, %v1849
      %v1851 = vpop.f32.mrb[0].mxu0
      %v1852 = vadd.f32 0.0, %v1851
      %1853 = vmatprep.mubr.f32.mxu0 0.0
      %1854 = vmatmul.mubr.f32.gmra.mrb[0].mxu0 %v1718
      %v1855 = vpop.f32.mrb[0].mxu0
      %v1856 = vadd.f32 0.0, %v1855
      %v1857 = vpop.f32.mrb[0].mxu0
      %v1858 = vadd.f32 0.0, %v1857
      %1859 = vmatprep.mubr.f32.mxu0 0.0
      %1860 = vmatmul.mubr.f32.gmra.mrb[0].mxu0 %v1721
      %v1861 = vpop.f32.mrb[0].mxu0
      %v1862 = vadd.f32 0.0, %v1861
      %v1863 = vpop.f32.mrb[0].mxu0
      %v1864 = vadd.f32 0.0, %v1863
      %1865 = vmatprep.mubr.f32.mxu0 0.0
      %1866 = vmatmul.mubr.f32.gmra.mrb[0].mxu0 %v1724
      %v1867 = vpop.f32.mrb[0].mxu0
      %v1868 = vadd.f32 0.0, %v1867
      %v1869 = vpop.f32.mrb[0].mxu0
      %v1870 = vadd.f32 0.0, %v1869
      %1871 = vmatprep.mubr.f32.mxu0 0.0
      %1872 = vmatmul.mubr.f32.gmra.mrb[0].mxu0 %v1727
      %v1873 = vpop.f32.mrb[0].mxu0
      %v1874 = vadd.f32 0.0, %v1873
      %v1875 = vpop.f32.mrb[0].mxu0
      %v1876 = vadd.f32 0.0, %v1875
      %1877 = vmatprep.mubr.f32.mxu0 0.0
      %1878 = vmatmul.mubr.f32.gmra.mrb[0].mxu0 %v1730
      %v1879 = vpop.f32.mrb[0].mxu0
      %v1880 = vadd.f32 0.0, %v1879
      %v1881 = vpop.f32.mrb[0].mxu0
      %v1882 = vadd.f32 0.0, %v1881
      %1883 = vmatprep.mubr.f32.mxu0 0.0
      %1884 = vmatmul.mubr.f32.gmra.mrb[0].mxu0 %v1733
      %v1885 = vpop.f32.mrb[0].mxu0
      %v1886 = vadd.f32 0.0, %v1885
      %v1887 = vpop.f32.mrb[0].mxu0
      %v1888 = vadd.f32 0.0, %v1887
      %1889 = vmatprep.mubr.f32.mxu0 0.0
      %1890 = vmatmul.mubr.f32.gmra.mrb[0].mxu0 %v1736
      %v1891 = vpop.f32.mrb[0].mxu0
      %v1892 = vadd.f32 0.0, %v1891
      %v1893 = vpop.f32.mrb[0].mxu0
      %v1894 = vadd.f32 0.0, %v1893
      %1895 = vmatprep.mubr.f32.mxu0 0.0
      %1896 = vmatmul.mubr.f32.gmra.mrb[0].mxu0 %v1739
      %v1897 = vpop.f32.mrb[0].mxu0
      %v1898 = vadd.f32 0.0, %v1897
      %v1899 = vpop.f32.mrb[0].mxu0
      %v1900 = vadd.f32 0.0, %v1899
      %1901 = vmatprep.mubr.f32.mxu0 0.0
      %1902 = vmatmul.mubr.f32.gmra.mrb[0].mxu0 %v1742
      %v1903 = vpop.f32.mrb[0].mxu0
      %v1904 = vadd.f32 0.0, %v1903
      %v1905 = vpop.f32.mrb[0].mxu0
      %v1906 = vadd.f32 0.0, %v1905
      %1907 = vmatprep.mubr.f32.mxu0 0.0
      %1908 = vmatmul.mubr.f32.gmra.mrb[0].mxu0 %v1745
      %v1909 = vpop.f32.mrb[0].mxu0
      %v1910 = vadd.f32 0.0, %v1909
      %v1911 = vpop.f32.mrb[0].mxu0
      %v1912 = vadd.f32 0.0, %v1911
      %1913 = vdwg.mxu0
      %1914 = vmatprep.subr.mxu0 0.0
      %1915 = vmatpush1.msra.mxu0 %v1674
      %1916 = vmatprep.subr.mxu0 0.0
      %1917 = vmatpush1.msra.mxu0 %v1677
      %1918 = vmatprep.subr.mxu0 0.0
      %1919 = vmatpush1.msra.mxu0 %v1680
      %1920 = vmatprep.subr.mxu0 0.0
      %1921 = vmatpush1.msra.mxu0 %v1683
      %1922 = vmatprep.subr.mxu0 0.0
      %1923 = vmatpush1.msra.mxu0 %v1751
      %1924 = vmatprep.subr.mxu0 0.0
      %1925 = vmatpush1.msra.mxu0 0.0
      %1926 = vmatprep.subr.mxu0 0.0
      %1927 = vmatpush1.msra.mxu0 0.0
      %1928 = vmatprep.subr.mxu0 0.0
      %1929 = vmatpush1.msra.mxu0 0.0
      %1930 = vmatprep.subr.mxu0 0.0
      %1931 = vmatpush1.msra.mxu0 0.0
      %1932 = vmatprep.subr.mxu0 0.0
      %1933 = vmatpush1.msra.mxu0 0.0
      %1934 = vmatprep.subr.mxu0 0.0
      %1935 = vmatpush1.msra.mxu0 0.0
      %1936 = vmatprep.subr.mxu0 0.0
      %1937 = vmatpush1.msra.mxu0 0.0
      %1938 = vmatprep.subr.mxu0 0.0
      %1939 = vmatpush1.msra.mxu0 0.0
      %1940 = vmatprep.subr.mxu0 0.0
      %1941 = vmatpush1.msra.mxu0 0.0
      %1942 = vmatprep.subr.mxu0 0.0
      %1943 = vmatpush1.msra.mxu0 0.0
      %1944 = vmatprep.subr.mxu0 0.0
      %1945 = vmatpush1.msra.mxu0 0.0
      %1946 = vmatprep.subr.mxu0 0.0
      %1947 = vmatpush1.msra.mxu0 0.0
      %1948 = vmatprep.subr.mxu0 0.0
      %1949 = vmatpush1.msra.mxu0 0.0
      %1950 = vmatprep.subr.mxu0 0.0
      %1951 = vmatpush1.msra.mxu0 0.0
      %1952 = vmatprep.subr.mxu0 0.0
      %1953 = vmatpush1.msra.mxu0 0.0
      %1954 = vmatprep.subr.mxu0 0.0
      %1955 = vmatpush1.msra.mxu0 0.0
      %1956 = vmatprep.subr.mxu0 0.0
      %1957 = vmatpush1.msra.mxu0 0.0
      %1958 = vmatprep.subr.mxu0 0.0
      %1959 = vmatpush1.msra.mxu0 0.0
      %1960 = vmatprep.subr.mxu0 0.0
      %1961 = vmatpush1.msra.mxu0 0.0
      %1962 = vmatprep.subr.mxu0 0.0
      %1963 = vmatpush1.msra.mxu0 0.0
      %1964 = vmatprep.subr.mxu0 0.0
      %1965 = vmatpush1.msra.mxu0 0.0
      %1966 = vmatprep.subr.mxu0 0.0
      %1967 = vmatpush1.msra.mxu0 0.0
      %1968 = vmatprep.subr.mxu0 0.0
      %1969 = vmatpush1.msra.mxu0 0.0
      %1970 = vmatprep.subr.mxu0 0.0
      %1971 = vmatpush1.msra.mxu0 0.0
      %1972 = vmatprep.subr.mxu0 0.0
      %1973 = vmatpush1.msra.mxu0 0.0
      %1974 = vmatprep.subr.mxu0 0.0
      %1975 = vmatpush1.msra.mxu0 0.0
      %1976 = vmatprep.subr.mxu0 0.0
      %1977 = vmatpush1.msra.mxu0 0.0
      %1978 = vmatprep.mubr.f32.mxu0 0.0
      %1979 = vmatmul.mubr.f32.gmra.mrb[0].mxu0 %v1700
      %v1980 = vpop.f32.mrb[0].mxu0
      %v1981 = vadd.f32 0.0, %v1980
      %v1982 = vpop.f32.mrb[0].mxu0
      %1983 = vmatprep.mubr.f32.mxu0 0.0
      %1984 = vmatmul.mubr.f32.gmra.mrb[0].mxu0 %v1703
      %v1985 = vpop.f32.mrb[0].mxu0
      %v1986 = vadd.f32 0.0, %v1985
      %v1987 = vpop.f32.mrb[0].mxu0
      %1988 = vmatprep.mubr.f32.mxu0 0.0
      %1989 = vmatmul.mubr.f32.gmra.mrb[0].mxu0 %v1706
      %v1990 = vpop.f32.mrb[0].mxu0
      %v1991 = vadd.f32 0.0, %v1990
      %v1992 = vpop.f32.mrb[0].mxu0
      %1993 = vmatprep.mubr.f32.mxu0 0.0
      %1994 = vmatmul.mubr.f32.gmra.mrb[0].mxu0 %v1709
      %v1995 = vpop.f32.mrb[0].mxu0
      %v1996 = vadd.f32 0.0, %v1995
      %v1997 = vpop.f32.mrb[0].mxu0
      %1998 = vmatprep.mubr.f32.mxu0 0.0
      %1999 = vmatmul.mubr.f32.gmra.mrb[0].mxu0 %v1712
      %v2000 = vpop.f32.mrb[0].mxu0
      %v2001 = vadd.f32 0.0, %v2000
      %v2002 = vpop.f32.mrb[0].mxu0
      %2003 = vmatprep.mubr.f32.mxu0 0.0
      %2004 = vmatmul.mubr.f32.gmra.mrb[0].mxu0 %v1715
      %v2005 = vpop.f32.mrb[0].mxu0
      %v2006 = vadd.f32 0.0, %v2005
      %v2007 = vpop.f32.mrb[0].mxu0
      %2008 = vmatprep.mubr.f32.mxu0 0.0
      %2009 = vmatmul.mubr.f32.gmra.mrb[0].mxu0 %v1718
      %v2010 = vpop.f32.mrb[0].mxu0
      %v2011 = vadd.f32 0.0, %v2010
      %v2012 = vpop.f32.mrb[0].mxu0
      %2013 = vmatprep.mubr.f32.mxu0 0.0
      %2014 = vmatmul.mubr.f32.gmra.mrb[0].mxu0 %v1721
      %v2015 = vpop.f32.mrb[0].mxu0
      %v2016 = vadd.f32 0.0, %v2015
      %v2017 = vpop.f32.mrb[0].mxu0
      %2018 = vmatprep.mubr.f32.mxu0 0.0
      %2019 = vmatmul.mubr.f32.gmra.mrb[0].mxu0 %v1724
      %v2020 = vpop.f32.mrb[0].mxu0
      %v2021 = vadd.f32 0.0, %v2020
      %v2022 = vpop.f32.mrb[0].mxu0
      %2023 = vmatprep.mubr.f32.mxu0 0.0
      %2024 = vmatmul.mubr.f32.gmra.mrb[0].mxu0 %v1727
      %v2025 = vpop.f32.mrb[0].mxu0
      %v2026 = vadd.f32 0.0, %v2025
      %v2027 = vpop.f32.mrb[0].mxu0
      %2028 = vmatprep.mubr.f32.mxu0 0.0
      %2029 = vmatmul.mubr.f32.gmra.mrb[0].mxu0 %v1730
      %v2030 = vpop.f32.mrb[0].mxu0
      %v2031 = vadd.f32 0.0, %v2030
      %v2032 = vpop.f32.mrb[0].mxu0
      %2033 = vmatprep.mubr.f32.mxu0 0.0
      %2034 = vmatmul.mubr.f32.gmra.mrb[0].mxu0 %v1733
      %v2035 = vpop.f32.mrb[0].mxu0
      %v2036 = vadd.f32 0.0, %v2035
      %v2037 = vpop.f32.mrb[0].mxu0
      %2038 = vmatprep.mubr.f32.mxu0 0.0
      %2039 = vmatmul.mubr.f32.gmra.mrb[0].mxu0 %v1736
      %v2040 = vpop.f32.mrb[0].mxu0
      %v2041 = vadd.f32 0.0, %v2040
      %v2042 = vpop.f32.mrb[0].mxu0
      %2043 = vmatprep.mubr.f32.mxu0 0.0
      %2044 = vmatmul.mubr.f32.gmra.mrb[0].mxu0 %v1739
      %v2045 = vpop.f32.mrb[0].mxu0
      %v2046 = vadd.f32 0.0, %v2045
      %v2047 = vpop.f32.mrb[0].mxu0
      %2048 = vmatprep.mubr.f32.mxu0 0.0
      %2049 = vmatmul.mubr.f32.gmra.mrb[0].mxu0 %v1742
      %v2050 = vpop.f32.mrb[0].mxu0
      %v2051 = vadd.f32 0.0, %v2050
      %v2052 = vpop.f32.mrb[0].mxu0
      %2053 = vmatprep.mubr.f32.mxu0 0.0
      %2054 = vmatmul.mubr.f32.gmra.mrb[0].mxu0 %v1745
      %v2055 = vpop.f32.mrb[0].mxu0
      %v2056 = vadd.f32 0.0, %v2055
      %v2057 = vpop.f32.mrb[0].mxu0
      %2058 = vdwg.mxu0
      %v2059 = vadd.f32 %v1566, %v1820
      %v2060 = vadd.f32 %v1567, %v1822
      %v2061 = vadd.f32 %v1568, %v1981
      %v2062 = vadd.f32 %v1569, %v1826
      %v2063 = vadd.f32 %v1570, %v1828
      %v2064 = vadd.f32 %v1571, %v1986
      %v2065 = vadd.f32 %v1572, %v1832
      %v2066 = vadd.f32 %v1573, %v1834
      %v2067 = vadd.f32 %v1574, %v1991
      %v2068 = vadd.f32 %v1575, %v1838
      %v2069 = vadd.f32 %v1576, %v1840
      %v2070 = vadd.f32 %v1577, %v1996
      %v2071 = vadd.f32 %v1578, %v1844
      %v2072 = vadd.f32 %v1579, %v1846
      %v2073 = vadd.f32 %v1580, %v2001
      %v2074 = vadd.f32 %v1581, %v1850
      %v2075 = vadd.f32 %v1582, %v1852
      %v2076 = vadd.f32 %v1583, %v2006
      %v2077 = vadd.f32 %v1584, %v1856
      %v2078 = vadd.f32 %v1585, %v1858
      %v2079 = vadd.f32 %v1586, %v2011
      %v2080 = vadd.f32 %v1587, %v1862
      %v2081 = vadd.f32 %v1588, %v1864
      %v2082 = vadd.f32 %v1589, %v2016
      %v2083 = vadd.f32 %v1590, %v1868
      %v2084 = vadd.f32 %v1591, %v1870
      %v2085 = vadd.f32 %v1592, %v2021
      %v2086 = vadd.f32 %v1593, %v1874
      %v2087 = vadd.f32 %v1594, %v1876
      %v2088 = vadd.f32 %v1595, %v2026
      %v2089 = vadd.f32 %v1596, %v1880
      %v2090 = vadd.f32 %v1597, %v1882
      %v2091 = vadd.f32 %v1598, %v2031
      %v2092 = vadd.f32 %v1599, %v1886
      %v2093 = vadd.f32 %v1600, %v1888
      %v2094 = vadd.f32 %v1601, %v2036
      %v2095 = vadd.f32 %v1602, %v1892
      %v2096 = vadd.f32 %v1603, %v1894
      %v2097 = vadd.f32 %v1604, %v2041
      %v2098 = vadd.f32 %v1605, %v1898
      %v2099 = vadd.f32 %v1606, %v1900
      %v2100 = vadd.f32 %v1607, %v2046
      %v2101 = vadd.f32 %v1608, %v1904
      %v2102 = vadd.f32 %v1609, %v1906
      %v2103 = vadd.f32 %v1610, %v2051
      %v2104 = vadd.f32 %v1611, %v1910
      %v2105 = vadd.f32 %v1612, %v1912
      %v2106 = vadd.f32 %v1613, %v2056
      %s2107 = scalar_lea.vmem %s1, 512
      %v2108 = vld [vmem:[%s2107] sm:$0xff]
      %v2109 = vld [vmem:[%s2107 + $0x8] sm:$0xff]
      %v2110 = vld [vmem:[%s2107 + $0x10] sm:$0xff]
      %v2111 = vld [vmem:[%s2107 + $0x18] sm:$0xff]
      %v2112 = vld [vmem:[%s2107 + $0x20] sm:$0xff]
      %v2113 = vld [vmem:[%s2107 + $0x28] sm:$0xff]
      %v2114 = vld [vmem:[%s2107 + $0x30] sm:$0xff]
      %v2115 = vld [vmem:[%s2107 + $0x38] sm:$0xff]
      %v2116 = vld [vmem:[%s2107 + $0x40] sm:$0xff]
      %v2117 = vld [vmem:[%s2107 + $0x48] sm:$0xff]
      %v2118 = vld [vmem:[%s2107 + $0x50] sm:$0xff]
      %v2119 = vld [vmem:[%s2107 + $0x58] sm:$0xff]
      %v2120 = vld [vmem:[%s2107 + $0x60] sm:$0xff]
      %v2121 = vld [vmem:[%s2107 + $0x68] sm:$0xff]
      %v2122 = vld [vmem:[%s2107 + $0x70] sm:$0xff]
      %v2123 = vld [vmem:[%s2107 + $0x78] sm:$0xff]
      %2124 = vrot.lane.b32.xlu0 %v258, 109
      %v2125 = vpop.permute.xlu0 %2124
      %2126 = vrot.lane.b32.xlu0 %v259, 109
      %v2127 = vpop.permute.xlu0 %2126
      %2128 = vrot.lane.b32.xlu0 %v260, 109
      %v2129 = vpop.permute.xlu0 %2128
      %2130 = vrot.lane.b32.xlu0 %v289, 109
      %v2131 = vpop.permute.xlu0 %2130
      %2132 = vrot.lane.b32.xlu0 %v261, 109
      %v2133 = vpop.permute.xlu0 %2132
      %2134 = vrot.lane.b32.xlu0 %v262, 109
      %v2135 = vpop.permute.xlu0 %2134
      %2136 = vrot.lane.b32.xlu0 %v263, 109
      %v2137 = vpop.permute.xlu0 %2136
      %2138 = vrot.lane.b32.xlu0 %v290, 109
      %v2139 = vpop.permute.xlu0 %2138
      %2140 = vrot.lane.b32.xlu0 %v264, 109
      %v2141 = vpop.permute.xlu0 %2140
      %2142 = vrot.lane.b32.xlu0 %v265, 109
      %v2143 = vpop.permute.xlu0 %2142
      %2144 = vrot.lane.b32.xlu0 %v266, 109
      %v2145 = vpop.permute.xlu0 %2144
      %2146 = vrot.lane.b32.xlu0 %v291, 109
      %v2147 = vpop.permute.xlu0 %2146
      %2148 = vrot.lane.b32.xlu0 %v267, 109
      %v2149 = vpop.permute.xlu0 %2148
      %2150 = vrot.lane.b32.xlu0 %v268, 109
      %v2151 = vpop.permute.xlu0 %2150
      %2152 = vrot.lane.b32.xlu0 %v269, 109
      %v2153 = vpop.permute.xlu0 %2152
      %2154 = vrot.lane.b32.xlu0 %v292, 109
      %v2155 = vpop.permute.xlu0 %2154
      %2156 = vrot.lane.b32.xlu0 %v270, 109
      %v2157 = vpop.permute.xlu0 %2156
      %2158 = vrot.lane.b32.xlu0 %v271, 109
      %v2159 = vpop.permute.xlu0 %2158
      %2160 = vrot.lane.b32.xlu0 %v272, 109
      %v2161 = vpop.permute.xlu0 %2160
      %2162 = vrot.lane.b32.xlu0 %v293, 109
      %v2163 = vpop.permute.xlu0 %2162
      %vm2164 = vcmask 891904
      %v2165 = vsel %vm2164, %v2125, %v2127
      %v2166 = vsel %vm2164, %v2127, %v2129
      %v2167 = vsel %vm2164, %v2129, %v2131
      %v2168 = vsel %vm2164, %v2133, %v2135
      %v2169 = vsel %vm2164, %v2135, %v2137
      %v2170 = vsel %vm2164, %v2137, %v2139
      %v2171 = vsel %vm2164, %v2141, %v2143
      %v2172 = vsel %vm2164, %v2143, %v2145
      %v2173 = vsel %vm2164, %v2145, %v2147
      %v2174 = vsel %vm2164, %v2149, %v2151
      %v2175 = vsel %vm2164, %v2151, %v2153
      %v2176 = vsel %vm2164, %v2153, %v2155
      %v2177 = vsel %vm2164, %v2157, %v2159
      %v2178 = vsel %vm2164, %v2159, %v2161
      %v2179 = vsel %vm2164, %v2161, %v2163
      %v2193 = vsel %vm399, %v2108, 0
      %v2196 = vsel %vm399, %v2109, 0
      %v2199 = vsel %vm399, %v2110, 0
      %v2202 = vsel %vm399, %v2111, 0
      %v2205 = vsel %vm399, %v2112, 0
      %v2208 = vsel %vm399, %v2113, 0
      %v2211 = vsel %vm399, %v2114, 0
      %v2214 = vsel %vm399, %v2115, 0
      %v2217 = vsel %vm399, %v2116, 0
      %v2220 = vsel %vm399, %v2117, 0
      %v2223 = vsel %vm399, %v2118, 0
      %v2226 = vsel %vm399, %v2119, 0
      %v2229 = vsel %vm399, %v2120, 0
      %v2232 = vsel %vm399, %v2121, 0
      %v2235 = vsel %vm399, %v2122, 0
      %v2238 = vsel %vm399, %v2123, 0
      %v2240 = vsel %vm448, %v2177, 0
      %v2242 = vsel %vm448, %v2178, 0
      %v2244 = vsel %vm448, %v2179, 0
      %2246 = vmatprep.subr.mxu0 %v2166
      %2247 = vmatpush1.msra.mxu0 %v2165
      %2248 = vmatprep.subr.mxu0 %v2169
      %2249 = vmatpush1.msra.mxu0 %v2168
      %2250 = vmatprep.subr.mxu0 %v2172
      %2251 = vmatpush1.msra.mxu0 %v2171
      %2252 = vmatprep.subr.mxu0 %v2175
      %2253 = vmatpush1.msra.mxu0 %v2174
      %2254 = vmatprep.subr.mxu0 %v2242
      %2255 = vmatpush1.msra.mxu0 %v2240
      %2256 = vmatprep.subr.mxu0 0.0
      %2257 = vmatpush1.msra.mxu0 0.0
      %2258 = vmatprep.subr.mxu0 0.0
      %2259 = vmatpush1.msra.mxu0 0.0
      %2260 = vmatprep.subr.mxu0 0.0
      %2261 = vmatpush1.msra.mxu0 0.0
      %2262 = vmatprep.subr.mxu0 0.0
      %2263 = vmatpush1.msra.mxu0 0.0
      %2264 = vmatprep.subr.mxu0 0.0
      %2265 = vmatpush1.msra.mxu0 0.0
      %2266 = vmatprep.subr.mxu0 0.0
      %2267 = vmatpush1.msra.mxu0 0.0
      %2268 = vmatprep.subr.mxu0 0.0
      %2269 = vmatpush1.msra.mxu0 0.0
      %2270 = vmatprep.subr.mxu0 0.0
      %2271 = vmatpush1.msra.mxu0 0.0
      %2272 = vmatprep.subr.mxu0 0.0
      %2273 = vmatpush1.msra.mxu0 0.0
      %2274 = vmatprep.subr.mxu0 0.0
      %2275 = vmatpush1.msra.mxu0 0.0
      %2276 = vmatprep.subr.mxu0 0.0
      %2277 = vmatpush1.msra.mxu0 0.0
      %2278 = vmatprep.subr.mxu0 0.0
      %2279 = vmatpush1.msra.mxu0 0.0
      %2280 = vmatprep.subr.mxu0 0.0
      %2281 = vmatpush1.msra.mxu0 0.0
      %2282 = vmatprep.subr.mxu0 0.0
      %2283 = vmatpush1.msra.mxu0 0.0
      %2284 = vmatprep.subr.mxu0 0.0
      %2285 = vmatpush1.msra.mxu0 0.0
      %2286 = vmatprep.subr.mxu0 0.0
      %2287 = vmatpush1.msra.mxu0 0.0
      %2288 = vmatprep.subr.mxu0 0.0
      %2289 = vmatpush1.msra.mxu0 0.0
      %2290 = vmatprep.subr.mxu0 0.0
      %2291 = vmatpush1.msra.mxu0 0.0
      %2292 = vmatprep.subr.mxu0 0.0
      %2293 = vmatpush1.msra.mxu0 0.0
      %2294 = vmatprep.subr.mxu0 0.0
      %2295 = vmatpush1.msra.mxu0 0.0
      %2296 = vmatprep.subr.mxu0 0.0
      %2297 = vmatpush1.msra.mxu0 0.0
      %2298 = vmatprep.subr.mxu0 0.0
      %2299 = vmatpush1.msra.mxu0 0.0
      %2300 = vmatprep.subr.mxu0 0.0
      %2301 = vmatpush1.msra.mxu0 0.0
      %2302 = vmatprep.subr.mxu0 0.0
      %2303 = vmatpush1.msra.mxu0 0.0
      %2304 = vmatprep.subr.mxu0 0.0
      %2305 = vmatpush1.msra.mxu0 0.0
      %2306 = vmatprep.subr.mxu0 0.0
      %2307 = vmatpush1.msra.mxu0 0.0
      %2308 = vmatprep.subr.mxu0 0.0
      %2309 = vmatpush1.msra.mxu0 0.0
      %2310 = vmatprep.mubr.f32.mxu0 0.0
      %2311 = vmatmul.mubr.f32.gmra.mrb[0].mxu0 %v2193
      %v2312 = vpop.f32.mrb[0].mxu0
      %v2313 = vadd.f32 0.0, %v2312
      %v2314 = vpop.f32.mrb[0].mxu0
      %v2315 = vadd.f32 0.0, %v2314
      %2316 = vmatprep.mubr.f32.mxu0 0.0
      %2317 = vmatmul.mubr.f32.gmra.mrb[0].mxu0 %v2196
      %v2318 = vpop.f32.mrb[0].mxu0
      %v2319 = vadd.f32 0.0, %v2318
      %v2320 = vpop.f32.mrb[0].mxu0
      %v2321 = vadd.f32 0.0, %v2320
      %2322 = vmatprep.mubr.f32.mxu0 0.0
      %2323 = vmatmul.mubr.f32.gmra.mrb[0].mxu0 %v2199
      %v2324 = vpop.f32.mrb[0].mxu0
      %v2325 = vadd.f32 0.0, %v2324
      %v2326 = vpop.f32.mrb[0].mxu0
      %v2327 = vadd.f32 0.0, %v2326
      %2328 = vmatprep.mubr.f32.mxu0 0.0
      %2329 = vmatmul.mubr.f32.gmra.mrb[0].mxu0 %v2202
      %v2330 = vpop.f32.mrb[0].mxu0
      %v2331 = vadd.f32 0.0, %v2330
      %v2332 = vpop.f32.mrb[0].mxu0
      %v2333 = vadd.f32 0.0, %v2332
      %2334 = vmatprep.mubr.f32.mxu0 0.0
      %2335 = vmatmul.mubr.f32.gmra.mrb[0].mxu0 %v2205
      %v2336 = vpop.f32.mrb[0].mxu0
      %v2337 = vadd.f32 0.0, %v2336
      %v2338 = vpop.f32.mrb[0].mxu0
      %v2339 = vadd.f32 0.0, %v2338
      %2340 = vmatprep.mubr.f32.mxu0 0.0
      %2341 = vmatmul.mubr.f32.gmra.mrb[0].mxu0 %v2208
      %v2342 = vpop.f32.mrb[0].mxu0
      %v2343 = vadd.f32 0.0, %v2342
      %v2344 = vpop.f32.mrb[0].mxu0
      %v2345 = vadd.f32 0.0, %v2344
      %2346 = vmatprep.mubr.f32.mxu0 0.0
      %2347 = vmatmul.mubr.f32.gmra.mrb[0].mxu0 %v2211
      %v2348 = vpop.f32.mrb[0].mxu0
      %v2349 = vadd.f32 0.0, %v2348
      %v2350 = vpop.f32.mrb[0].mxu0
      %v2351 = vadd.f32 0.0, %v2350
      %2352 = vmatprep.mubr.f32.mxu0 0.0
      %2353 = vmatmul.mubr.f32.gmra.mrb[0].mxu0 %v2214
      %v2354 = vpop.f32.mrb[0].mxu0
      %v2355 = vadd.f32 0.0, %v2354
      %v2356 = vpop.f32.mrb[0].mxu0
      %v2357 = vadd.f32 0.0, %v2356
      %2358 = vmatprep.mubr.f32.mxu0 0.0
      %2359 = vmatmul.mubr.f32.gmra.mrb[0].mxu0 %v2217
      %v2360 = vpop.f32.mrb[0].mxu0
      %v2361 = vadd.f32 0.0, %v2360
      %v2362 = vpop.f32.mrb[0].mxu0
      %v2363 = vadd.f32 0.0, %v2362
      %2364 = vmatprep.mubr.f32.mxu0 0.0
      %2365 = vmatmul.mubr.f32.gmra.mrb[0].mxu0 %v2220
      %v2366 = vpop.f32.mrb[0].mxu0
      %v2367 = vadd.f32 0.0, %v2366
      %v2368 = vpop.f32.mrb[0].mxu0
      %v2369 = vadd.f32 0.0, %v2368
      %2370 = vmatprep.mubr.f32.mxu0 0.0
      %2371 = vmatmul.mubr.f32.gmra.mrb[0].mxu0 %v2223
      %v2372 = vpop.f32.mrb[0].mxu0
      %v2373 = vadd.f32 0.0, %v2372
      %v2374 = vpop.f32.mrb[0].mxu0
      %v2375 = vadd.f32 0.0, %v2374
      %2376 = vmatprep.mubr.f32.mxu0 0.0
      %2377 = vmatmul.mubr.f32.gmra.mrb[0].mxu0 %v2226
      %v2378 = vpop.f32.mrb[0].mxu0
      %v2379 = vadd.f32 0.0, %v2378
      %v2380 = vpop.f32.mrb[0].mxu0
      %v2381 = vadd.f32 0.0, %v2380
      %2382 = vmatprep.mubr.f32.mxu0 0.0
      %2383 = vmatmul.mubr.f32.gmra.mrb[0].mxu0 %v2229
      %v2384 = vpop.f32.mrb[0].mxu0
      %v2385 = vadd.f32 0.0, %v2384
      %v2386 = vpop.f32.mrb[0].mxu0
      %v2387 = vadd.f32 0.0, %v2386
      %2388 = vmatprep.mubr.f32.mxu0 0.0
      %2389 = vmatmul.mubr.f32.gmra.mrb[0].mxu0 %v2232
      %v2390 = vpop.f32.mrb[0].mxu0
      %v2391 = vadd.f32 0.0, %v2390
      %v2392 = vpop.f32.mrb[0].mxu0
      %v2393 = vadd.f32 0.0, %v2392
      %2394 = vmatprep.mubr.f32.mxu0 0.0
      %2395 = vmatmul.mubr.f32.gmra.mrb[0].mxu0 %v2235
      %v2396 = vpop.f32.mrb[0].mxu0
      %v2397 = vadd.f32 0.0, %v2396
      %v2398 = vpop.f32.mrb[0].mxu0
      %v2399 = vadd.f32 0.0, %v2398
      %2400 = vmatprep.mubr.f32.mxu0 0.0
      %2401 = vmatmul.mubr.f32.gmra.mrb[0].mxu0 %v2238
      %v2402 = vpop.f32.mrb[0].mxu0
      %v2403 = vadd.f32 0.0, %v2402
      %v2404 = vpop.f32.mrb[0].mxu0
      %v2405 = vadd.f32 0.0, %v2404
      %2406 = vdwg.mxu0
      %2407 = vmatprep.subr.mxu0 0.0
      %2408 = vmatpush1.msra.mxu0 %v2167
      %2409 = vmatprep.subr.mxu0 0.0
      %2410 = vmatpush1.msra.mxu0 %v2170
      %2411 = vmatprep.subr.mxu0 0.0
      %2412 = vmatpush1.msra.mxu0 %v2173
      %2413 = vmatprep.subr.mxu0 0.0
      %2414 = vmatpush1.msra.mxu0 %v2176
      %2415 = vmatprep.subr.mxu0 0.0
      %2416 = vmatpush1.msra.mxu0 %v2244
      %2417 = vmatprep.subr.mxu0 0.0
      %2418 = vmatpush1.msra.mxu0 0.0
      %2419 = vmatprep.subr.mxu0 0.0
      %2420 = vmatpush1.msra.mxu0 0.0
      %2421 = vmatprep.subr.mxu0 0.0
      %2422 = vmatpush1.msra.mxu0 0.0
      %2423 = vmatprep.subr.mxu0 0.0
      %2424 = vmatpush1.msra.mxu0 0.0
      %2425 = vmatprep.subr.mxu0 0.0
      %2426 = vmatpush1.msra.mxu0 0.0
      %2427 = vmatprep.subr.mxu0 0.0
      %2428 = vmatpush1.msra.mxu0 0.0
      %2429 = vmatprep.subr.mxu0 0.0
      %2430 = vmatpush1.msra.mxu0 0.0
      %2431 = vmatprep.subr.mxu0 0.0
      %2432 = vmatpush1.msra.mxu0 0.0
      %2433 = vmatprep.subr.mxu0 0.0
      %2434 = vmatpush1.msra.mxu0 0.0
      %2435 = vmatprep.subr.mxu0 0.0
      %2436 = vmatpush1.msra.mxu0 0.0
      %2437 = vmatprep.subr.mxu0 0.0
      %2438 = vmatpush1.msra.mxu0 0.0
      %2439 = vmatprep.subr.mxu0 0.0
      %2440 = vmatpush1.msra.mxu0 0.0
      %2441 = vmatprep.subr.mxu0 0.0
      %2442 = vmatpush1.msra.mxu0 0.0
      %2443 = vmatprep.subr.mxu0 0.0
      %2444 = vmatpush1.msra.mxu0 0.0
      %2445 = vmatprep.subr.mxu0 0.0
      %2446 = vmatpush1.msra.mxu0 0.0
      %2447 = vmatprep.subr.mxu0 0.0
      %2448 = vmatpush1.msra.mxu0 0.0
      %2449 = vmatprep.subr.mxu0 0.0
      %2450 = vmatpush1.msra.mxu0 0.0
      %2451 = vmatprep.subr.mxu0 0.0
      %2452 = vmatpush1.msra.mxu0 0.0
      %2453 = vmatprep.subr.mxu0 0.0
      %2454 = vmatpush1.msra.mxu0 0.0
      %2455 = vmatprep.subr.mxu0 0.0
      %2456 = vmatpush1.msra.mxu0 0.0
      %2457 = vmatprep.subr.mxu0 0.0
      %2458 = vmatpush1.msra.mxu0 0.0
      %2459 = vmatprep.subr.mxu0 0.0
      %2460 = vmatpush1.msra.mxu0 0.0
      %2461 = vmatprep.subr.mxu0 0.0
      %2462 = vmatpush1.msra.mxu0 0.0
      %2463 = vmatprep.subr.mxu0 0.0
      %2464 = vmatpush1.msra.mxu0 0.0
      %2465 = vmatprep.subr.mxu0 0.0
      %2466 = vmatpush1.msra.mxu0 0.0
      %2467 = vmatprep.subr.mxu0 0.0
      %2468 = vmatpush1.msra.mxu0 0.0
      %2469 = vmatprep.subr.mxu0 0.0
      %2470 = vmatpush1.msra.mxu0 0.0
      %2471 = vmatprep.mubr.f32.mxu0 0.0
      %2472 = vmatmul.mubr.f32.gmra.mrb[0].mxu0 %v2193
      %v2473 = vpop.f32.mrb[0].mxu0
      %v2474 = vadd.f32 0.0, %v2473
      %v2475 = vpop.f32.mrb[0].mxu0
      %2476 = vmatprep.mubr.f32.mxu0 0.0
      %2477 = vmatmul.mubr.f32.gmra.mrb[0].mxu0 %v2196
      %v2478 = vpop.f32.mrb[0].mxu0
      %v2479 = vadd.f32 0.0, %v2478
      %v2480 = vpop.f32.mrb[0].mxu0
      %2481 = vmatprep.mubr.f32.mxu0 0.0
      %2482 = vmatmul.mubr.f32.gmra.mrb[0].mxu0 %v2199
      %v2483 = vpop.f32.mrb[0].mxu0
      %v2484 = vadd.f32 0.0, %v2483
      %v2485 = vpop.f32.mrb[0].mxu0
      %2486 = vmatprep.mubr.f32.mxu0 0.0
      %2487 = vmatmul.mubr.f32.gmra.mrb[0].mxu0 %v2202
      %v2488 = vpop.f32.mrb[0].mxu0
      %v2489 = vadd.f32 0.0, %v2488
      %v2490 = vpop.f32.mrb[0].mxu0
      %2491 = vmatprep.mubr.f32.mxu0 0.0
      %2492 = vmatmul.mubr.f32.gmra.mrb[0].mxu0 %v2205
      %v2493 = vpop.f32.mrb[0].mxu0
      %v2494 = vadd.f32 0.0, %v2493
      %v2495 = vpop.f32.mrb[0].mxu0
      %2496 = vmatprep.mubr.f32.mxu0 0.0
      %2497 = vmatmul.mubr.f32.gmra.mrb[0].mxu0 %v2208
      %v2498 = vpop.f32.mrb[0].mxu0
      %v2499 = vadd.f32 0.0, %v2498
      %v2500 = vpop.f32.mrb[0].mxu0
      %2501 = vmatprep.mubr.f32.mxu0 0.0
      %2502 = vmatmul.mubr.f32.gmra.mrb[0].mxu0 %v2211
      %v2503 = vpop.f32.mrb[0].mxu0
      %v2504 = vadd.f32 0.0, %v2503
      %v2505 = vpop.f32.mrb[0].mxu0
      %2506 = vmatprep.mubr.f32.mxu0 0.0
      %2507 = vmatmul.mubr.f32.gmra.mrb[0].mxu0 %v2214
      %v2508 = vpop.f32.mrb[0].mxu0
      %v2509 = vadd.f32 0.0, %v2508
      %v2510 = vpop.f32.mrb[0].mxu0
      %2511 = vmatprep.mubr.f32.mxu0 0.0
      %2512 = vmatmul.mubr.f32.gmra.mrb[0].mxu0 %v2217
      %v2513 = vpop.f32.mrb[0].mxu0
      %v2514 = vadd.f32 0.0, %v2513
      %v2515 = vpop.f32.mrb[0].mxu0
      %2516 = vmatprep.mubr.f32.mxu0 0.0
      %2517 = vmatmul.mubr.f32.gmra.mrb[0].mxu0 %v2220
      %v2518 = vpop.f32.mrb[0].mxu0
      %v2519 = vadd.f32 0.0, %v2518
      %v2520 = vpop.f32.mrb[0].mxu0
      %2521 = vmatprep.mubr.f32.mxu0 0.0
      %2522 = vmatmul.mubr.f32.gmra.mrb[0].mxu0 %v2223
      %v2523 = vpop.f32.mrb[0].mxu0
      %v2524 = vadd.f32 0.0, %v2523
      %v2525 = vpop.f32.mrb[0].mxu0
      %2526 = vmatprep.mubr.f32.mxu0 0.0
      %2527 = vmatmul.mubr.f32.gmra.mrb[0].mxu0 %v2226
      %v2528 = vpop.f32.mrb[0].mxu0
      %v2529 = vadd.f32 0.0, %v2528
      %v2530 = vpop.f32.mrb[0].mxu0
      %2531 = vmatprep.mubr.f32.mxu0 0.0
      %2532 = vmatmul.mubr.f32.gmra.mrb[0].mxu0 %v2229
      %v2533 = vpop.f32.mrb[0].mxu0
      %v2534 = vadd.f32 0.0, %v2533
      %v2535 = vpop.f32.mrb[0].mxu0
      %2536 = vmatprep.mubr.f32.mxu0 0.0
      %2537 = vmatmul.mubr.f32.gmra.mrb[0].mxu0 %v2232
      %v2538 = vpop.f32.mrb[0].mxu0
      %v2539 = vadd.f32 0.0, %v2538
      %v2540 = vpop.f32.mrb[0].mxu0
      %2541 = vmatprep.mubr.f32.mxu0 0.0
      %2542 = vmatmul.mubr.f32.gmra.mrb[0].mxu0 %v2235
      %v2543 = vpop.f32.mrb[0].mxu0
      %v2544 = vadd.f32 0.0, %v2543
      %v2545 = vpop.f32.mrb[0].mxu0
      %2546 = vmatprep.mubr.f32.mxu0 0.0
      %2547 = vmatmul.mubr.f32.gmra.mrb[0].mxu0 %v2238
      %v2548 = vpop.f32.mrb[0].mxu0
      %v2549 = vadd.f32 0.0, %v2548
      %v2550 = vpop.f32.mrb[0].mxu0
      %2551 = vdwg.mxu0
      %v2552 = vadd.f32 %v2059, %v2313
      %v2553 = vadd.f32 %v2060, %v2315
      %v2554 = vadd.f32 %v2061, %v2474
      %v2555 = vadd.f32 %v2062, %v2319
      %v2556 = vadd.f32 %v2063, %v2321
      %v2557 = vadd.f32 %v2064, %v2479
      %v2558 = vadd.f32 %v2065, %v2325
      %v2559 = vadd.f32 %v2066, %v2327
      %v2560 = vadd.f32 %v2067, %v2484
      %v2561 = vadd.f32 %v2068, %v2331
      %v2562 = vadd.f32 %v2069, %v2333
      %v2563 = vadd.f32 %v2070, %v2489
      %v2564 = vadd.f32 %v2071, %v2337
      %v2565 = vadd.f32 %v2072, %v2339
      %v2566 = vadd.f32 %v2073, %v2494
      %v2567 = vadd.f32 %v2074, %v2343
      %v2568 = vadd.f32 %v2075, %v2345
      %v2569 = vadd.f32 %v2076, %v2499
      %v2570 = vadd.f32 %v2077, %v2349
      %v2571 = vadd.f32 %v2078, %v2351
      %v2572 = vadd.f32 %v2079, %v2504
      %v2573 = vadd.f32 %v2080, %v2355
      %v2574 = vadd.f32 %v2081, %v2357
      %v2575 = vadd.f32 %v2082, %v2509
      %v2576 = vadd.f32 %v2083, %v2361
      %v2577 = vadd.f32 %v2084, %v2363
      %v2578 = vadd.f32 %v2085, %v2514
      %v2579 = vadd.f32 %v2086, %v2367
      %v2580 = vadd.f32 %v2087, %v2369
      %v2581 = vadd.f32 %v2088, %v2519
      %v2582 = vadd.f32 %v2089, %v2373
      %v2583 = vadd.f32 %v2090, %v2375
      %v2584 = vadd.f32 %v2091, %v2524
      %v2585 = vadd.f32 %v2092, %v2379
      %v2586 = vadd.f32 %v2093, %v2381
      %v2587 = vadd.f32 %v2094, %v2529
      %v2588 = vadd.f32 %v2095, %v2385
      %v2589 = vadd.f32 %v2096, %v2387
      %v2590 = vadd.f32 %v2097, %v2534
      %v2591 = vadd.f32 %v2098, %v2391
      %v2592 = vadd.f32 %v2099, %v2393
      %v2593 = vadd.f32 %v2100, %v2539
      %v2594 = vadd.f32 %v2101, %v2397
      %v2595 = vadd.f32 %v2102, %v2399
      %v2596 = vadd.f32 %v2103, %v2544
      %v2597 = vadd.f32 %v2104, %v2403
      %v2598 = vadd.f32 %v2105, %v2405
      %v2599 = vadd.f32 %v2106, %v2549
      %s2600 = scalar_lea.vmem %s1, 640
      %v2601 = vld [vmem:[%s2600] sm:$0xff]
      %v2602 = vld [vmem:[%s2600 + $0x8] sm:$0xff]
      %v2603 = vld [vmem:[%s2600 + $0x10] sm:$0xff]
      %v2604 = vld [vmem:[%s2600 + $0x18] sm:$0xff]
      %v2605 = vld [vmem:[%s2600 + $0x20] sm:$0xff]
      %v2606 = vld [vmem:[%s2600 + $0x28] sm:$0xff]
      %v2607 = vld [vmem:[%s2600 + $0x30] sm:$0xff]
      %v2608 = vld [vmem:[%s2600 + $0x38] sm:$0xff]
      %v2609 = vld [vmem:[%s2600 + $0x40] sm:$0xff]
      %v2610 = vld [vmem:[%s2600 + $0x48] sm:$0xff]
      %v2611 = vld [vmem:[%s2600 + $0x50] sm:$0xff]
      %v2612 = vld [vmem:[%s2600 + $0x58] sm:$0xff]
      %v2613 = vld [vmem:[%s2600 + $0x60] sm:$0xff]
      %v2614 = vld [vmem:[%s2600 + $0x68] sm:$0xff]
      %v2615 = vld [vmem:[%s2600 + $0x70] sm:$0xff]
      %v2616 = vld [vmem:[%s2600 + $0x78] sm:$0xff]
      %2617 = vrot.lane.b32.xlu0 %v258, 108
      %v2618 = vpop.permute.xlu0 %2617
      %2619 = vrot.lane.b32.xlu0 %v259, 108
      %v2620 = vpop.permute.xlu0 %2619
      %2621 = vrot.lane.b32.xlu0 %v260, 108
      %v2622 = vpop.permute.xlu0 %2621
      %2623 = vrot.lane.b32.xlu0 %v289, 108
      %v2624 = vpop.permute.xlu0 %2623
      %2625 = vrot.lane.b32.xlu0 %v261, 108
      %v2626 = vpop.permute.xlu0 %2625
      %2627 = vrot.lane.b32.xlu0 %v262, 108
      %v2628 = vpop.permute.xlu0 %2627
      %2629 = vrot.lane.b32.xlu0 %v263, 108
      %v2630 = vpop.permute.xlu0 %2629
      %2631 = vrot.lane.b32.xlu0 %v290, 108
      %v2632 = vpop.permute.xlu0 %2631
      %2633 = vrot.lane.b32.xlu0 %v264, 108
      %v2634 = vpop.permute.xlu0 %2633
      %2635 = vrot.lane.b32.xlu0 %v265, 108
      %v2636 = vpop.permute.xlu0 %2635
      %2637 = vrot.lane.b32.xlu0 %v266, 108
      %v2638 = vpop.permute.xlu0 %2637
      %2639 = vrot.lane.b32.xlu0 %v291, 108
      %v2640 = vpop.permute.xlu0 %2639
      %2641 = vrot.lane.b32.xlu0 %v267, 108
      %v2642 = vpop.permute.xlu0 %2641
      %2643 = vrot.lane.b32.xlu0 %v268, 108
      %v2644 = vpop.permute.xlu0 %2643
      %2645 = vrot.lane.b32.xlu0 %v269, 108
      %v2646 = vpop.permute.xlu0 %2645
      %2647 = vrot.lane.b32.xlu0 %v292, 108
      %v2648 = vpop.permute.xlu0 %2647
      %2649 = vrot.lane.b32.xlu0 %v270, 108
      %v2650 = vpop.permute.xlu0 %2649
      %2651 = vrot.lane.b32.xlu0 %v271, 108
      %v2652 = vpop.permute.xlu0 %2651
      %2653 = vrot.lane.b32.xlu0 %v272, 108
      %v2654 = vpop.permute.xlu0 %2653
      %2655 = vrot.lane.b32.xlu0 %v293, 108
      %v2656 = vpop.permute.xlu0 %2655
      %vm2657 = vcmask 883712
      %v2658 = vsel %vm2657, %v2618, %v2620
      %v2659 = vsel %vm2657, %v2620, %v2622
      %v2660 = vsel %vm2657, %v2622, %v2624
      %v2661 = vsel %vm2657, %v2626, %v2628
      %v2662 = vsel %vm2657, %v2628, %v2630
      %v2663 = vsel %vm2657, %v2630, %v2632
      %v2664 = vsel %vm2657, %v2634, %v2636
      %v2665 = vsel %vm2657, %v2636, %v2638
      %v2666 = vsel %vm2657, %v2638, %v2640
      %v2667 = vsel %vm2657, %v2642, %v2644
      %v2668 = vsel %vm2657, %v2644, %v2646
      %v2669 = vsel %vm2657, %v2646, %v2648
      %v2670 = vsel %vm2657, %v2650, %v2652
      %v2671 = vsel %vm2657, %v2652, %v2654
      %v2672 = vsel %vm2657, %v2654, %v2656
      %v2686 = vsel %vm399, %v2601, 0
      %v2689 = vsel %vm399, %v2602, 0
      %v2692 = vsel %vm399, %v2603, 0
      %v2695 = vsel %vm399, %v2604, 0
      %v2698 = vsel %vm399, %v2605, 0
      %v2701 = vsel %vm399, %v2606, 0
      %v2704 = vsel %vm399, %v2607, 0
      %v2707 = vsel %vm399, %v2608, 0
      %v2710 = vsel %vm399, %v2609, 0
      %v2713 = vsel %vm399, %v2610, 0
      %v2716 = vsel %vm399, %v2611, 0
      %v2719 = vsel %vm399, %v2612, 0
      %v2722 = vsel %vm399, %v2613, 0
      %v2725 = vsel %vm399, %v2614, 0
      %v2728 = vsel %vm399, %v2615, 0
      %v2731 = vsel %vm399, %v2616, 0
      %v2733 = vsel %vm448, %v2670, 0
      %v2735 = vsel %vm448, %v2671, 0
      %v2737 = vsel %vm448, %v2672, 0
      %2739 = vmatprep.subr.mxu0 %v2659
      %2740 = vmatpush1.msra.mxu0 %v2658
      %2741 = vmatprep.subr.mxu0 %v2662
      %2742 = vmatpush1.msra.mxu0 %v2661
      %2743 = vmatprep.subr.mxu0 %v2665
      %2744 = vmatpush1.msra.mxu0 %v2664
      %2745 = vmatprep.subr.mxu0 %v2668
      %2746 = vmatpush1.msra.mxu0 %v2667
      %2747 = vmatprep.subr.mxu0 %v2735
      %2748 = vmatpush1.msra.mxu0 %v2733
      %2749 = vmatprep.subr.mxu0 0.0
      %2750 = vmatpush1.msra.mxu0 0.0
      %2751 = vmatprep.subr.mxu0 0.0
      %2752 = vmatpush1.msra.mxu0 0.0
      %2753 = vmatprep.subr.mxu0 0.0
      %2754 = vmatpush1.msra.mxu0 0.0
      %2755 = vmatprep.subr.mxu0 0.0
      %2756 = vmatpush1.msra.mxu0 0.0
      %2757 = vmatprep.subr.mxu0 0.0
      %2758 = vmatpush1.msra.mxu0 0.0
      %2759 = vmatprep.subr.mxu0 0.0
      %2760 = vmatpush1.msra.mxu0 0.0
      %2761 = vmatprep.subr.mxu0 0.0
      %2762 = vmatpush1.msra.mxu0 0.0
      %2763 = vmatprep.subr.mxu0 0.0
      %2764 = vmatpush1.msra.mxu0 0.0
      %2765 = vmatprep.subr.mxu0 0.0
      %2766 = vmatpush1.msra.mxu0 0.0
      %2767 = vmatprep.subr.mxu0 0.0
      %2768 = vmatpush1.msra.mxu0 0.0
      %2769 = vmatprep.subr.mxu0 0.0
      %2770 = vmatpush1.msra.mxu0 0.0
      %2771 = vmatprep.subr.mxu0 0.0
      %2772 = vmatpush1.msra.mxu0 0.0
      %2773 = vmatprep.subr.mxu0 0.0
      %2774 = vmatpush1.msra.mxu0 0.0
      %2775 = vmatprep.subr.mxu0 0.0
      %2776 = vmatpush1.msra.mxu0 0.0
      %2777 = vmatprep.subr.mxu0 0.0
      %2778 = vmatpush1.msra.mxu0 0.0
      %2779 = vmatprep.subr.mxu0 0.0
      %2780 = vmatpush1.msra.mxu0 0.0
      %2781 = vmatprep.subr.mxu0 0.0
      %2782 = vmatpush1.msra.mxu0 0.0
      %2783 = vmatprep.subr.mxu0 0.0
      %2784 = vmatpush1.msra.mxu0 0.0
      %2785 = vmatprep.subr.mxu0 0.0
      %2786 = vmatpush1.msra.mxu0 0.0
      %2787 = vmatprep.subr.mxu0 0.0
      %2788 = vmatpush1.msra.mxu0 0.0
      %2789 = vmatprep.subr.mxu0 0.0
      %2790 = vmatpush1.msra.mxu0 0.0
      %2791 = vmatprep.subr.mxu0 0.0
      %2792 = vmatpush1.msra.mxu0 0.0
      %2793 = vmatprep.subr.mxu0 0.0
      %2794 = vmatpush1.msra.mxu0 0.0
      %2795 = vmatprep.subr.mxu0 0.0
      %2796 = vmatpush1.msra.mxu0 0.0
      %2797 = vmatprep.subr.mxu0 0.0
      %2798 = vmatpush1.msra.mxu0 0.0
      %2799 = vmatprep.subr.mxu0 0.0
      %2800 = vmatpush1.msra.mxu0 0.0
      %2801 = vmatprep.subr.mxu0 0.0
      %2802 = vmatpush1.msra.mxu0 0.0
      %2803 = vmatprep.mubr.f32.mxu0 0.0
      %2804 = vmatmul.mubr.f32.gmra.mrb[0].mxu0 %v2686
      %v2805 = vpop.f32.mrb[0].mxu0
      %v2806 = vadd.f32 0.0, %v2805
      %v2807 = vpop.f32.mrb[0].mxu0
      %v2808 = vadd.f32 0.0, %v2807
      %2809 = vmatprep.mubr.f32.mxu0 0.0
      %2810 = vmatmul.mubr.f32.gmra.mrb[0].mxu0 %v2689
      %v2811 = vpop.f32.mrb[0].mxu0
      %v2812 = vadd.f32 0.0, %v2811
      %v2813 = vpop.f32.mrb[0].mxu0
      %v2814 = vadd.f32 0.0, %v2813
      %2815 = vmatprep.mubr.f32.mxu0 0.0
      %2816 = vmatmul.mubr.f32.gmra.mrb[0].mxu0 %v2692
      %v2817 = vpop.f32.mrb[0].mxu0
      %v2818 = vadd.f32 0.0, %v2817
      %v2819 = vpop.f32.mrb[0].mxu0
      %v2820 = vadd.f32 0.0, %v2819
      %2821 = vmatprep.mubr.f32.mxu0 0.0
      %2822 = vmatmul.mubr.f32.gmra.mrb[0].mxu0 %v2695
      %v2823 = vpop.f32.mrb[0].mxu0
      %v2824 = vadd.f32 0.0, %v2823
      %v2825 = vpop.f32.mrb[0].mxu0
      %v2826 = vadd.f32 0.0, %v2825
      %2827 = vmatprep.mubr.f32.mxu0 0.0
      %2828 = vmatmul.mubr.f32.gmra.mrb[0].mxu0 %v2698
      %v2829 = vpop.f32.mrb[0].mxu0
      %v2830 = vadd.f32 0.0, %v2829
      %v2831 = vpop.f32.mrb[0].mxu0
      %v2832 = vadd.f32 0.0, %v2831
      %2833 = vmatprep.mubr.f32.mxu0 0.0
      %2834 = vmatmul.mubr.f32.gmra.mrb[0].mxu0 %v2701
      %v2835 = vpop.f32.mrb[0].mxu0
      %v2836 = vadd.f32 0.0, %v2835
      %v2837 = vpop.f32.mrb[0].mxu0
      %v2838 = vadd.f32 0.0, %v2837
      %2839 = vmatprep.mubr.f32.mxu0 0.0
      %2840 = vmatmul.mubr.f32.gmra.mrb[0].mxu0 %v2704
      %v2841 = vpop.f32.mrb[0].mxu0
      %v2842 = vadd.f32 0.0, %v2841
      %v2843 = vpop.f32.mrb[0].mxu0
      %v2844 = vadd.f32 0.0, %v2843
      %2845 = vmatprep.mubr.f32.mxu0 0.0
      %2846 = vmatmul.mubr.f32.gmra.mrb[0].mxu0 %v2707
      %v2847 = vpop.f32.mrb[0].mxu0
      %v2848 = vadd.f32 0.0, %v2847
      %v2849 = vpop.f32.mrb[0].mxu0
      %v2850 = vadd.f32 0.0, %v2849
      %2851 = vmatprep.mubr.f32.mxu0 0.0
      %2852 = vmatmul.mubr.f32.gmra.mrb[0].mxu0 %v2710
      %v2853 = vpop.f32.mrb[0].mxu0
      %v2854 = vadd.f32 0.0, %v2853
      %v2855 = vpop.f32.mrb[0].mxu0
      %v2856 = vadd.f32 0.0, %v2855
      %2857 = vmatprep.mubr.f32.mxu0 0.0
      %2858 = vmatmul.mubr.f32.gmra.mrb[0].mxu0 %v2713
      %v2859 = vpop.f32.mrb[0].mxu0
      %v2860 = vadd.f32 0.0, %v2859
      %v2861 = vpop.f32.mrb[0].mxu0
      %v2862 = vadd.f32 0.0, %v2861
      %2863 = vmatprep.mubr.f32.mxu0 0.0
      %2864 = vmatmul.mubr.f32.gmra.mrb[0].mxu0 %v2716
      %v2865 = vpop.f32.mrb[0].mxu0
      %v2866 = vadd.f32 0.0, %v2865
      %v2867 = vpop.f32.mrb[0].mxu0
      %v2868 = vadd.f32 0.0, %v2867
      %2869 = vmatprep.mubr.f32.mxu0 0.0
      %2870 = vmatmul.mubr.f32.gmra.mrb[0].mxu0 %v2719
      %v2871 = vpop.f32.mrb[0].mxu0
      %v2872 = vadd.f32 0.0, %v2871
      %v2873 = vpop.f32.mrb[0].mxu0
      %v2874 = vadd.f32 0.0, %v2873
      %2875 = vmatprep.mubr.f32.mxu0 0.0
      %2876 = vmatmul.mubr.f32.gmra.mrb[0].mxu0 %v2722
      %v2877 = vpop.f32.mrb[0].mxu0
      %v2878 = vadd.f32 0.0, %v2877
      %v2879 = vpop.f32.mrb[0].mxu0
      %v2880 = vadd.f32 0.0, %v2879
      %2881 = vmatprep.mubr.f32.mxu0 0.0
      %2882 = vmatmul.mubr.f32.gmra.mrb[0].mxu0 %v2725
      %v2883 = vpop.f32.mrb[0].mxu0
      %v2884 = vadd.f32 0.0, %v2883
      %v2885 = vpop.f32.mrb[0].mxu0
      %v2886 = vadd.f32 0.0, %v2885
      %2887 = vmatprep.mubr.f32.mxu0 0.0
      %2888 = vmatmul.mubr.f32.gmra.mrb[0].mxu0 %v2728
      %v2889 = vpop.f32.mrb[0].mxu0
      %v2890 = vadd.f32 0.0, %v2889
      %v2891 = vpop.f32.mrb[0].mxu0
      %v2892 = vadd.f32 0.0, %v2891
      %2893 = vmatprep.mubr.f32.mxu0 0.0
      %2894 = vmatmul.mubr.f32.gmra.mrb[0].mxu0 %v2731
      %v2895 = vpop.f32.mrb[0].mxu0
      %v2896 = vadd.f32 0.0, %v2895
      %v2897 = vpop.f32.mrb[0].mxu0
      %v2898 = vadd.f32 0.0, %v2897
      %2899 = vdwg.mxu0
      %2900 = vmatprep.subr.mxu0 0.0
      %2901 = vmatpush1.msra.mxu0 %v2660
      %2902 = vmatprep.subr.mxu0 0.0
      %2903 = vmatpush1.msra.mxu0 %v2663
      %2904 = vmatprep.subr.mxu0 0.0
      %2905 = vmatpush1.msra.mxu0 %v2666
      %2906 = vmatprep.subr.mxu0 0.0
      %2907 = vmatpush1.msra.mxu0 %v2669
      %2908 = vmatprep.subr.mxu0 0.0
      %2909 = vmatpush1.msra.mxu0 %v2737
      %2910 = vmatprep.subr.mxu0 0.0
      %2911 = vmatpush1.msra.mxu0 0.0
      %2912 = vmatprep.subr.mxu0 0.0
      %2913 = vmatpush1.msra.mxu0 0.0
      %2914 = vmatprep.subr.mxu0 0.0
      %2915 = vmatpush1.msra.mxu0 0.0
      %2916 = vmatprep.subr.mxu0 0.0
      %2917 = vmatpush1.msra.mxu0 0.0
      %2918 = vmatprep.subr.mxu0 0.0
      %2919 = vmatpush1.msra.mxu0 0.0
      %2920 = vmatprep.subr.mxu0 0.0
      %2921 = vmatpush1.msra.mxu0 0.0
      %2922 = vmatprep.subr.mxu0 0.0
      %2923 = vmatpush1.msra.mxu0 0.0
      %2924 = vmatprep.subr.mxu0 0.0
      %2925 = vmatpush1.msra.mxu0 0.0
      %2926 = vmatprep.subr.mxu0 0.0
      %2927 = vmatpush1.msra.mxu0 0.0
      %2928 = vmatprep.subr.mxu0 0.0
      %2929 = vmatpush1.msra.mxu0 0.0
      %2930 = vmatprep.subr.mxu0 0.0
      %2931 = vmatpush1.msra.mxu0 0.0
      %2932 = vmatprep.subr.mxu0 0.0
      %2933 = vmatpush1.msra.mxu0 0.0
      %2934 = vmatprep.subr.mxu0 0.0
      %2935 = vmatpush1.msra.mxu0 0.0
      %2936 = vmatprep.subr.mxu0 0.0
      %2937 = vmatpush1.msra.mxu0 0.0
      %2938 = vmatprep.subr.mxu0 0.0
      %2939 = vmatpush1.msra.mxu0 0.0
      %2940 = vmatprep.subr.mxu0 0.0
      %2941 = vmatpush1.msra.mxu0 0.0
      %2942 = vmatprep.subr.mxu0 0.0
      %2943 = vmatpush1.msra.mxu0 0.0
      %2944 = vmatprep.subr.mxu0 0.0
      %2945 = vmatpush1.msra.mxu0 0.0
      %2946 = vmatprep.subr.mxu0 0.0
      %2947 = vmatpush1.msra.mxu0 0.0
      %2948 = vmatprep.subr.mxu0 0.0
      %2949 = vmatpush1.msra.mxu0 0.0
      %2950 = vmatprep.subr.mxu0 0.0
      %2951 = vmatpush1.msra.mxu0 0.0
      %2952 = vmatprep.subr.mxu0 0.0
      %2953 = vmatpush1.msra.mxu0 0.0
      %2954 = vmatprep.subr.mxu0 0.0
      %2955 = vmatpush1.msra.mxu0 0.0
      %2956 = vmatprep.subr.mxu0 0.0
      %2957 = vmatpush1.msra.mxu0 0.0
      %2958 = vmatprep.subr.mxu0 0.0
      %2959 = vmatpush1.msra.mxu0 0.0
      %2960 = vmatprep.subr.mxu0 0.0
      %2961 = vmatpush1.msra.mxu0 0.0
      %2962 = vmatprep.subr.mxu0 0.0
      %2963 = vmatpush1.msra.mxu0 0.0
      %2964 = vmatprep.mubr.f32.mxu0 0.0
      %2965 = vmatmul.mubr.f32.gmra.mrb[0].mxu0 %v2686
      %v2966 = vpop.f32.mrb[0].mxu0
      %v2967 = vadd.f32 0.0, %v2966
      %v2968 = vpop.f32.mrb[0].mxu0
      %2969 = vmatprep.mubr.f32.mxu0 0.0
      %2970 = vmatmul.mubr.f32.gmra.mrb[0].mxu0 %v2689
      %v2971 = vpop.f32.mrb[0].mxu0
      %v2972 = vadd.f32 0.0, %v2971
      %v2973 = vpop.f32.mrb[0].mxu0
      %2974 = vmatprep.mubr.f32.mxu0 0.0
      %2975 = vmatmul.mubr.f32.gmra.mrb[0].mxu0 %v2692
      %v2976 = vpop.f32.mrb[0].mxu0
      %v2977 = vadd.f32 0.0, %v2976
      %v2978 = vpop.f32.mrb[0].mxu0
      %2979 = vmatprep.mubr.f32.mxu0 0.0
      %2980 = vmatmul.mubr.f32.gmra.mrb[0].mxu0 %v2695
      %v2981 = vpop.f32.mrb[0].mxu0
      %v2982 = vadd.f32 0.0, %v2981
      %v2983 = vpop.f32.mrb[0].mxu0
      %2984 = vmatprep.mubr.f32.mxu0 0.0
      %2985 = vmatmul.mubr.f32.gmra.mrb[0].mxu0 %v2698
      %v2986 = vpop.f32.mrb[0].mxu0
      %v2987 = vadd.f32 0.0, %v2986
      %v2988 = vpop.f32.mrb[0].mxu0
      %2989 = vmatprep.mubr.f32.mxu0 0.0
      %2990 = vmatmul.mubr.f32.gmra.mrb[0].mxu0 %v2701
      %v2991 = vpop.f32.mrb[0].mxu0
      %v2992 = vadd.f32 0.0, %v2991
      %v2993 = vpop.f32.mrb[0].mxu0
      %2994 = vmatprep.mubr.f32.mxu0 0.0
      %2995 = vmatmul.mubr.f32.gmra.mrb[0].mxu0 %v2704
      %v2996 = vpop.f32.mrb[0].mxu0
      %v2997 = vadd.f32 0.0, %v2996
      %v2998 = vpop.f32.mrb[0].mxu0
      %2999 = vmatprep.mubr.f32.mxu0 0.0
      %3000 = vmatmul.mubr.f32.gmra.mrb[0].mxu0 %v2707
      %v3001 = vpop.f32.mrb[0].mxu0
      %v3002 = vadd.f32 0.0, %v3001
      %v3003 = vpop.f32.mrb[0].mxu0
      %3004 = vmatprep.mubr.f32.mxu0 0.0
      %3005 = vmatmul.mubr.f32.gmra.mrb[0].mxu0 %v2710
      %v3006 = vpop.f32.mrb[0].mxu0
      %v3007 = vadd.f32 0.0, %v3006
      %v3008 = vpop.f32.mrb[0].mxu0
      %3009 = vmatprep.mubr.f32.mxu0 0.0
      %3010 = vmatmul.mubr.f32.gmra.mrb[0].mxu0 %v2713
      %v3011 = vpop.f32.mrb[0].mxu0
      %v3012 = vadd.f32 0.0, %v3011
      %v3013 = vpop.f32.mrb[0].mxu0
      %3014 = vmatprep.mubr.f32.mxu0 0.0
      %3015 = vmatmul.mubr.f32.gmra.mrb[0].mxu0 %v2716
      %v3016 = vpop.f32.mrb[0].mxu0
      %v3017 = vadd.f32 0.0, %v3016
      %v3018 = vpop.f32.mrb[0].mxu0
      %3019 = vmatprep.mubr.f32.mxu0 0.0
      %3020 = vmatmul.mubr.f32.gmra.mrb[0].mxu0 %v2719
      %v3021 = vpop.f32.mrb[0].mxu0
      %v3022 = vadd.f32 0.0, %v3021
      %v3023 = vpop.f32.mrb[0].mxu0
      %3024 = vmatprep.mubr.f32.mxu0 0.0
      %3025 = vmatmul.mubr.f32.gmra.mrb[0].mxu0 %v2722
      %v3026 = vpop.f32.mrb[0].mxu0
      %v3027 = vadd.f32 0.0, %v3026
      %v3028 = vpop.f32.mrb[0].mxu0
      %3029 = vmatprep.mubr.f32.mxu0 0.0
      %3030 = vmatmul.mubr.f32.gmra.mrb[0].mxu0 %v2725
      %v3031 = vpop.f32.mrb[0].mxu0
      %v3032 = vadd.f32 0.0, %v3031
      %v3033 = vpop.f32.mrb[0].mxu0
      %3034 = vmatprep.mubr.f32.mxu0 0.0
      %3035 = vmatmul.mubr.f32.gmra.mrb[0].mxu0 %v2728
      %v3036 = vpop.f32.mrb[0].mxu0
      %v3037 = vadd.f32 0.0, %v3036
      %v3038 = vpop.f32.mrb[0].mxu0
      %3039 = vmatprep.mubr.f32.mxu0 0.0
      %3040 = vmatmul.mubr.f32.gmra.mrb[0].mxu0 %v2731
      %v3041 = vpop.f32.mrb[0].mxu0
      %v3042 = vadd.f32 0.0, %v3041
      %v3043 = vpop.f32.mrb[0].mxu0
      %3044 = vdwg.mxu0
      %v3045 = vadd.f32 %v2552, %v2806
      %v3046 = vadd.f32 %v2553, %v2808
      %v3047 = vadd.f32 %v2554, %v2967
      %v3048 = vadd.f32 %v2555, %v2812
      %v3049 = vadd.f32 %v2556, %v2814
      %v3050 = vadd.f32 %v2557, %v2972
      %v3051 = vadd.f32 %v2558, %v2818
      %v3052 = vadd.f32 %v2559, %v2820
      %v3053 = vadd.f32 %v2560, %v2977
      %v3054 = vadd.f32 %v2561, %v2824
      %v3055 = vadd.f32 %v2562, %v2826
      %v3056 = vadd.f32 %v2563, %v2982
      %v3057 = vadd.f32 %v2564, %v2830
      %v3058 = vadd.f32 %v2565, %v2832
      %v3059 = vadd.f32 %v2566, %v2987
      %v3060 = vadd.f32 %v2567, %v2836
      %v3061 = vadd.f32 %v2568, %v2838
      %v3062 = vadd.f32 %v2569, %v2992
      %v3063 = vadd.f32 %v2570, %v2842
      %v3064 = vadd.f32 %v2571, %v2844
      %v3065 = vadd.f32 %v2572, %v2997
      %v3066 = vadd.f32 %v2573, %v2848
      %v3067 = vadd.f32 %v2574, %v2850
      %v3068 = vadd.f32 %v2575, %v3002
      %v3069 = vadd.f32 %v2576, %v2854
      %v3070 = vadd.f32 %v2577, %v2856
      %v3071 = vadd.f32 %v2578, %v3007
      %v3072 = vadd.f32 %v2579, %v2860
      %v3073 = vadd.f32 %v2580, %v2862
      %v3074 = vadd.f32 %v2581, %v3012
      %v3075 = vadd.f32 %v2582, %v2866
      %v3076 = vadd.f32 %v2583, %v2868
      %v3077 = vadd.f32 %v2584, %v3017
      %v3078 = vadd.f32 %v2585, %v2872
      %v3079 = vadd.f32 %v2586, %v2874
      %v3080 = vadd.f32 %v2587, %v3022
      %v3081 = vadd.f32 %v2588, %v2878
      %v3082 = vadd.f32 %v2589, %v2880
      %v3083 = vadd.f32 %v2590, %v3027
      %v3084 = vadd.f32 %v2591, %v2884
      %v3085 = vadd.f32 %v2592, %v2886
      %v3086 = vadd.f32 %v2593, %v3032
      %v3087 = vadd.f32 %v2594, %v2890
      %v3088 = vadd.f32 %v2595, %v2892
      %v3089 = vadd.f32 %v2596, %v3037
      %v3090 = vadd.f32 %v2597, %v2896
      %v3091 = vadd.f32 %v2598, %v2898
      %v3092 = vadd.f32 %v2599, %v3042
      %s3093 = scalar_lea.vmem %s1, 768
      %v3094 = vld [vmem:[%s3093] sm:$0xff]
      %v3095 = vld [vmem:[%s3093 + $0x8] sm:$0xff]
      %v3096 = vld [vmem:[%s3093 + $0x10] sm:$0xff]
      %v3097 = vld [vmem:[%s3093 + $0x18] sm:$0xff]
      %v3098 = vld [vmem:[%s3093 + $0x20] sm:$0xff]
      %v3099 = vld [vmem:[%s3093 + $0x28] sm:$0xff]
      %v3100 = vld [vmem:[%s3093 + $0x30] sm:$0xff]
      %v3101 = vld [vmem:[%s3093 + $0x38] sm:$0xff]
      %v3102 = vld [vmem:[%s3093 + $0x40] sm:$0xff]
      %v3103 = vld [vmem:[%s3093 + $0x48] sm:$0xff]
      %v3104 = vld [vmem:[%s3093 + $0x50] sm:$0xff]
      %v3105 = vld [vmem:[%s3093 + $0x58] sm:$0xff]
      %v3106 = vld [vmem:[%s3093 + $0x60] sm:$0xff]
      %v3107 = vld [vmem:[%s3093 + $0x68] sm:$0xff]
      %v3108 = vld [vmem:[%s3093 + $0x70] sm:$0xff]
      %v3109 = vld [vmem:[%s3093 + $0x78] sm:$0xff]
      %3110 = vrot.lane.b32.xlu0 %v258, 92
      %v3111 = vpop.permute.xlu0 %3110
      %3112 = vrot.lane.b32.xlu0 %v259, 92
      %v3113 = vpop.permute.xlu0 %3112
      %3114 = vrot.lane.b32.xlu0 %v260, 92
      %v3115 = vpop.permute.xlu0 %3114
      %3116 = vrot.lane.b32.xlu0 %v289, 92
      %v3117 = vpop.permute.xlu0 %3116
      %3118 = vrot.lane.b32.xlu0 %v261, 92
      %v3119 = vpop.permute.xlu0 %3118
      %3120 = vrot.lane.b32.xlu0 %v262, 92
      %v3121 = vpop.permute.xlu0 %3120
      %3122 = vrot.lane.b32.xlu0 %v263, 92
      %v3123 = vpop.permute.xlu0 %3122
      %3124 = vrot.lane.b32.xlu0 %v290, 92
      %v3125 = vpop.permute.xlu0 %3124
      %3126 = vrot.lane.b32.xlu0 %v264, 92
      %v3127 = vpop.permute.xlu0 %3126
      %3128 = vrot.lane.b32.xlu0 %v265, 92
      %v3129 = vpop.permute.xlu0 %3128
      %3130 = vrot.lane.b32.xlu0 %v266, 92
      %v3131 = vpop.permute.xlu0 %3130
      %3132 = vrot.lane.b32.xlu0 %v291, 92
      %v3133 = vpop.permute.xlu0 %3132
      %3134 = vrot.lane.b32.xlu0 %v267, 92
      %v3135 = vpop.permute.xlu0 %3134
      %3136 = vrot.lane.b32.xlu0 %v268, 92
      %v3137 = vpop.permute.xlu0 %3136
      %3138 = vrot.lane.b32.xlu0 %v269, 92
      %v3139 = vpop.permute.xlu0 %3138
      %3140 = vrot.lane.b32.xlu0 %v292, 92
      %v3141 = vpop.permute.xlu0 %3140
      %3142 = vrot.lane.b32.xlu0 %v270, 92
      %v3143 = vpop.permute.xlu0 %3142
      %3144 = vrot.lane.b32.xlu0 %v271, 92
      %v3145 = vpop.permute.xlu0 %3144
      %3146 = vrot.lane.b32.xlu0 %v272, 92
      %v3147 = vpop.permute.xlu0 %3146
      %3148 = vrot.lane.b32.xlu0 %v293, 92
      %v3149 = vpop.permute.xlu0 %3148
      %vm3150 = vcmask 752640
      %v3151 = vsel %vm3150, %v3111, %v3113
      %v3152 = vsel %vm3150, %v3113, %v3115
      %v3153 = vsel %vm3150, %v3115, %v3117
      %v3154 = vsel %vm3150, %v3119, %v3121
      %v3155 = vsel %vm3150, %v3121, %v3123
      %v3156 = vsel %vm3150, %v3123, %v3125
      %v3157 = vsel %vm3150, %v3127, %v3129
      %v3158 = vsel %vm3150, %v3129, %v3131
      %v3159 = vsel %vm3150, %v3131, %v3133
      %v3160 = vsel %vm3150, %v3135, %v3137
      %v3161 = vsel %vm3150, %v3137, %v3139
      %v3162 = vsel %vm3150, %v3139, %v3141
      %v3163 = vsel %vm3150, %v3143, %v3145
      %v3164 = vsel %vm3150, %v3145, %v3147
      %v3165 = vsel %vm3150, %v3147, %v3149
      %v3179 = vsel %vm399, %v3094, 0
      %v3182 = vsel %vm399, %v3095, 0
      %v3185 = vsel %vm399, %v3096, 0
      %v3188 = vsel %vm399, %v3097, 0
      %v3191 = vsel %vm399, %v3098, 0
      %v3194 = vsel %vm399, %v3099, 0
      %v3197 = vsel %vm399, %v3100, 0
      %v3200 = vsel %vm399, %v3101, 0
      %v3203 = vsel %vm399, %v3102, 0
      %v3206 = vsel %vm399, %v3103, 0
      %v3209 = vsel %vm399, %v3104, 0
      %v3212 = vsel %vm399, %v3105, 0
      %v3215 = vsel %vm399, %v3106, 0
      %v3218 = vsel %vm399, %v3107, 0
      %v3221 = vsel %vm399, %v3108, 0
      %v3224 = vsel %vm399, %v3109, 0
      %v3226 = vsel %vm448, %v3163, 0
      %v3228 = vsel %vm448, %v3164, 0
      %v3230 = vsel %vm448, %v3165, 0
      %3232 = vmatprep.subr.mxu0 %v3152
      %3233 = vmatpush1.msra.mxu0 %v3151
      %3234 = vmatprep.subr.mxu0 %v3155
      %3235 = vmatpush1.msra.mxu0 %v3154
      %3236 = vmatprep.subr.mxu0 %v3158
      %3237 = vmatpush1.msra.mxu0 %v3157
      %3238 = vmatprep.subr.mxu0 %v3161
      %3239 = vmatpush1.msra.mxu0 %v3160
      %3240 = vmatprep.subr.mxu0 %v3228
      %3241 = vmatpush1.msra.mxu0 %v3226
      %3242 = vmatprep.subr.mxu0 0.0
      %3243 = vmatpush1.msra.mxu0 0.0
      %3244 = vmatprep.subr.mxu0 0.0
      %3245 = vmatpush1.msra.mxu0 0.0
      %3246 = vmatprep.subr.mxu0 0.0
      %3247 = vmatpush1.msra.mxu0 0.0
      %3248 = vmatprep.subr.mxu0 0.0
      %3249 = vmatpush1.msra.mxu0 0.0
      %3250 = vmatprep.subr.mxu0 0.0
      %3251 = vmatpush1.msra.mxu0 0.0
      %3252 = vmatprep.subr.mxu0 0.0
      %3253 = vmatpush1.msra.mxu0 0.0
      %3254 = vmatprep.subr.mxu0 0.0
      %3255 = vmatpush1.msra.mxu0 0.0
      %3256 = vmatprep.subr.mxu0 0.0
      %3257 = vmatpush1.msra.mxu0 0.0
      %3258 = vmatprep.subr.mxu0 0.0
      %3259 = vmatpush1.msra.mxu0 0.0
      %3260 = vmatprep.subr.mxu0 0.0
      %3261 = vmatpush1.msra.mxu0 0.0
      %3262 = vmatprep.subr.mxu0 0.0
      %3263 = vmatpush1.msra.mxu0 0.0
      %3264 = vmatprep.subr.mxu0 0.0
      %3265 = vmatpush1.msra.mxu0 0.0
      %3266 = vmatprep.subr.mxu0 0.0
      %3267 = vmatpush1.msra.mxu0 0.0
      %3268 = vmatprep.subr.mxu0 0.0
      %3269 = vmatpush1.msra.mxu0 0.0
      %3270 = vmatprep.subr.mxu0 0.0
      %3271 = vmatpush1.msra.mxu0 0.0
      %3272 = vmatprep.subr.mxu0 0.0
      %3273 = vmatpush1.msra.mxu0 0.0
      %3274 = vmatprep.subr.mxu0 0.0
      %3275 = vmatpush1.msra.mxu0 0.0
      %3276 = vmatprep.subr.mxu0 0.0
      %3277 = vmatpush1.msra.mxu0 0.0
      %3278 = vmatprep.subr.mxu0 0.0
      %3279 = vmatpush1.msra.mxu0 0.0
      %3280 = vmatprep.subr.mxu0 0.0
      %3281 = vmatpush1.msra.mxu0 0.0
      %3282 = vmatprep.subr.mxu0 0.0
      %3283 = vmatpush1.msra.mxu0 0.0
      %3284 = vmatprep.subr.mxu0 0.0
      %3285 = vmatpush1.msra.mxu0 0.0
      %3286 = vmatprep.subr.mxu0 0.0
      %3287 = vmatpush1.msra.mxu0 0.0
      %3288 = vmatprep.subr.mxu0 0.0
      %3289 = vmatpush1.msra.mxu0 0.0
      %3290 = vmatprep.subr.mxu0 0.0
      %3291 = vmatpush1.msra.mxu0 0.0
      %3292 = vmatprep.subr.mxu0 0.0
      %3293 = vmatpush1.msra.mxu0 0.0
      %3294 = vmatprep.subr.mxu0 0.0
      %3295 = vmatpush1.msra.mxu0 0.0
      %3296 = vmatprep.mubr.f32.mxu0 0.0
      %3297 = vmatmul.mubr.f32.gmra.mrb[0].mxu0 %v3179
      %v3298 = vpop.f32.mrb[0].mxu0
      %v3299 = vadd.f32 0.0, %v3298
      %v3300 = vpop.f32.mrb[0].mxu0
      %v3301 = vadd.f32 0.0, %v3300
      %3302 = vmatprep.mubr.f32.mxu0 0.0
      %3303 = vmatmul.mubr.f32.gmra.mrb[0].mxu0 %v3182
      %v3304 = vpop.f32.mrb[0].mxu0
      %v3305 = vadd.f32 0.0, %v3304
      %v3306 = vpop.f32.mrb[0].mxu0
      %v3307 = vadd.f32 0.0, %v3306
      %3308 = vmatprep.mubr.f32.mxu0 0.0
      %3309 = vmatmul.mubr.f32.gmra.mrb[0].mxu0 %v3185
      %v3310 = vpop.f32.mrb[0].mxu0
      %v3311 = vadd.f32 0.0, %v3310
      %v3312 = vpop.f32.mrb[0].mxu0
      %v3313 = vadd.f32 0.0, %v3312
      %3314 = vmatprep.mubr.f32.mxu0 0.0
      %3315 = vmatmul.mubr.f32.gmra.mrb[0].mxu0 %v3188
      %v3316 = vpop.f32.mrb[0].mxu0
      %v3317 = vadd.f32 0.0, %v3316
      %v3318 = vpop.f32.mrb[0].mxu0
      %v3319 = vadd.f32 0.0, %v3318
      %3320 = vmatprep.mubr.f32.mxu0 0.0
      %3321 = vmatmul.mubr.f32.gmra.mrb[0].mxu0 %v3191
      %v3322 = vpop.f32.mrb[0].mxu0
      %v3323 = vadd.f32 0.0, %v3322
      %v3324 = vpop.f32.mrb[0].mxu0
      %v3325 = vadd.f32 0.0, %v3324
      %3326 = vmatprep.mubr.f32.mxu0 0.0
      %3327 = vmatmul.mubr.f32.gmra.mrb[0].mxu0 %v3194
      %v3328 = vpop.f32.mrb[0].mxu0
      %v3329 = vadd.f32 0.0, %v3328
      %v3330 = vpop.f32.mrb[0].mxu0
      %v3331 = vadd.f32 0.0, %v3330
      %3332 = vmatprep.mubr.f32.mxu0 0.0
      %3333 = vmatmul.mubr.f32.gmra.mrb[0].mxu0 %v3197
      %v3334 = vpop.f32.mrb[0].mxu0
      %v3335 = vadd.f32 0.0, %v3334
      %v3336 = vpop.f32.mrb[0].mxu0
      %v3337 = vadd.f32 0.0, %v3336
      %3338 = vmatprep.mubr.f32.mxu0 0.0
      %3339 = vmatmul.mubr.f32.gmra.mrb[0].mxu0 %v3200
      %v3340 = vpop.f32.mrb[0].mxu0
      %v3341 = vadd.f32 0.0, %v3340
      %v3342 = vpop.f32.mrb[0].mxu0
      %v3343 = vadd.f32 0.0, %v3342
      %3344 = vmatprep.mubr.f32.mxu0 0.0
      %3345 = vmatmul.mubr.f32.gmra.mrb[0].mxu0 %v3203
      %v3346 = vpop.f32.mrb[0].mxu0
      %v3347 = vadd.f32 0.0, %v3346
      %v3348 = vpop.f32.mrb[0].mxu0
      %v3349 = vadd.f32 0.0, %v3348
      %3350 = vmatprep.mubr.f32.mxu0 0.0
      %3351 = vmatmul.mubr.f32.gmra.mrb[0].mxu0 %v3206
      %v3352 = vpop.f32.mrb[0].mxu0
      %v3353 = vadd.f32 0.0, %v3352
      %v3354 = vpop.f32.mrb[0].mxu0
      %v3355 = vadd.f32 0.0, %v3354
      %3356 = vmatprep.mubr.f32.mxu0 0.0
      %3357 = vmatmul.mubr.f32.gmra.mrb[0].mxu0 %v3209
      %v3358 = vpop.f32.mrb[0].mxu0
      %v3359 = vadd.f32 0.0, %v3358
      %v3360 = vpop.f32.mrb[0].mxu0
      %v3361 = vadd.f32 0.0, %v3360
      %3362 = vmatprep.mubr.f32.mxu0 0.0
      %3363 = vmatmul.mubr.f32.gmra.mrb[0].mxu0 %v3212
      %v3364 = vpop.f32.mrb[0].mxu0
      %v3365 = vadd.f32 0.0, %v3364
      %v3366 = vpop.f32.mrb[0].mxu0
      %v3367 = vadd.f32 0.0, %v3366
      %3368 = vmatprep.mubr.f32.mxu0 0.0
      %3369 = vmatmul.mubr.f32.gmra.mrb[0].mxu0 %v3215
      %v3370 = vpop.f32.mrb[0].mxu0
      %v3371 = vadd.f32 0.0, %v3370
      %v3372 = vpop.f32.mrb[0].mxu0
      %v3373 = vadd.f32 0.0, %v3372
      %3374 = vmatprep.mubr.f32.mxu0 0.0
      %3375 = vmatmul.mubr.f32.gmra.mrb[0].mxu0 %v3218
      %v3376 = vpop.f32.mrb[0].mxu0
      %v3377 = vadd.f32 0.0, %v3376
      %v3378 = vpop.f32.mrb[0].mxu0
      %v3379 = vadd.f32 0.0, %v3378
      %3380 = vmatprep.mubr.f32.mxu0 0.0
      %3381 = vmatmul.mubr.f32.gmra.mrb[0].mxu0 %v3221
      %v3382 = vpop.f32.mrb[0].mxu0
      %v3383 = vadd.f32 0.0, %v3382
      %v3384 = vpop.f32.mrb[0].mxu0
      %v3385 = vadd.f32 0.0, %v3384
      %3386 = vmatprep.mubr.f32.mxu0 0.0
      %3387 = vmatmul.mubr.f32.gmra.mrb[0].mxu0 %v3224
      %v3388 = vpop.f32.mrb[0].mxu0
      %v3389 = vadd.f32 0.0, %v3388
      %v3390 = vpop.f32.mrb[0].mxu0
      %v3391 = vadd.f32 0.0, %v3390
      %3392 = vdwg.mxu0
      %3393 = vmatprep.subr.mxu0 0.0
      %3394 = vmatpush1.msra.mxu0 %v3153
      %3395 = vmatprep.subr.mxu0 0.0
      %3396 = vmatpush1.msra.mxu0 %v3156
      %3397 = vmatprep.subr.mxu0 0.0
      %3398 = vmatpush1.msra.mxu0 %v3159
      %3399 = vmatprep.subr.mxu0 0.0
      %3400 = vmatpush1.msra.mxu0 %v3162
      %3401 = vmatprep.subr.mxu0 0.0
      %3402 = vmatpush1.msra.mxu0 %v3230
      %3403 = vmatprep.subr.mxu0 0.0
      %3404 = vmatpush1.msra.mxu0 0.0
      %3405 = vmatprep.subr.mxu0 0.0
      %3406 = vmatpush1.msra.mxu0 0.0
      %3407 = vmatprep.subr.mxu0 0.0
      %3408 = vmatpush1.msra.mxu0 0.0
      %3409 = vmatprep.subr.mxu0 0.0
      %3410 = vmatpush1.msra.mxu0 0.0
      %3411 = vmatprep.subr.mxu0 0.0
      %3412 = vmatpush1.msra.mxu0 0.0
      %3413 = vmatprep.subr.mxu0 0.0
      %3414 = vmatpush1.msra.mxu0 0.0
      %3415 = vmatprep.subr.mxu0 0.0
      %3416 = vmatpush1.msra.mxu0 0.0
      %3417 = vmatprep.subr.mxu0 0.0
      %3418 = vmatpush1.msra.mxu0 0.0
      %3419 = vmatprep.subr.mxu0 0.0
      %3420 = vmatpush1.msra.mxu0 0.0
      %3421 = vmatprep.subr.mxu0 0.0
      %3422 = vmatpush1.msra.mxu0 0.0
      %3423 = vmatprep.subr.mxu0 0.0
      %3424 = vmatpush1.msra.mxu0 0.0
      %3425 = vmatprep.subr.mxu0 0.0
      %3426 = vmatpush1.msra.mxu0 0.0
      %3427 = vmatprep.subr.mxu0 0.0
      %3428 = vmatpush1.msra.mxu0 0.0
      %3429 = vmatprep.subr.mxu0 0.0
      %3430 = vmatpush1.msra.mxu0 0.0
      %3431 = vmatprep.subr.mxu0 0.0
      %3432 = vmatpush1.msra.mxu0 0.0
      %3433 = vmatprep.subr.mxu0 0.0
      %3434 = vmatpush1.msra.mxu0 0.0
      %3435 = vmatprep.subr.mxu0 0.0
      %3436 = vmatpush1.msra.mxu0 0.0
      %3437 = vmatprep.subr.mxu0 0.0
      %3438 = vmatpush1.msra.mxu0 0.0
      %3439 = vmatprep.subr.mxu0 0.0
      %3440 = vmatpush1.msra.mxu0 0.0
      %3441 = vmatprep.subr.mxu0 0.0
      %3442 = vmatpush1.msra.mxu0 0.0
      %3443 = vmatprep.subr.mxu0 0.0
      %3444 = vmatpush1.msra.mxu0 0.0
      %3445 = vmatprep.subr.mxu0 0.0
      %3446 = vmatpush1.msra.mxu0 0.0
      %3447 = vmatprep.subr.mxu0 0.0
      %3448 = vmatpush1.msra.mxu0 0.0
      %3449 = vmatprep.subr.mxu0 0.0
      %3450 = vmatpush1.msra.mxu0 0.0
      %3451 = vmatprep.subr.mxu0 0.0
      %3452 = vmatpush1.msra.mxu0 0.0
      %3453 = vmatprep.subr.mxu0 0.0
      %3454 = vmatpush1.msra.mxu0 0.0
      %3455 = vmatprep.subr.mxu0 0.0
      %3456 = vmatpush1.msra.mxu0 0.0
      %3457 = vmatprep.mubr.f32.mxu0 0.0
      %3458 = vmatmul.mubr.f32.gmra.mrb[0].mxu0 %v3179
      %v3459 = vpop.f32.mrb[0].mxu0
      %v3460 = vadd.f32 0.0, %v3459
      %v3461 = vpop.f32.mrb[0].mxu0
      %3462 = vmatprep.mubr.f32.mxu0 0.0
      %3463 = vmatmul.mubr.f32.gmra.mrb[0].mxu0 %v3182
      %v3464 = vpop.f32.mrb[0].mxu0
      %v3465 = vadd.f32 0.0, %v3464
      %v3466 = vpop.f32.mrb[0].mxu0
      %3467 = vmatprep.mubr.f32.mxu0 0.0
      %3468 = vmatmul.mubr.f32.gmra.mrb[0].mxu0 %v3185
      %v3469 = vpop.f32.mrb[0].mxu0
      %v3470 = vadd.f32 0.0, %v3469
      %v3471 = vpop.f32.mrb[0].mxu0
      %3472 = vmatprep.mubr.f32.mxu0 0.0
      %3473 = vmatmul.mubr.f32.gmra.mrb[0].mxu0 %v3188
      %v3474 = vpop.f32.mrb[0].mxu0
      %v3475 = vadd.f32 0.0, %v3474
      %v3476 = vpop.f32.mrb[0].mxu0
      %3477 = vmatprep.mubr.f32.mxu0 0.0
      %3478 = vmatmul.mubr.f32.gmra.mrb[0].mxu0 %v3191
      %v3479 = vpop.f32.mrb[0].mxu0
      %v3480 = vadd.f32 0.0, %v3479
      %v3481 = vpop.f32.mrb[0].mxu0
      %3482 = vmatprep.mubr.f32.mxu0 0.0
      %3483 = vmatmul.mubr.f32.gmra.mrb[0].mxu0 %v3194
      %v3484 = vpop.f32.mrb[0].mxu0
      %v3485 = vadd.f32 0.0, %v3484
      %v3486 = vpop.f32.mrb[0].mxu0
      %3487 = vmatprep.mubr.f32.mxu0 0.0
      %3488 = vmatmul.mubr.f32.gmra.mrb[0].mxu0 %v3197
      %v3489 = vpop.f32.mrb[0].mxu0
      %v3490 = vadd.f32 0.0, %v3489
      %v3491 = vpop.f32.mrb[0].mxu0
      %3492 = vmatprep.mubr.f32.mxu0 0.0
      %3493 = vmatmul.mubr.f32.gmra.mrb[0].mxu0 %v3200
      %v3494 = vpop.f32.mrb[0].mxu0
      %v3495 = vadd.f32 0.0, %v3494
      %v3496 = vpop.f32.mrb[0].mxu0
      %3497 = vmatprep.mubr.f32.mxu0 0.0
      %3498 = vmatmul.mubr.f32.gmra.mrb[0].mxu0 %v3203
      %v3499 = vpop.f32.mrb[0].mxu0
      %v3500 = vadd.f32 0.0, %v3499
      %v3501 = vpop.f32.mrb[0].mxu0
      %3502 = vmatprep.mubr.f32.mxu0 0.0
      %3503 = vmatmul.mubr.f32.gmra.mrb[0].mxu0 %v3206
      %v3504 = vpop.f32.mrb[0].mxu0
      %v3505 = vadd.f32 0.0, %v3504
      %v3506 = vpop.f32.mrb[0].mxu0
      %3507 = vmatprep.mubr.f32.mxu0 0.0
      %3508 = vmatmul.mubr.f32.gmra.mrb[0].mxu0 %v3209
      %v3509 = vpop.f32.mrb[0].mxu0
      %v3510 = vadd.f32 0.0, %v3509
      %v3511 = vpop.f32.mrb[0].mxu0
      %3512 = vmatprep.mubr.f32.mxu0 0.0
      %3513 = vmatmul.mubr.f32.gmra.mrb[0].mxu0 %v3212
      %v3514 = vpop.f32.mrb[0].mxu0
      %v3515 = vadd.f32 0.0, %v3514
      %v3516 = vpop.f32.mrb[0].mxu0
      %3517 = vmatprep.mubr.f32.mxu0 0.0
      %3518 = vmatmul.mubr.f32.gmra.mrb[0].mxu0 %v3215
      %v3519 = vpop.f32.mrb[0].mxu0
      %v3520 = vadd.f32 0.0, %v3519
      %v3521 = vpop.f32.mrb[0].mxu0
      %3522 = vmatprep.mubr.f32.mxu0 0.0
      %3523 = vmatmul.mubr.f32.gmra.mrb[0].mxu0 %v3218
      %v3524 = vpop.f32.mrb[0].mxu0
      %v3525 = vadd.f32 0.0, %v3524
      %v3526 = vpop.f32.mrb[0].mxu0
      %3527 = vmatprep.mubr.f32.mxu0 0.0
      %3528 = vmatmul.mubr.f32.gmra.mrb[0].mxu0 %v3221
      %v3529 = vpop.f32.mrb[0].mxu0
      %v3530 = vadd.f32 0.0, %v3529
      %v3531 = vpop.f32.mrb[0].mxu0
      %3532 = vmatprep.mubr.f32.mxu0 0.0
      %3533 = vmatmul.mubr.f32.gmra.mrb[0].mxu0 %v3224
      %v3534 = vpop.f32.mrb[0].mxu0
      %v3535 = vadd.f32 0.0, %v3534
      %v3536 = vpop.f32.mrb[0].mxu0
      %3537 = vdwg.mxu0
      %v3538 = vadd.f32 %v3045, %v3299
      %v3539 = vadd.f32 %v3046, %v3301
      %v3540 = vadd.f32 %v3047, %v3460
      %v3541 = vadd.f32 %v3048, %v3305
      %v3542 = vadd.f32 %v3049, %v3307
      %v3543 = vadd.f32 %v3050, %v3465
      %v3544 = vadd.f32 %v3051, %v3311
      %v3545 = vadd.f32 %v3052, %v3313
      %v3546 = vadd.f32 %v3053, %v3470
      %v3547 = vadd.f32 %v3054, %v3317
      %v3548 = vadd.f32 %v3055, %v3319
      %v3549 = vadd.f32 %v3056, %v3475
      %v3550 = vadd.f32 %v3057, %v3323
      %v3551 = vadd.f32 %v3058, %v3325
      %v3552 = vadd.f32 %v3059, %v3480
      %v3553 = vadd.f32 %v3060, %v3329
      %v3554 = vadd.f32 %v3061, %v3331
      %v3555 = vadd.f32 %v3062, %v3485
      %v3556 = vadd.f32 %v3063, %v3335
      %v3557 = vadd.f32 %v3064, %v3337
      %v3558 = vadd.f32 %v3065, %v3490
      %v3559 = vadd.f32 %v3066, %v3341
      %v3560 = vadd.f32 %v3067, %v3343
      %v3561 = vadd.f32 %v3068, %v3495
      %v3562 = vadd.f32 %v3069, %v3347
      %v3563 = vadd.f32 %v3070, %v3349
      %v3564 = vadd.f32 %v3071, %v3500
      %v3565 = vadd.f32 %v3072, %v3353
      %v3566 = vadd.f32 %v3073, %v3355
      %v3567 = vadd.f32 %v3074, %v3505
      %v3568 = vadd.f32 %v3075, %v3359
      %v3569 = vadd.f32 %v3076, %v3361
      %v3570 = vadd.f32 %v3077, %v3510
      %v3571 = vadd.f32 %v3078, %v3365
      %v3572 = vadd.f32 %v3079, %v3367
      %v3573 = vadd.f32 %v3080, %v3515
      %v3574 = vadd.f32 %v3081, %v3371
      %v3575 = vadd.f32 %v3082, %v3373
      %v3576 = vadd.f32 %v3083, %v3520
      %v3577 = vadd.f32 %v3084, %v3377
      %v3578 = vadd.f32 %v3085, %v3379
      %v3579 = vadd.f32 %v3086, %v3525
      %v3580 = vadd.f32 %v3087, %v3383
      %v3581 = vadd.f32 %v3088, %v3385
      %v3582 = vadd.f32 %v3089, %v3530
      %v3583 = vadd.f32 %v3090, %v3389
      %v3584 = vadd.f32 %v3091, %v3391
      %v3585 = vadd.f32 %v3092, %v3535
      %s3586 = scalar_lea.vmem %s1, 896
      %v3587 = vld [vmem:[%s3586] sm:$0xff]
      %v3588 = vld [vmem:[%s3586 + $0x8] sm:$0xff]
      %v3589 = vld [vmem:[%s3586 + $0x10] sm:$0xff]
      %v3590 = vld [vmem:[%s3586 + $0x18] sm:$0xff]
      %v3591 = vld [vmem:[%s3586 + $0x20] sm:$0xff]
      %v3592 = vld [vmem:[%s3586 + $0x28] sm:$0xff]
      %v3593 = vld [vmem:[%s3586 + $0x30] sm:$0xff]
      %v3594 = vld [vmem:[%s3586 + $0x38] sm:$0xff]
      %v3595 = vld [vmem:[%s3586 + $0x40] sm:$0xff]
      %v3596 = vld [vmem:[%s3586 + $0x48] sm:$0xff]
      %v3597 = vld [vmem:[%s3586 + $0x50] sm:$0xff]
      %v3598 = vld [vmem:[%s3586 + $0x58] sm:$0xff]
      %v3599 = vld [vmem:[%s3586 + $0x60] sm:$0xff]
      %v3600 = vld [vmem:[%s3586 + $0x68] sm:$0xff]
      %v3601 = vld [vmem:[%s3586 + $0x70] sm:$0xff]
      %v3602 = vld [vmem:[%s3586 + $0x78] sm:$0xff]
      %3603 = vrot.lane.b32.xlu0 %v258, 91
      %v3604 = vpop.permute.xlu0 %3603
      %3605 = vrot.lane.b32.xlu0 %v259, 91
      %v3606 = vpop.permute.xlu0 %3605
      %3607 = vrot.lane.b32.xlu0 %v260, 91
      %v3608 = vpop.permute.xlu0 %3607
      %3609 = vrot.lane.b32.xlu0 %v289, 91
      %v3610 = vpop.permute.xlu0 %3609
      %3611 = vrot.lane.b32.xlu0 %v261, 91
      %v3612 = vpop.permute.xlu0 %3611
      %3613 = vrot.lane.b32.xlu0 %v262, 91
      %v3614 = vpop.permute.xlu0 %3613
      %3615 = vrot.lane.b32.xlu0 %v263, 91
      %v3616 = vpop.permute.xlu0 %3615
      %3617 = vrot.lane.b32.xlu0 %v290, 91
      %v3618 = vpop.permute.xlu0 %3617
      %3619 = vrot.lane.b32.xlu0 %v264, 91
      %v3620 = vpop.permute.xlu0 %3619
      %3621 = vrot.lane.b32.xlu0 %v265, 91
      %v3622 = vpop.permute.xlu0 %3621
      %3623 = vrot.lane.b32.xlu0 %v266, 91
      %v3624 = vpop.permute.xlu0 %3623
      %3625 = vrot.lane.b32.xlu0 %v291, 91
      %v3626 = vpop.permute.xlu0 %3625
      %3627 = vrot.lane.b32.xlu0 %v267, 91
      %v3628 = vpop.permute.xlu0 %3627
      %3629 = vrot.lane.b32.xlu0 %v268, 91
      %v3630 = vpop.permute.xlu0 %3629
      %3631 = vrot.lane.b32.xlu0 %v269, 91
      %v3632 = vpop.permute.xlu0 %3631
      %3633 = vrot.lane.b32.xlu0 %v292, 91
      %v3634 = vpop.permute.xlu0 %3633
      %3635 = vrot.lane.b32.xlu0 %v270, 91
      %v3636 = vpop.permute.xlu0 %3635
      %3637 = vrot.lane.b32.xlu0 %v271, 91
      %v3638 = vpop.permute.xlu0 %3637
      %3639 = vrot.lane.b32.xlu0 %v272, 91
      %v3640 = vpop.permute.xlu0 %3639
      %3641 = vrot.lane.b32.xlu0 %v293, 91
      %v3642 = vpop.permute.xlu0 %3641
      %vm3643 = vcmask 744448
      %v3644 = vsel %vm3643, %v3604, %v3606
      %v3645 = vsel %vm3643, %v3606, %v3608
      %v3646 = vsel %vm3643, %v3608, %v3610
      %v3647 = vsel %vm3643, %v3612, %v3614
      %v3648 = vsel %vm3643, %v3614, %v3616
      %v3649 = vsel %vm3643, %v3616, %v3618
      %v3650 = vsel %vm3643, %v3620, %v3622
      %v3651 = vsel %vm3643, %v3622, %v3624
      %v3652 = vsel %vm3643, %v3624, %v3626
      %v3653 = vsel %vm3643, %v3628, %v3630
      %v3654 = vsel %vm3643, %v3630, %v3632
      %v3655 = vsel %vm3643, %v3632, %v3634
      %v3656 = vsel %vm3643, %v3636, %v3638
      %v3657 = vsel %vm3643, %v3638, %v3640
      %v3658 = vsel %vm3643, %v3640, %v3642
      %v3672 = vsel %vm399, %v3587, 0
      %v3675 = vsel %vm399, %v3588, 0
      %v3678 = vsel %vm399, %v3589, 0
      %v3681 = vsel %vm399, %v3590, 0
      %v3684 = vsel %vm399, %v3591, 0
      %v3687 = vsel %vm399, %v3592, 0
      %v3690 = vsel %vm399, %v3593, 0
      %v3693 = vsel %vm399, %v3594, 0
      %v3696 = vsel %vm399, %v3595, 0
      %v3699 = vsel %vm399, %v3596, 0
      %v3702 = vsel %vm399, %v3597, 0
      %v3705 = vsel %vm399, %v3598, 0
      %v3708 = vsel %vm399, %v3599, 0
      %v3711 = vsel %vm399, %v3600, 0
      %v3714 = vsel %vm399, %v3601, 0
      %v3717 = vsel %vm399, %v3602, 0
      %v3719 = vsel %vm448, %v3656, 0
      %v3721 = vsel %vm448, %v3657, 0
      %v3723 = vsel %vm448, %v3658, 0
      %3725 = vmatprep.subr.mxu0 %v3645
      %3726 = vmatpush1.msra.mxu0 %v3644
      %3727 = vmatprep.subr.mxu0 %v3648
      %3728 = vmatpush1.msra.mxu0 %v3647
      %3729 = vmatprep.subr.mxu0 %v3651
      %3730 = vmatpush1.msra.mxu0 %v3650
      %3731 = vmatprep.subr.mxu0 %v3654
      %3732 = vmatpush1.msra.mxu0 %v3653
      %3733 = vmatprep.subr.mxu0 %v3721
      %3734 = vmatpush1.msra.mxu0 %v3719
      %3735 = vmatprep.subr.mxu0 0.0
      %3736 = vmatpush1.msra.mxu0 0.0
      %3737 = vmatprep.subr.mxu0 0.0
      %3738 = vmatpush1.msra.mxu0 0.0
      %3739 = vmatprep.subr.mxu0 0.0
      %3740 = vmatpush1.msra.mxu0 0.0
      %3741 = vmatprep.subr.mxu0 0.0
      %3742 = vmatpush1.msra.mxu0 0.0
      %3743 = vmatprep.subr.mxu0 0.0
      %3744 = vmatpush1.msra.mxu0 0.0
      %3745 = vmatprep.subr.mxu0 0.0
      %3746 = vmatpush1.msra.mxu0 0.0
      %3747 = vmatprep.subr.mxu0 0.0
      %3748 = vmatpush1.msra.mxu0 0.0
      %3749 = vmatprep.subr.mxu0 0.0
      %3750 = vmatpush1.msra.mxu0 0.0
      %3751 = vmatprep.subr.mxu0 0.0
      %3752 = vmatpush1.msra.mxu0 0.0
      %3753 = vmatprep.subr.mxu0 0.0
      %3754 = vmatpush1.msra.mxu0 0.0
      %3755 = vmatprep.subr.mxu0 0.0
      %3756 = vmatpush1.msra.mxu0 0.0
      %3757 = vmatprep.subr.mxu0 0.0
      %3758 = vmatpush1.msra.mxu0 0.0
      %3759 = vmatprep.subr.mxu0 0.0
      %3760 = vmatpush1.msra.mxu0 0.0
      %3761 = vmatprep.subr.mxu0 0.0
      %3762 = vmatpush1.msra.mxu0 0.0
      %3763 = vmatprep.subr.mxu0 0.0
      %3764 = vmatpush1.msra.mxu0 0.0
      %3765 = vmatprep.subr.mxu0 0.0
      %3766 = vmatpush1.msra.mxu0 0.0
      %3767 = vmatprep.subr.mxu0 0.0
      %3768 = vmatpush1.msra.mxu0 0.0
      %3769 = vmatprep.subr.mxu0 0.0
      %3770 = vmatpush1.msra.mxu0 0.0
      %3771 = vmatprep.subr.mxu0 0.0
      %3772 = vmatpush1.msra.mxu0 0.0
      %3773 = vmatprep.subr.mxu0 0.0
      %3774 = vmatpush1.msra.mxu0 0.0
      %3775 = vmatprep.subr.mxu0 0.0
      %3776 = vmatpush1.msra.mxu0 0.0
      %3777 = vmatprep.subr.mxu0 0.0
      %3778 = vmatpush1.msra.mxu0 0.0
      %3779 = vmatprep.subr.mxu0 0.0
      %3780 = vmatpush1.msra.mxu0 0.0
      %3781 = vmatprep.subr.mxu0 0.0
      %3782 = vmatpush1.msra.mxu0 0.0
      %3783 = vmatprep.subr.mxu0 0.0
      %3784 = vmatpush1.msra.mxu0 0.0
      %3785 = vmatprep.subr.mxu0 0.0
      %3786 = vmatpush1.msra.mxu0 0.0
      %3787 = vmatprep.subr.mxu0 0.0
      %3788 = vmatpush1.msra.mxu0 0.0
      %3789 = vmatprep.mubr.f32.mxu0 0.0
      %3790 = vmatmul.mubr.f32.gmra.mrb[0].mxu0 %v3672
      %v3791 = vpop.f32.mrb[0].mxu0
      %v3792 = vadd.f32 0.0, %v3791
      %v3793 = vpop.f32.mrb[0].mxu0
      %v3794 = vadd.f32 0.0, %v3793
      %3795 = vmatprep.mubr.f32.mxu0 0.0
      %3796 = vmatmul.mubr.f32.gmra.mrb[0].mxu0 %v3675
      %v3797 = vpop.f32.mrb[0].mxu0
      %v3798 = vadd.f32 0.0, %v3797
      %v3799 = vpop.f32.mrb[0].mxu0
      %v3800 = vadd.f32 0.0, %v3799
      %3801 = vmatprep.mubr.f32.mxu0 0.0
      %3802 = vmatmul.mubr.f32.gmra.mrb[0].mxu0 %v3678
      %v3803 = vpop.f32.mrb[0].mxu0
      %v3804 = vadd.f32 0.0, %v3803
      %v3805 = vpop.f32.mrb[0].mxu0
      %v3806 = vadd.f32 0.0, %v3805
      %3807 = vmatprep.mubr.f32.mxu0 0.0
      %3808 = vmatmul.mubr.f32.gmra.mrb[0].mxu0 %v3681
      %v3809 = vpop.f32.mrb[0].mxu0
      %v3810 = vadd.f32 0.0, %v3809
      %v3811 = vpop.f32.mrb[0].mxu0
      %v3812 = vadd.f32 0.0, %v3811
      %3813 = vmatprep.mubr.f32.mxu0 0.0
      %3814 = vmatmul.mubr.f32.gmra.mrb[0].mxu0 %v3684
      %v3815 = vpop.f32.mrb[0].mxu0
      %v3816 = vadd.f32 0.0, %v3815
      %v3817 = vpop.f32.mrb[0].mxu0
      %v3818 = vadd.f32 0.0, %v3817
      %3819 = vmatprep.mubr.f32.mxu0 0.0
      %3820 = vmatmul.mubr.f32.gmra.mrb[0].mxu0 %v3687
      %v3821 = vpop.f32.mrb[0].mxu0
      %v3822 = vadd.f32 0.0, %v3821
      %v3823 = vpop.f32.mrb[0].mxu0
      %v3824 = vadd.f32 0.0, %v3823
      %3825 = vmatprep.mubr.f32.mxu0 0.0
      %3826 = vmatmul.mubr.f32.gmra.mrb[0].mxu0 %v3690
      %v3827 = vpop.f32.mrb[0].mxu0
      %v3828 = vadd.f32 0.0, %v3827
      %v3829 = vpop.f32.mrb[0].mxu0
      %v3830 = vadd.f32 0.0, %v3829
      %3831 = vmatprep.mubr.f32.mxu0 0.0
      %3832 = vmatmul.mubr.f32.gmra.mrb[0].mxu0 %v3693
      %v3833 = vpop.f32.mrb[0].mxu0
      %v3834 = vadd.f32 0.0, %v3833
      %v3835 = vpop.f32.mrb[0].mxu0
      %v3836 = vadd.f32 0.0, %v3835
      %3837 = vmatprep.mubr.f32.mxu0 0.0
      %3838 = vmatmul.mubr.f32.gmra.mrb[0].mxu0 %v3696
      %v3839 = vpop.f32.mrb[0].mxu0
      %v3840 = vadd.f32 0.0, %v3839
      %v3841 = vpop.f32.mrb[0].mxu0
      %v3842 = vadd.f32 0.0, %v3841
      %3843 = vmatprep.mubr.f32.mxu0 0.0
      %3844 = vmatmul.mubr.f32.gmra.mrb[0].mxu0 %v3699
      %v3845 = vpop.f32.mrb[0].mxu0
      %v3846 = vadd.f32 0.0, %v3845
      %v3847 = vpop.f32.mrb[0].mxu0
      %v3848 = vadd.f32 0.0, %v3847
      %3849 = vmatprep.mubr.f32.mxu0 0.0
      %3850 = vmatmul.mubr.f32.gmra.mrb[0].mxu0 %v3702
      %v3851 = vpop.f32.mrb[0].mxu0
      %v3852 = vadd.f32 0.0, %v3851
      %v3853 = vpop.f32.mrb[0].mxu0
      %v3854 = vadd.f32 0.0, %v3853
      %3855 = vmatprep.mubr.f32.mxu0 0.0
      %3856 = vmatmul.mubr.f32.gmra.mrb[0].mxu0 %v3705
      %v3857 = vpop.f32.mrb[0].mxu0
      %v3858 = vadd.f32 0.0, %v3857
      %v3859 = vpop.f32.mrb[0].mxu0
      %v3860 = vadd.f32 0.0, %v3859
      %3861 = vmatprep.mubr.f32.mxu0 0.0
      %3862 = vmatmul.mubr.f32.gmra.mrb[0].mxu0 %v3708
      %v3863 = vpop.f32.mrb[0].mxu0
      %v3864 = vadd.f32 0.0, %v3863
      %v3865 = vpop.f32.mrb[0].mxu0
      %v3866 = vadd.f32 0.0, %v3865
      %3867 = vmatprep.mubr.f32.mxu0 0.0
      %3868 = vmatmul.mubr.f32.gmra.mrb[0].mxu0 %v3711
      %v3869 = vpop.f32.mrb[0].mxu0
      %v3870 = vadd.f32 0.0, %v3869
      %v3871 = vpop.f32.mrb[0].mxu0
      %v3872 = vadd.f32 0.0, %v3871
      %3873 = vmatprep.mubr.f32.mxu0 0.0
      %3874 = vmatmul.mubr.f32.gmra.mrb[0].mxu0 %v3714
      %v3875 = vpop.f32.mrb[0].mxu0
      %v3876 = vadd.f32 0.0, %v3875
      %v3877 = vpop.f32.mrb[0].mxu0
      %v3878 = vadd.f32 0.0, %v3877
      %3879 = vmatprep.mubr.f32.mxu0 0.0
      %3880 = vmatmul.mubr.f32.gmra.mrb[0].mxu0 %v3717
      %v3881 = vpop.f32.mrb[0].mxu0
      %v3882 = vadd.f32 0.0, %v3881
      %v3883 = vpop.f32.mrb[0].mxu0
      %v3884 = vadd.f32 0.0, %v3883
      %3885 = vdwg.mxu0
      %3886 = vmatprep.subr.mxu0 0.0
      %3887 = vmatpush1.msra.mxu0 %v3646
      %3888 = vmatprep.subr.mxu0 0.0
      %3889 = vmatpush1.msra.mxu0 %v3649
      %3890 = vmatprep.subr.mxu0 0.0
      %3891 = vmatpush1.msra.mxu0 %v3652
      %3892 = vmatprep.subr.mxu0 0.0
      %3893 = vmatpush1.msra.mxu0 %v3655
      %3894 = vmatprep.subr.mxu0 0.0
      %3895 = vmatpush1.msra.mxu0 %v3723
      %3896 = vmatprep.subr.mxu0 0.0
      %3897 = vmatpush1.msra.mxu0 0.0
      %3898 = vmatprep.subr.mxu0 0.0
      %3899 = vmatpush1.msra.mxu0 0.0
      %3900 = vmatprep.subr.mxu0 0.0
      %3901 = vmatpush1.msra.mxu0 0.0
      %3902 = vmatprep.subr.mxu0 0.0
      %3903 = vmatpush1.msra.mxu0 0.0
      %3904 = vmatprep.subr.mxu0 0.0
      %3905 = vmatpush1.msra.mxu0 0.0
      %3906 = vmatprep.subr.mxu0 0.0
      %3907 = vmatpush1.msra.mxu0 0.0
      %3908 = vmatprep.subr.mxu0 0.0
      %3909 = vmatpush1.msra.mxu0 0.0
      %3910 = vmatprep.subr.mxu0 0.0
      %3911 = vmatpush1.msra.mxu0 0.0
      %3912 = vmatprep.subr.mxu0 0.0
      %3913 = vmatpush1.msra.mxu0 0.0
      %3914 = vmatprep.subr.mxu0 0.0
      %3915 = vmatpush1.msra.mxu0 0.0
      %3916 = vmatprep.subr.mxu0 0.0
      %3917 = vmatpush1.msra.mxu0 0.0
      %3918 = vmatprep.subr.mxu0 0.0
      %3919 = vmatpush1.msra.mxu0 0.0
      %3920 = vmatprep.subr.mxu0 0.0
      %3921 = vmatpush1.msra.mxu0 0.0
      %3922 = vmatprep.subr.mxu0 0.0
      %3923 = vmatpush1.msra.mxu0 0.0
      %3924 = vmatprep.subr.mxu0 0.0
      %3925 = vmatpush1.msra.mxu0 0.0
      %3926 = vmatprep.subr.mxu0 0.0
      %3927 = vmatpush1.msra.mxu0 0.0
      %3928 = vmatprep.subr.mxu0 0.0
      %3929 = vmatpush1.msra.mxu0 0.0
      %3930 = vmatprep.subr.mxu0 0.0
      %3931 = vmatpush1.msra.mxu0 0.0
      %3932 = vmatprep.subr.mxu0 0.0
      %3933 = vmatpush1.msra.mxu0 0.0
      %3934 = vmatprep.subr.mxu0 0.0
      %3935 = vmatpush1.msra.mxu0 0.0
      %3936 = vmatprep.subr.mxu0 0.0
      %3937 = vmatpush1.msra.mxu0 0.0
      %3938 = vmatprep.subr.mxu0 0.0
      %3939 = vmatpush1.msra.mxu0 0.0
      %3940 = vmatprep.subr.mxu0 0.0
      %3941 = vmatpush1.msra.mxu0 0.0
      %3942 = vmatprep.subr.mxu0 0.0
      %3943 = vmatpush1.msra.mxu0 0.0
      %3944 = vmatprep.subr.mxu0 0.0
      %3945 = vmatpush1.msra.mxu0 0.0
      %3946 = vmatprep.subr.mxu0 0.0
      %3947 = vmatpush1.msra.mxu0 0.0
      %3948 = vmatprep.subr.mxu0 0.0
      %3949 = vmatpush1.msra.mxu0 0.0
      %3950 = vmatprep.mubr.f32.mxu0 0.0
      %3951 = vmatmul.mubr.f32.gmra.mrb[0].mxu0 %v3672
      %v3952 = vpop.f32.mrb[0].mxu0
      %v3953 = vadd.f32 0.0, %v3952
      %v3954 = vpop.f32.mrb[0].mxu0
      %3955 = vmatprep.mubr.f32.mxu0 0.0
      %3956 = vmatmul.mubr.f32.gmra.mrb[0].mxu0 %v3675
      %v3957 = vpop.f32.mrb[0].mxu0
      %v3958 = vadd.f32 0.0, %v3957
      %v3959 = vpop.f32.mrb[0].mxu0
      %3960 = vmatprep.mubr.f32.mxu0 0.0
      %3961 = vmatmul.mubr.f32.gmra.mrb[0].mxu0 %v3678
      %v3962 = vpop.f32.mrb[0].mxu0
      %v3963 = vadd.f32 0.0, %v3962
      %v3964 = vpop.f32.mrb[0].mxu0
      %3965 = vmatprep.mubr.f32.mxu0 0.0
      %3966 = vmatmul.mubr.f32.gmra.mrb[0].mxu0 %v3681
      %v3967 = vpop.f32.mrb[0].mxu0
      %v3968 = vadd.f32 0.0, %v3967
      %v3969 = vpop.f32.mrb[0].mxu0
      %3970 = vmatprep.mubr.f32.mxu0 0.0
      %3971 = vmatmul.mubr.f32.gmra.mrb[0].mxu0 %v3684
      %v3972 = vpop.f32.mrb[0].mxu0
      %v3973 = vadd.f32 0.0, %v3972
      %v3974 = vpop.f32.mrb[0].mxu0
      %3975 = vmatprep.mubr.f32.mxu0 0.0
      %3976 = vmatmul.mubr.f32.gmra.mrb[0].mxu0 %v3687
      %v3977 = vpop.f32.mrb[0].mxu0
      %v3978 = vadd.f32 0.0, %v3977
      %v3979 = vpop.f32.mrb[0].mxu0
      %3980 = vmatprep.mubr.f32.mxu0 0.0
      %3981 = vmatmul.mubr.f32.gmra.mrb[0].mxu0 %v3690
      %v3982 = vpop.f32.mrb[0].mxu0
      %v3983 = vadd.f32 0.0, %v3982
      %v3984 = vpop.f32.mrb[0].mxu0
      %3985 = vmatprep.mubr.f32.mxu0 0.0
      %3986 = vmatmul.mubr.f32.gmra.mrb[0].mxu0 %v3693
      %v3987 = vpop.f32.mrb[0].mxu0
      %v3988 = vadd.f32 0.0, %v3987
      %v3989 = vpop.f32.mrb[0].mxu0
      %3990 = vmatprep.mubr.f32.mxu0 0.0
      %3991 = vmatmul.mubr.f32.gmra.mrb[0].mxu0 %v3696
      %v3992 = vpop.f32.mrb[0].mxu0
      %v3993 = vadd.f32 0.0, %v3992
      %v3994 = vpop.f32.mrb[0].mxu0
      %3995 = vmatprep.mubr.f32.mxu0 0.0
      %3996 = vmatmul.mubr.f32.gmra.mrb[0].mxu0 %v3699
      %v3997 = vpop.f32.mrb[0].mxu0
      %v3998 = vadd.f32 0.0, %v3997
      %v3999 = vpop.f32.mrb[0].mxu0
      %4000 = vmatprep.mubr.f32.mxu0 0.0
      %4001 = vmatmul.mubr.f32.gmra.mrb[0].mxu0 %v3702
      %v4002 = vpop.f32.mrb[0].mxu0
      %v4003 = vadd.f32 0.0, %v4002
      %v4004 = vpop.f32.mrb[0].mxu0
      %4005 = vmatprep.mubr.f32.mxu0 0.0
      %4006 = vmatmul.mubr.f32.gmra.mrb[0].mxu0 %v3705
      %v4007 = vpop.f32.mrb[0].mxu0
      %v4008 = vadd.f32 0.0, %v4007
      %v4009 = vpop.f32.mrb[0].mxu0
      %4010 = vmatprep.mubr.f32.mxu0 0.0
      %4011 = vmatmul.mubr.f32.gmra.mrb[0].mxu0 %v3708
      %v4012 = vpop.f32.mrb[0].mxu0
      %v4013 = vadd.f32 0.0, %v4012
      %v4014 = vpop.f32.mrb[0].mxu0
      %4015 = vmatprep.mubr.f32.mxu0 0.0
      %4016 = vmatmul.mubr.f32.gmra.mrb[0].mxu0 %v3711
      %v4017 = vpop.f32.mrb[0].mxu0
      %v4018 = vadd.f32 0.0, %v4017
      %v4019 = vpop.f32.mrb[0].mxu0
      %4020 = vmatprep.mubr.f32.mxu0 0.0
      %4021 = vmatmul.mubr.f32.gmra.mrb[0].mxu0 %v3714
      %v4022 = vpop.f32.mrb[0].mxu0
      %v4023 = vadd.f32 0.0, %v4022
      %v4024 = vpop.f32.mrb[0].mxu0
      %4025 = vmatprep.mubr.f32.mxu0 0.0
      %4026 = vmatmul.mubr.f32.gmra.mrb[0].mxu0 %v3717
      %v4027 = vpop.f32.mrb[0].mxu0
      %v4028 = vadd.f32 0.0, %v4027
      %v4029 = vpop.f32.mrb[0].mxu0
      %4030 = vdwg.mxu0
      %v4031 = vadd.f32 %v3538, %v3792
      %v4032 = vadd.f32 %v3539, %v3794
      %v4033 = vadd.f32 %v3540, %v3953
      %v4034 = vadd.f32 %v3541, %v3798
      %v4035 = vadd.f32 %v3542, %v3800
      %v4036 = vadd.f32 %v3543, %v3958
      %v4037 = vadd.f32 %v3544, %v3804
      %v4038 = vadd.f32 %v3545, %v3806
      %v4039 = vadd.f32 %v3546, %v3963
      %v4040 = vadd.f32 %v3547, %v3810
      %v4041 = vadd.f32 %v3548, %v3812
      %v4042 = vadd.f32 %v3549, %v3968
      %v4043 = vadd.f32 %v3550, %v3816
      %v4044 = vadd.f32 %v3551, %v3818
      %v4045 = vadd.f32 %v3552, %v3973
      %v4046 = vadd.f32 %v3553, %v3822
      %v4047 = vadd.f32 %v3554, %v3824
      %v4048 = vadd.f32 %v3555, %v3978
      %v4049 = vadd.f32 %v3556, %v3828
      %v4050 = vadd.f32 %v3557, %v3830
      %v4051 = vadd.f32 %v3558, %v3983
      %v4052 = vadd.f32 %v3559, %v3834
      %v4053 = vadd.f32 %v3560, %v3836
      %v4054 = vadd.f32 %v3561, %v3988
      %v4055 = vadd.f32 %v3562, %v3840
      %v4056 = vadd.f32 %v3563, %v3842
      %v4057 = vadd.f32 %v3564, %v3993
      %v4058 = vadd.f32 %v3565, %v3846
      %v4059 = vadd.f32 %v3566, %v3848
      %v4060 = vadd.f32 %v3567, %v3998
      %v4061 = vadd.f32 %v3568, %v3852
      %v4062 = vadd.f32 %v3569, %v3854
      %v4063 = vadd.f32 %v3570, %v4003
      %v4064 = vadd.f32 %v3571, %v3858
      %v4065 = vadd.f32 %v3572, %v3860
      %v4066 = vadd.f32 %v3573, %v4008
      %v4067 = vadd.f32 %v3574, %v3864
      %v4068 = vadd.f32 %v3575, %v3866
      %v4069 = vadd.f32 %v3576, %v4013
      %v4070 = vadd.f32 %v3577, %v3870
      %v4071 = vadd.f32 %v3578, %v3872
      %v4072 = vadd.f32 %v3579, %v4018
      %v4073 = vadd.f32 %v3580, %v3876
      %v4074 = vadd.f32 %v3581, %v3878
      %v4075 = vadd.f32 %v3582, %v4023
      %v4076 = vadd.f32 %v3583, %v3882
      %v4077 = vadd.f32 %v3584, %v3884
      %v4078 = vadd.f32 %v3585, %v4028
      %s4079 = scalar_lea.vmem %s1, 1024
      %v4080 = vld [vmem:[%s4079] sm:$0xff]
      %v4081 = vld [vmem:[%s4079 + $0x8] sm:$0xff]
      %v4082 = vld [vmem:[%s4079 + $0x10] sm:$0xff]
      %v4083 = vld [vmem:[%s4079 + $0x18] sm:$0xff]
      %v4084 = vld [vmem:[%s4079 + $0x20] sm:$0xff]
      %v4085 = vld [vmem:[%s4079 + $0x28] sm:$0xff]
      %v4086 = vld [vmem:[%s4079 + $0x30] sm:$0xff]
      %v4087 = vld [vmem:[%s4079 + $0x38] sm:$0xff]
      %v4088 = vld [vmem:[%s4079 + $0x40] sm:$0xff]
      %v4089 = vld [vmem:[%s4079 + $0x48] sm:$0xff]
      %v4090 = vld [vmem:[%s4079 + $0x50] sm:$0xff]
      %v4091 = vld [vmem:[%s4079 + $0x58] sm:$0xff]
      %v4092 = vld [vmem:[%s4079 + $0x60] sm:$0xff]
      %v4093 = vld [vmem:[%s4079 + $0x68] sm:$0xff]
      %v4094 = vld [vmem:[%s4079 + $0x70] sm:$0xff]
      %v4095 = vld [vmem:[%s4079 + $0x78] sm:$0xff]
      %4096 = vrot.lane.b32.xlu0 %v258, 90
      %v4097 = vpop.permute.xlu0 %4096
      %4098 = vrot.lane.b32.xlu0 %v259, 90
      %v4099 = vpop.permute.xlu0 %4098
      %4100 = vrot.lane.b32.xlu0 %v260, 90
      %v4101 = vpop.permute.xlu0 %4100
      %4102 = vrot.lane.b32.xlu0 %v289, 90
      %v4103 = vpop.permute.xlu0 %4102
      %4104 = vrot.lane.b32.xlu0 %v261, 90
      %v4105 = vpop.permute.xlu0 %4104
      %4106 = vrot.lane.b32.xlu0 %v262, 90
      %v4107 = vpop.permute.xlu0 %4106
      %4108 = vrot.lane.b32.xlu0 %v263, 90
      %v4109 = vpop.permute.xlu0 %4108
      %4110 = vrot.lane.b32.xlu0 %v290, 90
      %v4111 = vpop.permute.xlu0 %4110
      %4112 = vrot.lane.b32.xlu0 %v264, 90
      %v4113 = vpop.permute.xlu0 %4112
      %4114 = vrot.lane.b32.xlu0 %v265, 90
      %v4115 = vpop.permute.xlu0 %4114
      %4116 = vrot.lane.b32.xlu0 %v266, 90
      %v4117 = vpop.permute.xlu0 %4116
      %4118 = vrot.lane.b32.xlu0 %v291, 90
      %v4119 = vpop.permute.xlu0 %4118
      %4120 = vrot.lane.b32.xlu0 %v267, 90
      %v4121 = vpop.permute.xlu0 %4120
      %4122 = vrot.lane.b32.xlu0 %v268, 90
      %v4123 = vpop.permute.xlu0 %4122
      %4124 = vrot.lane.b32.xlu0 %v269, 90
      %v4125 = vpop.permute.xlu0 %4124
      %4126 = vrot.lane.b32.xlu0 %v292, 90
      %v4127 = vpop.permute.xlu0 %4126
      %4128 = vrot.lane.b32.xlu0 %v270, 90
      %v4129 = vpop.permute.xlu0 %4128
      %4130 = vrot.lane.b32.xlu0 %v271, 90
      %v4131 = vpop.permute.xlu0 %4130
      %4132 = vrot.lane.b32.xlu0 %v272, 90
      %v4133 = vpop.permute.xlu0 %4132
      %4134 = vrot.lane.b32.xlu0 %v293, 90
      %v4135 = vpop.permute.xlu0 %4134
      %vm4136 = vcmask 736256
      %v4137 = vsel %vm4136, %v4097, %v4099
      %v4138 = vsel %vm4136, %v4099, %v4101
      %v4139 = vsel %vm4136, %v4101, %v4103
      %v4140 = vsel %vm4136, %v4105, %v4107
      %v4141 = vsel %vm4136, %v4107, %v4109
      %v4142 = vsel %vm4136, %v4109, %v4111
      %v4143 = vsel %vm4136, %v4113, %v4115
      %v4144 = vsel %vm4136, %v4115, %v4117
      %v4145 = vsel %vm4136, %v4117, %v4119
      %v4146 = vsel %vm4136, %v4121, %v4123
      %v4147 = vsel %vm4136, %v4123, %v4125
      %v4148 = vsel %vm4136, %v4125, %v4127
      %v4149 = vsel %vm4136, %v4129, %v4131
      %v4150 = vsel %vm4136, %v4131, %v4133
      %v4151 = vsel %vm4136, %v4133, %v4135
      %v4165 = vsel %vm399, %v4080, 0
      %v4168 = vsel %vm399, %v4081, 0
      %v4171 = vsel %vm399, %v4082, 0
      %v4174 = vsel %vm399, %v4083, 0
      %v4177 = vsel %vm399, %v4084, 0
      %v4180 = vsel %vm399, %v4085, 0
      %v4183 = vsel %vm399, %v4086, 0
      %v4186 = vsel %vm399, %v4087, 0
      %v4189 = vsel %vm399, %v4088, 0
      %v4192 = vsel %vm399, %v4089, 0
      %v4195 = vsel %vm399, %v4090, 0
      %v4198 = vsel %vm399, %v4091, 0
      %v4201 = vsel %vm399, %v4092, 0
      %v4204 = vsel %vm399, %v4093, 0
      %v4207 = vsel %vm399, %v4094, 0
      %v4210 = vsel %vm399, %v4095, 0
      %v4212 = vsel %vm448, %v4149, 0
      %v4214 = vsel %vm448, %v4150, 0
      %v4216 = vsel %vm448, %v4151, 0
      %4218 = vmatprep.subr.mxu0 %v4138
      %4219 = vmatpush1.msra.mxu0 %v4137
      %4220 = vmatprep.subr.mxu0 %v4141
      %4221 = vmatpush1.msra.mxu0 %v4140
      %4222 = vmatprep.subr.mxu0 %v4144
      %4223 = vmatpush1.msra.mxu0 %v4143
      %4224 = vmatprep.subr.mxu0 %v4147
      %4225 = vmatpush1.msra.mxu0 %v4146
      %4226 = vmatprep.subr.mxu0 %v4214
      %4227 = vmatpush1.msra.mxu0 %v4212
      %4228 = vmatprep.subr.mxu0 0.0
      %4229 = vmatpush1.msra.mxu0 0.0
      %4230 = vmatprep.subr.mxu0 0.0
      %4231 = vmatpush1.msra.mxu0 0.0
      %4232 = vmatprep.subr.mxu0 0.0
      %4233 = vmatpush1.msra.mxu0 0.0
      %4234 = vmatprep.subr.mxu0 0.0
      %4235 = vmatpush1.msra.mxu0 0.0
      %4236 = vmatprep.subr.mxu0 0.0
      %4237 = vmatpush1.msra.mxu0 0.0
      %4238 = vmatprep.subr.mxu0 0.0
      %4239 = vmatpush1.msra.mxu0 0.0
      %4240 = vmatprep.subr.mxu0 0.0
      %4241 = vmatpush1.msra.mxu0 0.0
      %4242 = vmatprep.subr.mxu0 0.0
      %4243 = vmatpush1.msra.mxu0 0.0
      %4244 = vmatprep.subr.mxu0 0.0
      %4245 = vmatpush1.msra.mxu0 0.0
      %4246 = vmatprep.subr.mxu0 0.0
      %4247 = vmatpush1.msra.mxu0 0.0
      %4248 = vmatprep.subr.mxu0 0.0
      %4249 = vmatpush1.msra.mxu0 0.0
      %4250 = vmatprep.subr.mxu0 0.0
      %4251 = vmatpush1.msra.mxu0 0.0
      %4252 = vmatprep.subr.mxu0 0.0
      %4253 = vmatpush1.msra.mxu0 0.0
      %4254 = vmatprep.subr.mxu0 0.0
      %4255 = vmatpush1.msra.mxu0 0.0
      %4256 = vmatprep.subr.mxu0 0.0
      %4257 = vmatpush1.msra.mxu0 0.0
      %4258 = vmatprep.subr.mxu0 0.0
      %4259 = vmatpush1.msra.mxu0 0.0
      %4260 = vmatprep.subr.mxu0 0.0
      %4261 = vmatpush1.msra.mxu0 0.0
      %4262 = vmatprep.subr.mxu0 0.0
      %4263 = vmatpush1.msra.mxu0 0.0
      %4264 = vmatprep.subr.mxu0 0.0
      %4265 = vmatpush1.msra.mxu0 0.0
      %4266 = vmatprep.subr.mxu0 0.0
      %4267 = vmatpush1.msra.mxu0 0.0
      %4268 = vmatprep.subr.mxu0 0.0
      %4269 = vmatpush1.msra.mxu0 0.0
      %4270 = vmatprep.subr.mxu0 0.0
      %4271 = vmatpush1.msra.mxu0 0.0
      %4272 = vmatprep.subr.mxu0 0.0
      %4273 = vmatpush1.msra.mxu0 0.0
      %4274 = vmatprep.subr.mxu0 0.0
      %4275 = vmatpush1.msra.mxu0 0.0
      %4276 = vmatprep.subr.mxu0 0.0
      %4277 = vmatpush1.msra.mxu0 0.0
      %4278 = vmatprep.subr.mxu0 0.0
      %4279 = vmatpush1.msra.mxu0 0.0
      %4280 = vmatprep.subr.mxu0 0.0
      %4281 = vmatpush1.msra.mxu0 0.0
      %4282 = vmatprep.mubr.f32.mxu0 0.0
      %4283 = vmatmul.mubr.f32.gmra.mrb[0].mxu0 %v4165
      %v4284 = vpop.f32.mrb[0].mxu0
      %v4285 = vadd.f32 0.0, %v4284
      %v4286 = vpop.f32.mrb[0].mxu0
      %v4287 = vadd.f32 0.0, %v4286
      %4288 = vmatprep.mubr.f32.mxu0 0.0
      %4289 = vmatmul.mubr.f32.gmra.mrb[0].mxu0 %v4168
      %v4290 = vpop.f32.mrb[0].mxu0
      %v4291 = vadd.f32 0.0, %v4290
      %v4292 = vpop.f32.mrb[0].mxu0
      %v4293 = vadd.f32 0.0, %v4292
      %4294 = vmatprep.mubr.f32.mxu0 0.0
      %4295 = vmatmul.mubr.f32.gmra.mrb[0].mxu0 %v4171
      %v4296 = vpop.f32.mrb[0].mxu0
      %v4297 = vadd.f32 0.0, %v4296
      %v4298 = vpop.f32.mrb[0].mxu0
      %v4299 = vadd.f32 0.0, %v4298
      %4300 = vmatprep.mubr.f32.mxu0 0.0
      %4301 = vmatmul.mubr.f32.gmra.mrb[0].mxu0 %v4174
      %v4302 = vpop.f32.mrb[0].mxu0
      %v4303 = vadd.f32 0.0, %v4302
      %v4304 = vpop.f32.mrb[0].mxu0
      %v4305 = vadd.f32 0.0, %v4304
      %4306 = vmatprep.mubr.f32.mxu0 0.0
      %4307 = vmatmul.mubr.f32.gmra.mrb[0].mxu0 %v4177
      %v4308 = vpop.f32.mrb[0].mxu0
      %v4309 = vadd.f32 0.0, %v4308
      %v4310 = vpop.f32.mrb[0].mxu0
      %v4311 = vadd.f32 0.0, %v4310
      %4312 = vmatprep.mubr.f32.mxu0 0.0
      %4313 = vmatmul.mubr.f32.gmra.mrb[0].mxu0 %v4180
      %v4314 = vpop.f32.mrb[0].mxu0
      %v4315 = vadd.f32 0.0, %v4314
      %v4316 = vpop.f32.mrb[0].mxu0
      %v4317 = vadd.f32 0.0, %v4316
      %4318 = vmatprep.mubr.f32.mxu0 0.0
      %4319 = vmatmul.mubr.f32.gmra.mrb[0].mxu0 %v4183
      %v4320 = vpop.f32.mrb[0].mxu0
      %v4321 = vadd.f32 0.0, %v4320
      %v4322 = vpop.f32.mrb[0].mxu0
      %v4323 = vadd.f32 0.0, %v4322
      %4324 = vmatprep.mubr.f32.mxu0 0.0
      %4325 = vmatmul.mubr.f32.gmra.mrb[0].mxu0 %v4186
      %v4326 = vpop.f32.mrb[0].mxu0
      %v4327 = vadd.f32 0.0, %v4326
      %v4328 = vpop.f32.mrb[0].mxu0
      %v4329 = vadd.f32 0.0, %v4328
      %4330 = vmatprep.mubr.f32.mxu0 0.0
      %4331 = vmatmul.mubr.f32.gmra.mrb[0].mxu0 %v4189
      %v4332 = vpop.f32.mrb[0].mxu0
      %v4333 = vadd.f32 0.0, %v4332
      %v4334 = vpop.f32.mrb[0].mxu0
      %v4335 = vadd.f32 0.0, %v4334
      %4336 = vmatprep.mubr.f32.mxu0 0.0
      %4337 = vmatmul.mubr.f32.gmra.mrb[0].mxu0 %v4192
      %v4338 = vpop.f32.mrb[0].mxu0
      %v4339 = vadd.f32 0.0, %v4338
      %v4340 = vpop.f32.mrb[0].mxu0
      %v4341 = vadd.f32 0.0, %v4340
      %4342 = vmatprep.mubr.f32.mxu0 0.0
      %4343 = vmatmul.mubr.f32.gmra.mrb[0].mxu0 %v4195
      %v4344 = vpop.f32.mrb[0].mxu0
      %v4345 = vadd.f32 0.0, %v4344
      %v4346 = vpop.f32.mrb[0].mxu0
      %v4347 = vadd.f32 0.0, %v4346
      %4348 = vmatprep.mubr.f32.mxu0 0.0
      %4349 = vmatmul.mubr.f32.gmra.mrb[0].mxu0 %v4198
      %v4350 = vpop.f32.mrb[0].mxu0
      %v4351 = vadd.f32 0.0, %v4350
      %v4352 = vpop.f32.mrb[0].mxu0
      %v4353 = vadd.f32 0.0, %v4352
      %4354 = vmatprep.mubr.f32.mxu0 0.0
      %4355 = vmatmul.mubr.f32.gmra.mrb[0].mxu0 %v4201
      %v4356 = vpop.f32.mrb[0].mxu0
      %v4357 = vadd.f32 0.0, %v4356
      %v4358 = vpop.f32.mrb[0].mxu0
      %v4359 = vadd.f32 0.0, %v4358
      %4360 = vmatprep.mubr.f32.mxu0 0.0
      %4361 = vmatmul.mubr.f32.gmra.mrb[0].mxu0 %v4204
      %v4362 = vpop.f32.mrb[0].mxu0
      %v4363 = vadd.f32 0.0, %v4362
      %v4364 = vpop.f32.mrb[0].mxu0
      %v4365 = vadd.f32 0.0, %v4364
      %4366 = vmatprep.mubr.f32.mxu0 0.0
      %4367 = vmatmul.mubr.f32.gmra.mrb[0].mxu0 %v4207
      %v4368 = vpop.f32.mrb[0].mxu0
      %v4369 = vadd.f32 0.0, %v4368
      %v4370 = vpop.f32.mrb[0].mxu0
      %v4371 = vadd.f32 0.0, %v4370
      %4372 = vmatprep.mubr.f32.mxu0 0.0
      %4373 = vmatmul.mubr.f32.gmra.mrb[0].mxu0 %v4210
      %v4374 = vpop.f32.mrb[0].mxu0
      %v4375 = vadd.f32 0.0, %v4374
      %v4376 = vpop.f32.mrb[0].mxu0
      %v4377 = vadd.f32 0.0, %v4376
      %4378 = vdwg.mxu0
      %4379 = vmatprep.subr.mxu0 0.0
      %4380 = vmatpush1.msra.mxu0 %v4139
      %4381 = vmatprep.subr.mxu0 0.0
      %4382 = vmatpush1.msra.mxu0 %v4142
      %4383 = vmatprep.subr.mxu0 0.0
      %4384 = vmatpush1.msra.mxu0 %v4145
      %4385 = vmatprep.subr.mxu0 0.0
      %4386 = vmatpush1.msra.mxu0 %v4148
      %4387 = vmatprep.subr.mxu0 0.0
      %4388 = vmatpush1.msra.mxu0 %v4216
      %4389 = vmatprep.subr.mxu0 0.0
      %4390 = vmatpush1.msra.mxu0 0.0
      %4391 = vmatprep.subr.mxu0 0.0
      %4392 = vmatpush1.msra.mxu0 0.0
      %4393 = vmatprep.subr.mxu0 0.0
      %4394 = vmatpush1.msra.mxu0 0.0
      %4395 = vmatprep.subr.mxu0 0.0
      %4396 = vmatpush1.msra.mxu0 0.0
      %4397 = vmatprep.subr.mxu0 0.0
      %4398 = vmatpush1.msra.mxu0 0.0
      %4399 = vmatprep.subr.mxu0 0.0
      %4400 = vmatpush1.msra.mxu0 0.0
      %4401 = vmatprep.subr.mxu0 0.0
      %4402 = vmatpush1.msra.mxu0 0.0
      %4403 = vmatprep.subr.mxu0 0.0
      %4404 = vmatpush1.msra.mxu0 0.0
      %4405 = vmatprep.subr.mxu0 0.0
      %4406 = vmatpush1.msra.mxu0 0.0
      %4407 = vmatprep.subr.mxu0 0.0
      %4408 = vmatpush1.msra.mxu0 0.0
      %4409 = vmatprep.subr.mxu0 0.0
      %4410 = vmatpush1.msra.mxu0 0.0
      %4411 = vmatprep.subr.mxu0 0.0
      %4412 = vmatpush1.msra.mxu0 0.0
      %4413 = vmatprep.subr.mxu0 0.0
      %4414 = vmatpush1.msra.mxu0 0.0
      %4415 = vmatprep.subr.mxu0 0.0
      %4416 = vmatpush1.msra.mxu0 0.0
      %4417 = vmatprep.subr.mxu0 0.0
      %4418 = vmatpush1.msra.mxu0 0.0
      %4419 = vmatprep.subr.mxu0 0.0
      %4420 = vmatpush1.msra.mxu0 0.0
      %4421 = vmatprep.subr.mxu0 0.0
      %4422 = vmatpush1.msra.mxu0 0.0
      %4423 = vmatprep.subr.mxu0 0.0
      %4424 = vmatpush1.msra.mxu0 0.0
      %4425 = vmatprep.subr.mxu0 0.0
      %4426 = vmatpush1.msra.mxu0 0.0
      %4427 = vmatprep.subr.mxu0 0.0
      %4428 = vmatpush1.msra.mxu0 0.0
      %4429 = vmatprep.subr.mxu0 0.0
      %4430 = vmatpush1.msra.mxu0 0.0
      %4431 = vmatprep.subr.mxu0 0.0
      %4432 = vmatpush1.msra.mxu0 0.0
      %4433 = vmatprep.subr.mxu0 0.0
      %4434 = vmatpush1.msra.mxu0 0.0
      %4435 = vmatprep.subr.mxu0 0.0
      %4436 = vmatpush1.msra.mxu0 0.0
      %4437 = vmatprep.subr.mxu0 0.0
      %4438 = vmatpush1.msra.mxu0 0.0
      %4439 = vmatprep.subr.mxu0 0.0
      %4440 = vmatpush1.msra.mxu0 0.0
      %4441 = vmatprep.subr.mxu0 0.0
      %4442 = vmatpush1.msra.mxu0 0.0
      %4443 = vmatprep.mubr.f32.mxu0 0.0
      %4444 = vmatmul.mubr.f32.gmra.mrb[0].mxu0 %v4165
      %v4445 = vpop.f32.mrb[0].mxu0
      %v4446 = vadd.f32 0.0, %v4445
      %v4447 = vpop.f32.mrb[0].mxu0
      %4448 = vmatprep.mubr.f32.mxu0 0.0
      %4449 = vmatmul.mubr.f32.gmra.mrb[0].mxu0 %v4168
      %v4450 = vpop.f32.mrb[0].mxu0
      %v4451 = vadd.f32 0.0, %v4450
      %v4452 = vpop.f32.mrb[0].mxu0
      %4453 = vmatprep.mubr.f32.mxu0 0.0
      %4454 = vmatmul.mubr.f32.gmra.mrb[0].mxu0 %v4171
      %v4455 = vpop.f32.mrb[0].mxu0
      %v4456 = vadd.f32 0.0, %v4455
      %v4457 = vpop.f32.mrb[0].mxu0
      %4458 = vmatprep.mubr.f32.mxu0 0.0
      %4459 = vmatmul.mubr.f32.gmra.mrb[0].mxu0 %v4174
      %v4460 = vpop.f32.mrb[0].mxu0
      %v4461 = vadd.f32 0.0, %v4460
      %v4462 = vpop.f32.mrb[0].mxu0
      %4463 = vmatprep.mubr.f32.mxu0 0.0
      %4464 = vmatmul.mubr.f32.gmra.mrb[0].mxu0 %v4177
      %v4465 = vpop.f32.mrb[0].mxu0
      %v4466 = vadd.f32 0.0, %v4465
      %v4467 = vpop.f32.mrb[0].mxu0
      %4468 = vmatprep.mubr.f32.mxu0 0.0
      %4469 = vmatmul.mubr.f32.gmra.mrb[0].mxu0 %v4180
      %v4470 = vpop.f32.mrb[0].mxu0
      %v4471 = vadd.f32 0.0, %v4470
      %v4472 = vpop.f32.mrb[0].mxu0
      %4473 = vmatprep.mubr.f32.mxu0 0.0
      %4474 = vmatmul.mubr.f32.gmra.mrb[0].mxu0 %v4183
      %v4475 = vpop.f32.mrb[0].mxu0
      %v4476 = vadd.f32 0.0, %v4475
      %v4477 = vpop.f32.mrb[0].mxu0
      %4478 = vmatprep.mubr.f32.mxu0 0.0
      %4479 = vmatmul.mubr.f32.gmra.mrb[0].mxu0 %v4186
      %v4480 = vpop.f32.mrb[0].mxu0
      %v4481 = vadd.f32 0.0, %v4480
      %v4482 = vpop.f32.mrb[0].mxu0
      %4483 = vmatprep.mubr.f32.mxu0 0.0
      %4484 = vmatmul.mubr.f32.gmra.mrb[0].mxu0 %v4189
      %v4485 = vpop.f32.mrb[0].mxu0
      %v4486 = vadd.f32 0.0, %v4485
      %v4487 = vpop.f32.mrb[0].mxu0
      %4488 = vmatprep.mubr.f32.mxu0 0.0
      %4489 = vmatmul.mubr.f32.gmra.mrb[0].mxu0 %v4192
      %v4490 = vpop.f32.mrb[0].mxu0
      %v4491 = vadd.f32 0.0, %v4490
      %v4492 = vpop.f32.mrb[0].mxu0
      %4493 = vmatprep.mubr.f32.mxu0 0.0
      %4494 = vmatmul.mubr.f32.gmra.mrb[0].mxu0 %v4195
      %v4495 = vpop.f32.mrb[0].mxu0
      %v4496 = vadd.f32 0.0, %v4495
      %v4497 = vpop.f32.mrb[0].mxu0
      %4498 = vmatprep.mubr.f32.mxu0 0.0
      %4499 = vmatmul.mubr.f32.gmra.mrb[0].mxu0 %v4198
      %v4500 = vpop.f32.mrb[0].mxu0
      %v4501 = vadd.f32 0.0, %v4500
      %v4502 = vpop.f32.mrb[0].mxu0
      %4503 = vmatprep.mubr.f32.mxu0 0.0
      %4504 = vmatmul.mubr.f32.gmra.mrb[0].mxu0 %v4201
      %v4505 = vpop.f32.mrb[0].mxu0
      %v4506 = vadd.f32 0.0, %v4505
      %v4507 = vpop.f32.mrb[0].mxu0
      %4508 = vmatprep.mubr.f32.mxu0 0.0
      %4509 = vmatmul.mubr.f32.gmra.mrb[0].mxu0 %v4204
      %v4510 = vpop.f32.mrb[0].mxu0
      %v4511 = vadd.f32 0.0, %v4510
      %v4512 = vpop.f32.mrb[0].mxu0
      %4513 = vmatprep.mubr.f32.mxu0 0.0
      %4514 = vmatmul.mubr.f32.gmra.mrb[0].mxu0 %v4207
      %v4515 = vpop.f32.mrb[0].mxu0
      %v4516 = vadd.f32 0.0, %v4515
      %v4517 = vpop.f32.mrb[0].mxu0
      %4518 = vmatprep.mubr.f32.mxu0 0.0
      %4519 = vmatmul.mubr.f32.gmra.mrb[0].mxu0 %v4210
      %v4520 = vpop.f32.mrb[0].mxu0
      %v4521 = vadd.f32 0.0, %v4520
      %v4522 = vpop.f32.mrb[0].mxu0
      %4523 = vdwg.mxu0
      %v4524 = vadd.f32 %v4031, %v4285
      %v4525 = vadd.f32 %v4032, %v4287
      %v4526 = vadd.f32 %v4033, %v4446
      %v4527 = vadd.f32 %v4034, %v4291
      %v4528 = vadd.f32 %v4035, %v4293
      %v4529 = vadd.f32 %v4036, %v4451
      %v4530 = vadd.f32 %v4037, %v4297
      %v4531 = vadd.f32 %v4038, %v4299
      %v4532 = vadd.f32 %v4039, %v4456
      %v4533 = vadd.f32 %v4040, %v4303
      %v4534 = vadd.f32 %v4041, %v4305
      %v4535 = vadd.f32 %v4042, %v4461
      %v4536 = vadd.f32 %v4043, %v4309
      %v4537 = vadd.f32 %v4044, %v4311
      %v4538 = vadd.f32 %v4045, %v4466
      %v4539 = vadd.f32 %v4046, %v4315
      %v4540 = vadd.f32 %v4047, %v4317
      %v4541 = vadd.f32 %v4048, %v4471
      %v4542 = vadd.f32 %v4049, %v4321
      %v4543 = vadd.f32 %v4050, %v4323
      %v4544 = vadd.f32 %v4051, %v4476
      %v4545 = vadd.f32 %v4052, %v4327
      %v4546 = vadd.f32 %v4053, %v4329
      %v4547 = vadd.f32 %v4054, %v4481
      %v4548 = vadd.f32 %v4055, %v4333
      %v4549 = vadd.f32 %v4056, %v4335
      %v4550 = vadd.f32 %v4057, %v4486
      %v4551 = vadd.f32 %v4058, %v4339
      %v4552 = vadd.f32 %v4059, %v4341
      %v4553 = vadd.f32 %v4060, %v4491
      %v4554 = vadd.f32 %v4061, %v4345
      %v4555 = vadd.f32 %v4062, %v4347
      %v4556 = vadd.f32 %v4063, %v4496
      %v4557 = vadd.f32 %v4064, %v4351
      %v4558 = vadd.f32 %v4065, %v4353
      %v4559 = vadd.f32 %v4066, %v4501
      %v4560 = vadd.f32 %v4067, %v4357
      %v4561 = vadd.f32 %v4068, %v4359
      %v4562 = vadd.f32 %v4069, %v4506
      %v4563 = vadd.f32 %v4070, %v4363
      %v4564 = vadd.f32 %v4071, %v4365
      %v4565 = vadd.f32 %v4072, %v4511
      %v4566 = vadd.f32 %v4073, %v4369
      %v4567 = vadd.f32 %v4074, %v4371
      %v4568 = vadd.f32 %v4075, %v4516
      %v4569 = vadd.f32 %v4076, %v4375
      %v4570 = vadd.f32 %v4077, %v4377
      %v4571 = vadd.f32 %v4078, %v4521
      %v4572 = vld [vmem:[%s2] sm:$0xff]
      %v4573 = vld [vmem:[%s2 + $0x8] sm:$0xff]
      %v4574 = vld [vmem:[%s2 + $0x10] sm:$0xff]
      %v4575 = vld [vmem:[%s2 + $0x18] sm:$0xff]
      %v4576 = vld [vmem:[%s2 + $0x20] sm:$0xff]
      %v4577 = vld [vmem:[%s2 + $0x28] sm:$0xff]
      %v4578 = vld [vmem:[%s2 + $0x30] sm:$0xff]
      %v4579 = vld [vmem:[%s2 + $0x38] sm:$0xff]
      %v4580 = vld [vmem:[%s2 + $0x40] sm:$0xff]
      %v4581 = vld [vmem:[%s2 + $0x48] sm:$0xff]
      %v4582 = vld [vmem:[%s2 + $0x50] sm:$0xff]
      %v4583 = vld [vmem:[%s2 + $0x58] sm:$0xff]
      %v4584 = vld [vmem:[%s2 + $0x60] sm:$0xff]
      %v4585 = vld [vmem:[%s2 + $0x68] sm:$0xff]
      %v4586 = vld [vmem:[%s2 + $0x70] sm:$0xff]
      %v4587 = vld [vmem:[%s2 + $0x78] sm:$0xff]
      %4589 = vset.pattern.permute.xlu0 0
      %4590 = vperm.xlu0 %4589, %v4572
      %v4591 = vpop.permute.xlu0 %4590
      %4594 = vset.pattern.permute.xlu0 0
      %4595 = vperm.xlu0 %4594, %v4573
      %v4596 = vpop.permute.xlu0 %4595
      %4599 = vset.pattern.permute.xlu0 0
      %4600 = vperm.xlu0 %4599, %v4574
      %v4601 = vpop.permute.xlu0 %4600
      %4604 = vset.pattern.permute.xlu0 0
      %4605 = vperm.xlu0 %4604, %v4575
      %v4606 = vpop.permute.xlu0 %4605
      %4609 = vset.pattern.permute.xlu0 0
      %4610 = vperm.xlu0 %4609, %v4576
      %v4611 = vpop.permute.xlu0 %4610
      %4614 = vset.pattern.permute.xlu0 0
      %4615 = vperm.xlu0 %4614, %v4577
      %v4616 = vpop.permute.xlu0 %4615
      %4619 = vset.pattern.permute.xlu0 0
      %4620 = vperm.xlu0 %4619, %v4578
      %v4621 = vpop.permute.xlu0 %4620
      %4624 = vset.pattern.permute.xlu0 0
      %4625 = vperm.xlu0 %4624, %v4579
      %v4626 = vpop.permute.xlu0 %4625
      %4629 = vset.pattern.permute.xlu0 0
      %4630 = vperm.xlu0 %4629, %v4580
      %v4631 = vpop.permute.xlu0 %4630
      %4634 = vset.pattern.permute.xlu0 0
      %4635 = vperm.xlu0 %4634, %v4581
      %v4636 = vpop.permute.xlu0 %4635
      %4639 = vset.pattern.permute.xlu0 0
      %4640 = vperm.xlu0 %4639, %v4582
      %v4641 = vpop.permute.xlu0 %4640
      %4644 = vset.pattern.permute.xlu0 0
      %4645 = vperm.xlu0 %4644, %v4583
      %v4646 = vpop.permute.xlu0 %4645
      %4649 = vset.pattern.permute.xlu0 0
      %4650 = vperm.xlu0 %4649, %v4584
      %v4651 = vpop.permute.xlu0 %4650
      %4654 = vset.pattern.permute.xlu0 0
      %4655 = vperm.xlu0 %4654, %v4585
      %v4656 = vpop.permute.xlu0 %4655
      %4659 = vset.pattern.permute.xlu0 0
      %4660 = vperm.xlu0 %4659, %v4586
      %v4661 = vpop.permute.xlu0 %4660
      %4664 = vset.pattern.permute.xlu0 0
      %4665 = vperm.xlu0 %4664, %v4587
      %v4666 = vpop.permute.xlu0 %4665
      %v4668 = vadd.f32 %v4524, %v4591
      %v4669 = vadd.f32 %v4525, %v4591
      %v4670 = vadd.f32 %v4526, %v4591
      %v4671 = vadd.f32 %v4527, %v4596
      %v4672 = vadd.f32 %v4528, %v4596
      %v4673 = vadd.f32 %v4529, %v4596
      %v4674 = vadd.f32 %v4530, %v4601
      %v4675 = vadd.f32 %v4531, %v4601
      %v4676 = vadd.f32 %v4532, %v4601
      %v4677 = vadd.f32 %v4533, %v4606
      %v4678 = vadd.f32 %v4534, %v4606
      %v4679 = vadd.f32 %v4535, %v4606
      %v4680 = vadd.f32 %v4536, %v4611
      %v4681 = vadd.f32 %v4537, %v4611
      %v4682 = vadd.f32 %v4538, %v4611
      %v4683 = vadd.f32 %v4539, %v4616
      %v4684 = vadd.f32 %v4540, %v4616
      %v4685 = vadd.f32 %v4541, %v4616
      %v4686 = vadd.f32 %v4542, %v4621
      %v4687 = vadd.f32 %v4543, %v4621
      %v4688 = vadd.f32 %v4544, %v4621
      %v4689 = vadd.f32 %v4545, %v4626
      %v4690 = vadd.f32 %v4546, %v4626
      %v4691 = vadd.f32 %v4547, %v4626
      %v4692 = vadd.f32 %v4548, %v4631
      %v4693 = vadd.f32 %v4549, %v4631
      %v4694 = vadd.f32 %v4550, %v4631
      %v4695 = vadd.f32 %v4551, %v4636
      %v4696 = vadd.f32 %v4552, %v4636
      %v4697 = vadd.f32 %v4553, %v4636
      %v4698 = vadd.f32 %v4554, %v4641
      %v4699 = vadd.f32 %v4555, %v4641
      %v4700 = vadd.f32 %v4556, %v4641
      %v4701 = vadd.f32 %v4557, %v4646
      %v4702 = vadd.f32 %v4558, %v4646
      %v4703 = vadd.f32 %v4559, %v4646
      %v4704 = vadd.f32 %v4560, %v4651
      %v4705 = vadd.f32 %v4561, %v4651
      %v4706 = vadd.f32 %v4562, %v4651
      %v4707 = vadd.f32 %v4563, %v4656
      %v4708 = vadd.f32 %v4564, %v4656
      %v4709 = vadd.f32 %v4565, %v4656
      %v4710 = vadd.f32 %v4566, %v4661
      %v4711 = vadd.f32 %v4567, %v4661
      %v4712 = vadd.f32 %v4568, %v4661
      %v4713 = vadd.f32 %v4569, %v4666
      %v4714 = vadd.f32 %v4570, %v4666
      %v4715 = vadd.f32 %v4571, %v4666
      %v4716 = vmul.f32 %v4668, 0.5
      %v4717 = vmul.f32 %v4669, 0.5
      %v4718 = vmul.f32 %v4670, 0.5
      %v4719 = vmul.f32 %v4671, 0.5
      %v4720 = vmul.f32 %v4672, 0.5
      %v4721 = vmul.f32 %v4673, 0.5
      %v4722 = vmul.f32 %v4674, 0.5
      %v4723 = vmul.f32 %v4675, 0.5
      %v4724 = vmul.f32 %v4676, 0.5
      %v4725 = vmul.f32 %v4677, 0.5
      %v4726 = vmul.f32 %v4678, 0.5
      %v4727 = vmul.f32 %v4679, 0.5
      %v4728 = vmul.f32 %v4680, 0.5
      %v4729 = vmul.f32 %v4681, 0.5
      %v4730 = vmul.f32 %v4682, 0.5
      %v4731 = vmul.f32 %v4683, 0.5
      %v4732 = vmul.f32 %v4684, 0.5
      %v4733 = vmul.f32 %v4685, 0.5
      %v4734 = vmul.f32 %v4686, 0.5
      %v4735 = vmul.f32 %v4687, 0.5
      %v4736 = vmul.f32 %v4688, 0.5
      %v4737 = vmul.f32 %v4689, 0.5
      %v4738 = vmul.f32 %v4690, 0.5
      %v4739 = vmul.f32 %v4691, 0.5
      %v4740 = vmul.f32 %v4692, 0.5
      %v4741 = vmul.f32 %v4693, 0.5
      %v4742 = vmul.f32 %v4694, 0.5
      %v4743 = vmul.f32 %v4695, 0.5
      %v4744 = vmul.f32 %v4696, 0.5
      %v4745 = vmul.f32 %v4697, 0.5
      %v4746 = vmul.f32 %v4698, 0.5
      %v4747 = vmul.f32 %v4699, 0.5
      %v4748 = vmul.f32 %v4700, 0.5
      %v4749 = vmul.f32 %v4701, 0.5
      %v4750 = vmul.f32 %v4702, 0.5
      %v4751 = vmul.f32 %v4703, 0.5
      %v4752 = vtanh.pop %v4716
      %v4753 = vtanh.pop %v4717
      %v4754 = vtanh.pop %v4718
      %v4755 = vtanh.pop %v4719
      %v4756 = vtanh.pop %v4720
      %v4757 = vtanh.pop %v4721
      %v4758 = vtanh.pop %v4722
      %v4759 = vtanh.pop %v4723
      %v4760 = vtanh.pop %v4724
      %v4761 = vtanh.pop %v4725
      %v4762 = vtanh.pop %v4726
      %v4763 = vtanh.pop %v4727
      %v4764 = vtanh.pop %v4728
      %v4765 = vtanh.pop %v4729
      %v4766 = vtanh.pop %v4730
      %v4767 = vtanh.pop %v4731
      %v4768 = vtanh.pop %v4732
      %v4769 = vtanh.pop %v4733
      %v4770 = vtanh.pop %v4734
      %v4771 = vtanh.pop %v4735
      %v4772 = vtanh.pop %v4736
      %v4773 = vtanh.pop %v4737
      %v4774 = vtanh.pop %v4738
      %v4775 = vtanh.pop %v4739
      %v4776 = vtanh.pop %v4740
      %v4777 = vtanh.pop %v4741
      %v4778 = vtanh.pop %v4742
      %v4779 = vtanh.pop %v4743
      %v4780 = vtanh.pop %v4744
      %v4781 = vtanh.pop %v4745
      %v4782 = vtanh.pop %v4746
      %v4783 = vtanh.pop %v4747
      %v4784 = vtanh.pop %v4748
      %v4785 = vtanh.pop %v4749
      %v4786 = vtanh.pop %v4750
      %v4787 = vtanh.pop %v4751
      %v4788 = vmul.f32 %v4752, 0.5
      %v4789 = vmul.f32 %v4753, 0.5
      %v4790 = vmul.f32 %v4754, 0.5
      %v4791 = vmul.f32 %v4755, 0.5
      %v4792 = vmul.f32 %v4756, 0.5
      %v4793 = vmul.f32 %v4757, 0.5
      %v4794 = vmul.f32 %v4758, 0.5
      %v4795 = vmul.f32 %v4759, 0.5
      %v4796 = vmul.f32 %v4760, 0.5
      %v4797 = vmul.f32 %v4761, 0.5
      %v4798 = vmul.f32 %v4762, 0.5
      %v4799 = vmul.f32 %v4763, 0.5
      %v4800 = vmul.f32 %v4764, 0.5
      %v4801 = vmul.f32 %v4765, 0.5
      %v4802 = vmul.f32 %v4766, 0.5
      %v4803 = vmul.f32 %v4767, 0.5
      %v4804 = vmul.f32 %v4768, 0.5
      %v4805 = vmul.f32 %v4769, 0.5
      %v4806 = vmul.f32 %v4770, 0.5
      %v4807 = vmul.f32 %v4771, 0.5
      %v4808 = vmul.f32 %v4772, 0.5
      %v4809 = vmul.f32 %v4773, 0.5
      %v4810 = vmul.f32 %v4774, 0.5
      %v4811 = vmul.f32 %v4775, 0.5
      %v4812 = vmul.f32 %v4776, 0.5
      %v4813 = vmul.f32 %v4777, 0.5
      %v4814 = vmul.f32 %v4778, 0.5
      %v4815 = vmul.f32 %v4779, 0.5
      %v4816 = vmul.f32 %v4780, 0.5
      %v4817 = vmul.f32 %v4781, 0.5
      %v4818 = vmul.f32 %v4782, 0.5
      %v4819 = vmul.f32 %v4783, 0.5
      %v4820 = vmul.f32 %v4784, 0.5
      %v4821 = vmul.f32 %v4785, 0.5
      %v4822 = vmul.f32 %v4786, 0.5
      %v4823 = vmul.f32 %v4787, 0.5
      %v4824 = vadd.f32 %v4788, 0.5
      %v4825 = vadd.f32 %v4789, 0.5
      %v4826 = vadd.f32 %v4790, 0.5
      %v4827 = vadd.f32 %v4791, 0.5
      %v4828 = vadd.f32 %v4792, 0.5
      %v4829 = vadd.f32 %v4793, 0.5
      %v4830 = vadd.f32 %v4794, 0.5
      %v4831 = vadd.f32 %v4795, 0.5
      %v4832 = vadd.f32 %v4796, 0.5
      %v4833 = vadd.f32 %v4797, 0.5
      %v4834 = vadd.f32 %v4798, 0.5
      %v4835 = vadd.f32 %v4799, 0.5
      %v4836 = vadd.f32 %v4800, 0.5
      %v4837 = vadd.f32 %v4801, 0.5
      %v4838 = vadd.f32 %v4802, 0.5
      %v4839 = vadd.f32 %v4803, 0.5
      %v4840 = vadd.f32 %v4804, 0.5
      %v4841 = vadd.f32 %v4805, 0.5
      %v4842 = vadd.f32 %v4806, 0.5
      %v4843 = vadd.f32 %v4807, 0.5
      %v4844 = vadd.f32 %v4808, 0.5
      %v4845 = vadd.f32 %v4809, 0.5
      %v4846 = vadd.f32 %v4810, 0.5
      %v4847 = vadd.f32 %v4811, 0.5
      %v4848 = vadd.f32 %v4812, 0.5
      %v4849 = vadd.f32 %v4813, 0.5
      %v4850 = vadd.f32 %v4814, 0.5
      %v4851 = vadd.f32 %v4815, 0.5
      %v4852 = vadd.f32 %v4816, 0.5
      %v4853 = vadd.f32 %v4817, 0.5
      %v4854 = vadd.f32 %v4818, 0.5
      %v4855 = vadd.f32 %v4819, 0.5
      %v4856 = vadd.f32 %v4820, 0.5
      %v4857 = vadd.f32 %v4821, 0.5
      %v4858 = vadd.f32 %v4822, 0.5
      %v4859 = vadd.f32 %v4823, 0.5
      %v4860 = vtanh.pop %v4704
      %v4861 = vtanh.pop %v4705
      %v4862 = vtanh.pop %v4706
      %v4863 = vtanh.pop %v4707
      %v4864 = vtanh.pop %v4708
      %v4865 = vtanh.pop %v4709
      %v4866 = vtanh.pop %v4710
      %v4867 = vtanh.pop %v4711
      %v4868 = vtanh.pop %v4712
      %v4869 = vtanh.pop %v4713
      %v4870 = vtanh.pop %v4714
      %v4871 = vtanh.pop %v4715
      %v4872 = vld [vmem:[%s247] sm:$0xff]
      %v4873 = vld [vmem:[%s247 + $0x8] sm:$0xff]
      %v4874 = vld [vmem:[%s247 + $0x10] sm:$0xff]
      %v4875 = vld [vmem:[%s247 + $0x18] sm:$0xff]
      %v4876 = vld [vmem:[%s247 + $0x20] sm:$0xff]
      %v4877 = vld [vmem:[%s247 + $0x28] sm:$0xff]
      %v4878 = vld [vmem:[%s247 + $0x30] sm:$0xff]
      %v4879 = vld [vmem:[%s247 + $0x38] sm:$0xff]
      %v4880 = vld [vmem:[%s247 + $0x40] sm:$0xff]
      %v4881 = vld [vmem:[%s247 + $0x48] sm:$0xff]
      %v4882 = vld [vmem:[%s247 + $0x50] sm:$0xff]
      %v4883 = vld [vmem:[%s247 + $0x58] sm:$0xff]
      %v4884 = vmul.f32 %v4836, %v4872
      %v4885 = vmul.f32 %v4837, %v4873
      %v4886 = vmul.f32 %v4838, %v4874
      %v4887 = vmul.f32 %v4839, %v4875
      %v4888 = vmul.f32 %v4840, %v4876
      %v4889 = vmul.f32 %v4841, %v4877
      %v4890 = vmul.f32 %v4842, %v4878
      %v4891 = vmul.f32 %v4843, %v4879
      %v4892 = vmul.f32 %v4844, %v4880
      %v4893 = vmul.f32 %v4845, %v4881
      %v4894 = vmul.f32 %v4846, %v4882
      %v4895 = vmul.f32 %v4847, %v4883
      %v4896 = vmul.f32 %v4824, %v4860
      %v4897 = vmul.f32 %v4825, %v4861
      %v4898 = vmul.f32 %v4826, %v4862
      %v4899 = vmul.f32 %v4827, %v4863
      %v4900 = vmul.f32 %v4828, %v4864
      %v4901 = vmul.f32 %v4829, %v4865
      %v4902 = vmul.f32 %v4830, %v4866
      %v4903 = vmul.f32 %v4831, %v4867
      %v4904 = vmul.f32 %v4832, %v4868
      %v4905 = vmul.f32 %v4833, %v4869
      %v4906 = vmul.f32 %v4834, %v4870
      %v4907 = vmul.f32 %v4835, %v4871
      %v4908 = vadd.f32 %v4884, %v4896
      %v4909 = vadd.f32 %v4885, %v4897
      %v4910 = vadd.f32 %v4886, %v4898
      %v4911 = vadd.f32 %v4887, %v4899
      %v4912 = vadd.f32 %v4888, %v4900
      %v4913 = vadd.f32 %v4889, %v4901
      %v4914 = vadd.f32 %v4890, %v4902
      %v4915 = vadd.f32 %v4891, %v4903
      %v4916 = vadd.f32 %v4892, %v4904
      %v4917 = vadd.f32 %v4893, %v4905
      %v4918 = vadd.f32 %v4894, %v4906
      %v4919 = vadd.f32 %v4895, %v4907
      %v4920 = vtanh.pop %v4908
      %v4921 = vtanh.pop %v4909
      %v4922 = vtanh.pop %v4910
      %v4923 = vtanh.pop %v4911
      %v4924 = vtanh.pop %v4912
      %v4925 = vtanh.pop %v4913
      %v4926 = vtanh.pop %v4914
      %v4927 = vtanh.pop %v4915
      %v4928 = vtanh.pop %v4916
      %v4929 = vtanh.pop %v4917
      %v4930 = vtanh.pop %v4918
      %v4931 = vtanh.pop %v4919
      %v4932 = vmul.f32 %v4848, %v4920
      %v4933 = vmul.f32 %v4849, %v4921
      %v4934 = vmul.f32 %v4850, %v4922
      %v4935 = vmul.f32 %v4851, %v4923
      %v4936 = vmul.f32 %v4852, %v4924
      %v4937 = vmul.f32 %v4853, %v4925
      %v4938 = vmul.f32 %v4854, %v4926
      %v4939 = vmul.f32 %v4855, %v4927
      %v4940 = vmul.f32 %v4856, %v4928
      %v4941 = vmul.f32 %v4857, %v4929
      %v4942 = vmul.f32 %v4858, %v4930
      %v4943 = vmul.f32 %v4859, %v4931
      %4944 = vst [vmem:[%s257] sm:$0xff] %v4908
      %4945 = vst [vmem:[%s257 + $0x8] sm:$0xff] %v4909
      %4946 = vst [vmem:[%s257 + $0x10] sm:$0xff] %v4910
      %4947 = vst [vmem:[%s257 + $0x18] sm:$0xff] %v4911
      %4948 = vst [vmem:[%s257 + $0x20] sm:$0xff] %v4912
      %4949 = vst [vmem:[%s257 + $0x28] sm:$0xff] %v4913
      %4950 = vst [vmem:[%s257 + $0x30] sm:$0xff] %v4914
      %4951 = vst [vmem:[%s257 + $0x38] sm:$0xff] %v4915
      %4952 = vst [vmem:[%s257 + $0x40] sm:$0xff] %v4916
      %4953 = vst [vmem:[%s257 + $0x48] sm:$0xff] %v4917
      %4954 = vst [vmem:[%s257 + $0x50] sm:$0xff] %v4918
      %4955 = vst [vmem:[%s257 + $0x58] sm:$0xff] %v4919
      %4956 = vst [vmem:[%s252] sm:$0xff] %v4932
      %4957 = vst [vmem:[%s252 + $0x8] sm:$0xff] %v4933
      %4958 = vst [vmem:[%s252 + $0x10] sm:$0xff] %v4934
      %4959 = vst [vmem:[%s252 + $0x18] sm:$0xff] %v4935
      %4960 = vst [vmem:[%s252 + $0x20] sm:$0xff] %v4936
      %4961 = vst [vmem:[%s252 + $0x28] sm:$0xff] %v4937
      %4962 = vst [vmem:[%s252 + $0x30] sm:$0xff] %v4938
      %4963 = vst [vmem:[%s252 + $0x38] sm:$0xff] %v4939
      %4964 = vst [vmem:[%s252 + $0x40] sm:$0xff] %v4940
      %4965 = vst [vmem:[%s252 + $0x48] sm:$0xff] %v4941
      %4966 = vst [vmem:[%s252 + $0x50] sm:$0xff] %v4942
      %4967 = vst [vmem:[%s252 + $0x58] sm:$0xff] %v4943
      %p4968 = scmp.lt.s32.totalorder %s17, 1
      %s4969 = scalar_select %p4968, %s17, 1
      %s4970 = smul.addr %s4969, 12
      %s4971 = smul.addr %s4970, 8
      %s4972 = scalar_lea.vmem %s4, %s4971
      %p4973 = scmp.lt.s32.totalorder %s17, 1
      %s4974 = scalar_select %p4973, %s17, 1
      %s4975 = smul.addr %s4974, 12
      %s4976 = smul.addr %s4975, 8
      %s4977 = scalar_lea.vmem %s5, %s4976
      // Predicated region
      $region37: #{conv_lstm_cell.1} parent=35 // pred_check
        %p4978 = pneg %p129
      $region38: #{conv_lstm_cell.1} parent=35 // pred_check_branch
        %4980 = sbr.rel (%p4978) target = $region40
      $region39: #{conv_lstm_cell.1} parent=35 // pred_region
        _
      $region40: #{conv_lstm_cell.1} parent=35 // pred_fallthru
        _
      // Predicated region
      $region41: #{conv_lstm_cell.1} parent=35 // pred_check
        %p4981 = pneg %p155
      $region42: #{conv_lstm_cell.1} parent=35 // pred_check_branch
        %4983 = sbr.rel (%p4981) target = $region44
      $region43: #{conv_lstm_cell.1} parent=35 // pred_region
        _
      $region44: #{conv_lstm_cell.1} parent=35 // pred_fallthru
        _
    $region36: #{conv_lstm_cell.1} parent=5 // pred_fallthru
      _
    %p4984 = scmp.le.s32.totalorder 2, %s12
    // Predicated region
    $region45: #{conv_lstm_cell.1} parent=5 // pred_check
      %p4985 = pneg %p4984
    $region46: #{conv_lstm_cell.1} parent=5 // pred_check_branch
      %4987 = sbr.rel (%p4985) target = $region48
    $region47: #{conv_lstm_cell.1} parent=5 // pred_region
      %s4988 = ssub.s32 %s12, 2
      // Predicated region
      $region49: #{conv_lstm_cell.1} parent=47 // pred_check
        %p4989 = pneg %p135
      $region50: #{conv_lstm_cell.1} parent=47 // pred_check_branch
        %4991 = sbr.rel (%p4989) target = $region52
      $region51: #{conv_lstm_cell.1} parent=47 // pred_region
        %p4992 = scmp.lt.s32.totalorder %s18, 1
        %s4993 = scalar_select %p4992, %s18, 1
        %s4994 = smul.addr %s4993, 12
        %s4995 = smul.addr %s4994, 8
        %s4996 = scalar_lea.vmem %s4, %s4995
      $region52: #{conv_lstm_cell.1} parent=47 // pred_fallthru
        _
      // Predicated region
      $region53: #{conv_lstm_cell.1} parent=47 // pred_check
        %p4997 = pneg %p161
      $region54: #{conv_lstm_cell.1} parent=47 // pred_check_branch
        %4999 = sbr.rel (%p4997) target = $region56
      $region55: #{conv_lstm_cell.1} parent=47 // pred_region
        %p5000 = scmp.lt.s32.totalorder %s18, 1
        %s5001 = scalar_select %p5000, %s18, 1
        %s5002 = smul.addr %s5001, 12
        %s5003 = smul.addr %s5002, 8
        %s5004 = scalar_lea.vmem %s5, %s5003
      $region56: #{conv_lstm_cell.1} parent=47 // pred_fallthru
        _
    $region48: #{conv_lstm_cell.1} parent=5 // pred_fallthru
      _
  $region6: #{conv_lstm_cell.1} parent=0 // loop_footer
    %s16 = sadd.s32 1, %s12
  $region7: #{conv_lstm_cell.1} parent=0 // loop_footer_branch
    %11 = sbr.rel target = $region3
  $region8: #{conv_lstm_cell.1} parent=0 // loop_exit
    _

</llo_original>
